<compile_context>
chip_gen: v6e
topology: v6e:2x2x1
jax: 0.10.0
libtpu: 0.0.40
codegen_flags: <defaults>
</compile_context>

<pallas_src>
import jax
import jax.numpy as jnp
from jax.experimental import pallas as pl
from jax.experimental.pallas import tpu as pltpu

LN_EPS = 1e-6
_INV_SQRT2 = 0.7071067811865476


def _convnext_block_kernel(xlo_ref, xhi_ref, dww_ref, dwb_ref, lnw_ref, lnb_ref,
                           w1_ref, b1_ref, w2_ref, b2_ref, gamma_ref,
                           out_ref, slab_ref):
    # xlo_ref:  (1, TH,   W+6, C) rows [t*TH, (t+1)*TH) of the zero-padded NHWC image
    # xhi_ref:  (1, HALO, W+6, C) rows starting at (t+1)*TH (only its first 6 rows are used)
    # dww_ref:  (7, 7, C) f32; dwb/lnw/lnb/b2/gamma: (1, C) f32; b1: (1, 4C) f32
    # w1_ref:   (C, 4C) bf16, w2_ref: (4C, C) bf16   (Linear weights pre-transposed + pre-cast)
    # out_ref:  (1, TH, W, C)
    # slab_ref: VMEM scratch (TH+6, W+6, C) f32 -- the padded strip for this row tile.
    TH = out_ref.shape[1]
    W = out_ref.shape[2]
    C = out_ref.shape[3]

    # Stitch the padded strip (rows t*TH .. t*TH+TH+5 of the padded image) into scratch.
    slab_ref[0:TH] = xlo_ref[0]
    slab_ref[TH:TH + 6] = xhi_ref[0, 0:6]

    dww = dww_ref[...]                                     # (7, 7, C) f32

    # --- depthwise 7x7 conv (padding=3, groups=C) ---
    # kw outermost: one column-shifted read of the whole strip per kw (7 sublane-offset
    # reads total); kh slices ride the leading dim (free address math).
    # TODO(synk): chunk W with lax.fori_loop(unroll=True) at realistic sizes to bound the
    # live f32 accumulator (~43 vregs at TH=8, W=56, C=96) and avoid spills.
    acc = jnp.zeros((TH, W, C), jnp.float32)
    for kw in range(7):
        cols = slab_ref[:, kw:kw + W, :]                   # (TH+6, W, C)
        for kh in range(7):
            acc = acc + cols[kh:kh + TH] * dww[kh, kw]
    acc = acc + dwb_ref[0]

    h = acc.reshape(TH * W, C)                             # rows = pixels, channels on lanes

    # --- LayerNorm over channels (channels_last, centered variance, eps=1e-6) ---
    mean = jnp.mean(h, axis=-1, keepdims=True)
    hc = h - mean
    var = jnp.mean(hc * hc, axis=-1, keepdims=True)
    hn = hc * jax.lax.rsqrt(var + LN_EPS)
    hn = hn * lnw_ref[0] + lnb_ref[0]

    # --- pwconv1 (C -> 4C), exact GELU, pwconv2 (4C -> C): bf16 MXU operands, f32 accum ---
    # Weights arrive pre-cast to bf16; only the per-step activation is cast here.
    y = jnp.dot(hn.astype(jnp.bfloat16), w1_ref[...],
                preferred_element_type=jnp.float32) + b1_ref[0]
    # nn.GELU() default is the exact erf form; kept in f32 for parity (v5e has no bf16 VPU).
    # TODO(synk): tanh-approx GELU / bf16 elementwise would offload to the EUP on v6e/v7x.
    y = 0.5 * y * (1.0 + jax.lax.erf(y * _INV_SQRT2))
    z = jnp.dot(y.astype(jnp.bfloat16), w2_ref[...],
                preferred_element_type=jnp.float32) + b2_ref[0]

    # --- layer scale (gamma) + residual (shortcut taken from the interior of the slab) ---
    z = z * gamma_ref[0]
    shortcut = slab_ref[3:3 + TH, 3:3 + W, :]
    out_ref[0] = (shortcut + z.reshape(TH, W, C)).astype(out_ref.dtype)


def _vmem_limit_bytes():
    """~75% of physical VMEM: ~96 MiB on v5e/v6e (128 MiB phys), ~48 MiB on v7x (64 MiB)."""
    cap = 64 * 1024 * 1024                      # conservative fallback (safe on every gen)
    try:
        cap = int(pltpu.get_tpu_info().vmem_capacity_bytes)
    except Exception:
        pass
    return int(cap * 0.75)


def _workset_bytes(TH, halo_rows, W, C):
    """Rough per-step VMEM working set (f32 activations, bf16 MXU weights, 2x buffering)."""
    Wp = W + 6
    slab = (TH + 6) * Wp * C * 4
    strips = 2 * (TH + halo_rows) * Wp * C * 4            # double-buffered xlo + halo DMA
    outb = 2 * TH * W * C * 4                             # double-buffered output
    weights = 2 * 2 * (2 * C * 4 * C)                     # bf16 w1 + w2, double-buffered
    acts = 3 * TH * W * 4 * C * 4                         # 4C-wide intermediates (rough)
    return slab + strips + outb + weights + acts


def _pick_row_tile(H, W, C, vmem_budget, target_m=512):
    """Row tile that divides H, prefers multiples of 8 (slim 8-row halo DMA), aims for
    TH*W >= target_m (fills the 256-wide MXU on v6e/v7x) and respects the VMEM budget."""
    divisors = [d for d in range(1, H + 1) if H % d == 0]
    pref = ([d for d in divisors if d % 8 == 0]
            or [d for d in divisors if d >= 6]
            or [H])

    def fits(d):
        halo = 8 if d % 8 == 0 else d
        return _workset_bytes(d, halo, W, C) <= 0.6 * vmem_budget

    pool = [d for d in pref if fits(d)] or [min(pref)]
    big = [d for d in pool if d * W >= target_m]
    return min(big) if big else max(pool)


def convnext_block(x_nchw, params, row_tile=None):
    """x_nchw: (N, C, H, W) float32. Returns (N, C, H, W)."""
    N, C, H, W = x_nchw.shape
    vmem_limit = _vmem_limit_bytes()
    TH = _pick_row_tile(H, W, C, vmem_limit) if row_tile is None else row_tile
    assert H % TH == 0, f"row tile {TH} must divide H={H}"
    assert TH % 8 == 0 or TH >= 6, f"row tile {TH} must be a multiple of 8 or >= 6 (7x7 halo)"
    T = H // TH
    Wp = W + 6

    slim_halo = (TH % 8 == 0)
    if slim_halo:
        halo_rows = 8
        Hp = H + 8                                         # top pad 3, data H, bottom pad 5
        th8 = TH // 8
        halo_map = lambda b, t: (b, (t + 1) * th8, 0, 0)
    else:
        halo_rows = TH
        Hp = (T + 1) * TH                                  # bottom pad TH-3 >= 3
        halo_map = lambda b, t: (b, t + 1, 0, 0)

    x = jnp.transpose(x_nchw, (0, 2, 3, 1))                # NHWC (channels -> lanes)
    xpad = jnp.pad(x, ((0, 0), (3, Hp - H - 3), (3, 3), (0, 0)))   # Conv2d padding=3

    # Host-side one-time bf16 cast of the MXU weights (no per-step re-cast in the kernel).
    w1 = params["w1"].astype(jnp.bfloat16)
    w2 = params["w2"].astype(jnp.bfloat16)

    def const_spec(shape):
        zeros = (0,) * len(shape)
        return pl.BlockSpec(shape, lambda b, t, _z=zeros: _z)

    in_specs = [
        pl.BlockSpec((1, TH, Wp, C), lambda b, t: (b, t, 0, 0)),   # strip rows
        pl.BlockSpec((1, halo_rows, Wp, C), halo_map),             # bottom-halo rows (slim)
        const_spec((7, 7, C)),       # dwconv weight
        const_spec((1, C)),          # dwconv bias
        const_spec((1, C)),          # LN weight
        const_spec((1, C)),          # LN bias
        const_spec((C, 4 * C)),      # pwconv1 weight (pre-transposed, bf16)
        const_spec((1, 4 * C)),      # pwconv1 bias
        const_spec((4 * C, C)),      # pwconv2 weight (pre-transposed, bf16)
        const_spec((1, C)),          # pwconv2 bias
        const_spec((1, C)),          # gamma (layer scale)
    ]

    out_nhwc = pl.pallas_call(
        _convnext_block_kernel,
        out_shape=jax.ShapeDtypeStruct((N, H, W, C), x.dtype),
        grid=(N, T),
        in_specs=in_specs,
        out_specs=pl.BlockSpec((1, TH, W, C), lambda b, t: (b, t, 0, 0)),
        scratch_shapes=[pltpu.VMEM((TH + 6, Wp, C), jnp.float32)],
        compiler_params=pltpu.CompilerParams(
            dimension_semantics=("parallel", "parallel"),   # v7x: split across both TCs
            vmem_limit_bytes=vmem_limit,
        ),
    )(xpad, xpad,
      params["dw_weight"], params["dw_bias"],
      params["ln_weight"], params["ln_bias"],
      w1, params["b1"], w2, params["b2"],
      params["gamma"])

    return jnp.transpose(out_nhwc, (0, 3, 1, 2))            # back to NCHW


def convnext_block_reference(x_nchw, p):
    """Pure-JAX f32 reference (same math as the PyTorch Block) for validation."""
    N, C, H, W = x_nchw.shape
    x = jnp.transpose(x_nchw, (0, 2, 3, 1))
    xpad = jnp.pad(x, ((0, 0), (3, 3), (3, 3), (0, 0)))
    acc = jnp.zeros_like(x)
    for kh in range(7):
        for kw in range(7):
            acc = acc + xpad[:, kh:kh + H, kw:kw + W, :] * p["dw_weight"][kh, kw]
    acc = acc + p["dw_bias"][0]
    mean = jnp.mean(acc, -1, keepdims=True)
    var = jnp.mean((acc - mean) ** 2, -1, keepdims=True)
    hn = (acc - mean) / jnp.sqrt(var + LN_EPS) * p["ln_weight"][0] + p["ln_bias"][0]
    y = hn @ p["w1"] + p["b1"][0]
    y = 0.5 * y * (1.0 + jax.lax.erf(y * _INV_SQRT2))
    z = (y @ p["w2"] + p["b2"][0]) * p["gamma"][0]
    return jnp.transpose(x + z, (0, 3, 1, 2))


if __name__ == "__main__":
    N, C, H, W = 2, 4, 16, 16          # Block(dim=4)
    key = jax.random.PRNGKey(0)
    ks = jax.random.split(key, 9)

    x = jax.random.normal(ks[0], (N, C, H, W), jnp.float32)

    # Shapes match Block(dim=4); Linear weights stored pre-transposed (w1 = W1.T etc.).
    # gamma is given a non-trivial value (instead of the 1e-6 init) so the validation
    # exercises the conv/LN/MLP branch rather than just the residual shortcut.
    params = {
        "dw_weight": 0.1 * jax.random.normal(ks[1], (7, 7, C), jnp.float32),
        "dw_bias":   0.1 * jax.random.normal(ks[2], (1, C), jnp.float32),
        "ln_weight": 1.0 + 0.1 * jax.random.normal(ks[3], (1, C), jnp.float32),
        "ln_bias":   0.1 * jax.random.normal(ks[4], (1, C), jnp.float32),
        "w1":        0.1 * jax.random.normal(ks[5], (C, 4 * C), jnp.float32),
        "b1":        0.1 * jax.random.normal(ks[6], (1, 4 * C), jnp.float32),
        "w2":        0.1 * jax.random.normal(ks[7], (4 * C, C), jnp.float32),
        "b2":        0.1 * jax.random.normal(ks[8], (1, C), jnp.float32),
        "gamma":     jnp.full((1, C), 0.5, jnp.float32),
    }

    ref = convnext_block_reference(x, params)

    # row_tile=8 exercises the multi-strip + slim 8-row halo path; None exercises auto sizing.
    for rt in (8, None):
        out = jax.block_until_ready(convnext_block(x, params, row_tile=rt))
        assert out.shape == x.shape
        err = float(jnp.max(jnp.abs(out - ref)))
        # bf16 MXU operands (f32 accumulation) vs the all-f32 reference -> loose-but-meaningful tol.
        assert err < 5e-3, f"row_tile={rt}: max abs err {err}"

    print("KERNEL_OK")
</pallas_src>

<mosaic_0001>
module attributes {stable_mosaic.version = 11 : i64} {
  func.func @_convnext_block_kernel(%arg0: i32, %arg1: i32, %arg2: memref<1x8x22x4xf32, #tpu.memory_space<vmem>>, %arg3: memref<1x8x22x4xf32, #tpu.memory_space<vmem>>, %arg4: memref<7x7x4xf32, #tpu.memory_space<vmem>>, %arg5: memref<1x4xf32, #tpu.memory_space<vmem>>, %arg6: memref<1x4xf32, #tpu.memory_space<vmem>>, %arg7: memref<1x4xf32, #tpu.memory_space<vmem>>, %arg8: memref<4x16xbf16, #tpu.memory_space<vmem>>, %arg9: memref<1x16xf32, #tpu.memory_space<vmem>>, %arg10: memref<16x4xbf16, #tpu.memory_space<vmem>>, %arg11: memref<1x4xf32, #tpu.memory_space<vmem>>, %arg12: memref<1x4xf32, #tpu.memory_space<vmem>>, %arg13: memref<1x8x16x4xf32, #tpu.memory_space<vmem>>, %arg14: memref<14x22x4xf32, #tpu.memory_space<vmem>>) attributes {dimension_semantics = [#tpu.dimension_semantics<parallel>, #tpu.dimension_semantics<parallel>], iteration_bounds = array<i64: 2, 2>, scalar_prefetch = 0 : i64, scratch_operands = 1 : i64, tpu.core_type = #tpu.core_type<tc>, window_params = [{transform_indices = @transform_0, window_bounds = array<i64: 1, 8, 22, 4>}, {transform_indices = @transform_1, window_bounds = array<i64: 1, 8, 22, 4>}, {pipeline_mode = #tpu.pipeline_mode<synchronous>, transform_indices = @transform_2, window_bounds = array<i64: 7, 7, 4>}, {pipeline_mode = #tpu.pipeline_mode<synchronous>, transform_indices = @transform_3, window_bounds = array<i64: 1, 4>}, {pipeline_mode = #tpu.pipeline_mode<synchronous>, transform_indices = @transform_4, window_bounds = array<i64: 1, 4>}, {pipeline_mode = #tpu.pipeline_mode<synchronous>, transform_indices = @transform_5, window_bounds = array<i64: 1, 4>}, {pipeline_mode = #tpu.pipeline_mode<synchronous>, transform_indices = @transform_6, window_bounds = array<i64: 4, 16>}, {pipeline_mode = #tpu.pipeline_mode<synchronous>, transform_indices = @transform_7, window_bounds = array<i64: 1, 16>}, {pipeline_mode = #tpu.pipeline_mode<synchronous>, transform_indices = @transform_8, window_bounds = array<i64: 16, 4>}, {pipeline_mode = #tpu.pipeline_mode<synchronous>, transform_indices = @transform_9, window_bounds = array<i64: 1, 4>}, {pipeline_mode = #tpu.pipeline_mode<synchronous>, transform_indices = @transform_10, window_bounds = array<i64: 1, 4>}, {transform_indices = @transform_11, window_bounds = array<i64: 1, 8, 16, 4>}]} {
    %c0 = arith.constant 0 : index
    %c0_0 = arith.constant 0 : index
    %c0_1 = arith.constant 0 : index
    %c0_2 = arith.constant 0 : index
    %0 = vector.load %arg2[%c0, %c0_0, %c0_1, %c0_2] : memref<1x8x22x4xf32, #tpu.memory_space<vmem>>, vector<1x8x22x4xf32>
    %1 = vector.shape_cast %0 : vector<1x8x22x4xf32> to vector<8x22x4xf32>
    %c0_3 = arith.constant 0 : index
    %c0_4 = arith.constant 0 : index
    %c0_5 = arith.constant 0 : index
    %2 = vector.load %arg14[%c0_3, %c0_4, %c0_5] : memref<14x22x4xf32, #tpu.memory_space<vmem>>, vector<8x22x4xf32>
    tpu.vector_store %arg14[%c0_3, %c0_4, %c0_5], %1 {strides = array<i32>} : memref<14x22x4xf32, #tpu.memory_space<vmem>>, vector<8x22x4xf32>,
    %c0_6 = arith.constant 0 : index
    %c0_7 = arith.constant 0 : index
    %c0_8 = arith.constant 0 : index
    %c0_9 = arith.constant 0 : index
    %3 = vector.load %arg3[%c0_6, %c0_7, %c0_8, %c0_9] : memref<1x8x22x4xf32, #tpu.memory_space<vmem>>, vector<1x6x22x4xf32>
    %4 = vector.shape_cast %3 : vector<1x6x22x4xf32> to vector<6x22x4xf32>
    %c8 = arith.constant 8 : index
    %c0_10 = arith.constant 0 : index
    %c0_11 = arith.constant 0 : index
    %5 = vector.load %arg14[%c8, %c0_10, %c0_11] : memref<14x22x4xf32, #tpu.memory_space<vmem>>, vector<6x22x4xf32>
    tpu.vector_store %arg14[%c8, %c0_10, %c0_11], %4 {strides = array<i32>} : memref<14x22x4xf32, #tpu.memory_space<vmem>>, vector<6x22x4xf32>,
    %c0_12 = arith.constant 0 : index
    %c0_13 = arith.constant 0 : index
    %c0_14 = arith.constant 0 : index
    %6 = vector.load %arg4[%c0_12, %c0_13, %c0_14] : memref<7x7x4xf32, #tpu.memory_space<vmem>>, vector<7x7x4xf32>
    %cst = arith.constant 0.000000e+00 : f32
    %7 = vector.broadcast %cst : f32 to vector<8x16x4xf32>
    %c0_15 = arith.constant 0 : index
    %c0_16 = arith.constant 0 : index
    %c0_17 = arith.constant 0 : index
    %8 = vector.load %arg14[%c0_15, %c0_16, %c0_17] : memref<14x22x4xf32, #tpu.memory_space<vmem>>, vector<14x16x4xf32>
    %9 = vector.extract_strided_slice %8 {offsets = [0, 0, 0], sizes = [8, 16, 4], strides = [1, 1, 1]} : vector<14x16x4xf32> to vector<8x16x4xf32>
    %10 = vector.extract_strided_slice %6 {offsets = [0, 0, 0], sizes = [1, 1, 4], strides = [1, 1, 1]} : vector<7x7x4xf32> to vector<1x1x4xf32>
    %11 = vector.shape_cast %10 : vector<1x1x4xf32> to vector<4xf32>
    %12 = vector.shape_cast %11 : vector<4xf32> to vector<1x1x4xf32>
    %13 = vector.broadcast %12 : vector<1x1x4xf32> to vector<8x16x4xf32>
    %14 = arith.mulf %9, %13 : vector<8x16x4xf32>
    %15 = arith.addf %7, %14 : vector<8x16x4xf32>
    %16 = vector.extract_strided_slice %8 {offsets = [1, 0, 0], sizes = [8, 16, 4], strides = [1, 1, 1]} : vector<14x16x4xf32> to vector<8x16x4xf32>
    %17 = vector.extract_strided_slice %6 {offsets = [1, 0, 0], sizes = [1, 1, 4], strides = [1, 1, 1]} : vector<7x7x4xf32> to vector<1x1x4xf32>
    %18 = vector.shape_cast %17 : vector<1x1x4xf32> to vector<4xf32>
    %19 = vector.shape_cast %18 : vector<4xf32> to vector<1x1x4xf32>
    %20 = vector.broadcast %19 : vector<1x1x4xf32> to vector<8x16x4xf32>
    %21 = arith.mulf %16, %20 : vector<8x16x4xf32>
    %22 = arith.addf %15, %21 : vector<8x16x4xf32>
    %23 = vector.extract_strided_slice %8 {offsets = [2, 0, 0], sizes = [8, 16, 4], strides = [1, 1, 1]} : vector<14x16x4xf32> to vector<8x16x4xf32>
    %24 = vector.extract_strided_slice %6 {offsets = [2, 0, 0], sizes = [1, 1, 4], strides = [1, 1, 1]} : vector<7x7x4xf32> to vector<1x1x4xf32>
    %25 = vector.shape_cast %24 : vector<1x1x4xf32> to vector<4xf32>
    %26 = vector.shape_cast %25 : vector<4xf32> to vector<1x1x4xf32>
    %27 = vector.broadcast %26 : vector<1x1x4xf32> to vector<8x16x4xf32>
    %28 = arith.mulf %23, %27 : vector<8x16x4xf32>
    %29 = arith.addf %22, %28 : vector<8x16x4xf32>
    %30 = vector.extract_strided_slice %8 {offsets = [3, 0, 0], sizes = [8, 16, 4], strides = [1, 1, 1]} : vector<14x16x4xf32> to vector<8x16x4xf32>
    %31 = vector.extract_strided_slice %6 {offsets = [3, 0, 0], sizes = [1, 1, 4], strides = [1, 1, 1]} : vector<7x7x4xf32> to vector<1x1x4xf32>
    %32 = vector.shape_cast %31 : vector<1x1x4xf32> to vector<4xf32>
    %33 = vector.shape_cast %32 : vector<4xf32> to vector<1x1x4xf32>
    %34 = vector.broadcast %33 : vector<1x1x4xf32> to vector<8x16x4xf32>
    %35 = arith.mulf %30, %34 : vector<8x16x4xf32>
    %36 = arith.addf %29, %35 : vector<8x16x4xf32>
    %37 = vector.extract_strided_slice %8 {offsets = [4, 0, 0], sizes = [8, 16, 4], strides = [1, 1, 1]} : vector<14x16x4xf32> to vector<8x16x4xf32>
    %38 = vector.extract_strided_slice %6 {offsets = [4, 0, 0], sizes = [1, 1, 4], strides = [1, 1, 1]} : vector<7x7x4xf32> to vector<1x1x4xf32>
    %39 = vector.shape_cast %38 : vector<1x1x4xf32> to vector<4xf32>
    %40 = vector.shape_cast %39 : vector<4xf32> to vector<1x1x4xf32>
    %41 = vector.broadcast %40 : vector<1x1x4xf32> to vector<8x16x4xf32>
    %42 = arith.mulf %37, %41 : vector<8x16x4xf32>
    %43 = arith.addf %36, %42 : vector<8x16x4xf32>
    %44 = vector.extract_strided_slice %8 {offsets = [5, 0, 0], sizes = [8, 16, 4], strides = [1, 1, 1]} : vector<14x16x4xf32> to vector<8x16x4xf32>
    %45 = vector.extract_strided_slice %6 {offsets = [5, 0, 0], sizes = [1, 1, 4], strides = [1, 1, 1]} : vector<7x7x4xf32> to vector<1x1x4xf32>
    %46 = vector.shape_cast %45 : vector<1x1x4xf32> to vector<4xf32>
    %47 = vector.shape_cast %46 : vector<4xf32> to vector<1x1x4xf32>
    %48 = vector.broadcast %47 : vector<1x1x4xf32> to vector<8x16x4xf32>
    %49 = arith.mulf %44, %48 : vector<8x16x4xf32>
    %50 = arith.addf %43, %49 : vector<8x16x4xf32>
    %51 = vector.extract_strided_slice %8 {offsets = [6, 0, 0], sizes = [8, 16, 4], strides = [1, 1, 1]} : vector<14x16x4xf32> to vector<8x16x4xf32>
    %52 = vector.extract_strided_slice %6 {offsets = [6, 0, 0], sizes = [1, 1, 4], strides = [1, 1, 1]} : vector<7x7x4xf32> to vector<1x1x4xf32>
    %53 = vector.shape_cast %52 : vector<1x1x4xf32> to vector<4xf32>
    %54 = vector.shape_cast %53 : vector<4xf32> to vector<1x1x4xf32>
    %55 = vector.broadcast %54 : vector<1x1x4xf32> to vector<8x16x4xf32>
    %56 = arith.mulf %51, %55 : vector<8x16x4xf32>
    %57 = arith.addf %50, %56 : vector<8x16x4xf32>
    %c0_18 = arith.constant 0 : index
    %c1 = arith.constant 1 : index
    %c0_19 = arith.constant 0 : index
    %58 = vector.load %arg14[%c0_18, %c1, %c0_19] : memref<14x22x4xf32, #tpu.memory_space<vmem>>, vector<14x16x4xf32>
    %59 = vector.extract_strided_slice %58 {offsets = [0, 0, 0], sizes = [8, 16, 4], strides = [1, 1, 1]} : vector<14x16x4xf32> to vector<8x16x4xf32>
    %60 = vector.extract_strided_slice %6 {offsets = [0, 1, 0], sizes = [1, 1, 4], strides = [1, 1, 1]} : vector<7x7x4xf32> to vector<1x1x4xf32>
    %61 = vector.shape_cast %60 : vector<1x1x4xf32> to vector<4xf32>
    %62 = vector.shape_cast %61 : vector<4xf32> to vector<1x1x4xf32>
    %63 = vector.broadcast %62 : vector<1x1x4xf32> to vector<8x16x4xf32>
    %64 = arith.mulf %59, %63 : vector<8x16x4xf32>
    %65 = arith.addf %57, %64 : vector<8x16x4xf32>
    %66 = vector.extract_strided_slice %58 {offsets = [1, 0, 0], sizes = [8, 16, 4], strides = [1, 1, 1]} : vector<14x16x4xf32> to vector<8x16x4xf32>
    %67 = vector.extract_strided_slice %6 {offsets = [1, 1, 0], sizes = [1, 1, 4], strides = [1, 1, 1]} : vector<7x7x4xf32> to vector<1x1x4xf32>
    %68 = vector.shape_cast %67 : vector<1x1x4xf32> to vector<4xf32>
    %69 = vector.shape_cast %68 : vector<4xf32> to vector<1x1x4xf32>
    %70 = vector.broadcast %69 : vector<1x1x4xf32> to vector<8x16x4xf32>
    %71 = arith.mulf %66, %70 : vector<8x16x4xf32>
    %72 = arith.addf %65, %71 : vector<8x16x4xf32>
    %73 = vector.extract_strided_slice %58 {offsets = [2, 0, 0], sizes = [8, 16, 4], strides = [1, 1, 1]} : vector<14x16x4xf32> to vector<8x16x4xf32>
    %74 = vector.extract_strided_slice %6 {offsets = [2, 1, 0], sizes = [1, 1, 4], strides = [1, 1, 1]} : vector<7x7x4xf32> to vector<1x1x4xf32>
    %75 = vector.shape_cast %74 : vector<1x1x4xf32> to vector<4xf32>
    %76 = vector.shape_cast %75 : vector<4xf32> to vector<1x1x4xf32>
    %77 = vector.broadcast %76 : vector<1x1x4xf32> to vector<8x16x4xf32>
    %78 = arith.mulf %73, %77 : vector<8x16x4xf32>
    %79 = arith.addf %72, %78 : vector<8x16x4xf32>
    %80 = vector.extract_strided_slice %58 {offsets = [3, 0, 0], sizes = [8, 16, 4], strides = [1, 1, 1]} : vector<14x16x4xf32> to vector<8x16x4xf32>
    %81 = vector.extract_strided_slice %6 {offsets = [3, 1, 0], sizes = [1, 1, 4], strides = [1, 1, 1]} : vector<7x7x4xf32> to vector<1x1x4xf32>
    %82 = vector.shape_cast %81 : vector<1x1x4xf32> to vector<4xf32>
    %83 = vector.shape_cast %82 : vector<4xf32> to vector<1x1x4xf32>
    %84 = vector.broadcast %83 : vector<1x1x4xf32> to vector<8x16x4xf32>
    %85 = arith.mulf %80, %84 : vector<8x16x4xf32>
    %86 = arith.addf %79, %85 : vector<8x16x4xf32>
    %87 = vector.extract_strided_slice %58 {offsets = [4, 0, 0], sizes = [8, 16, 4], strides = [1, 1, 1]} : vector<14x16x4xf32> to vector<8x16x4xf32>
    %88 = vector.extract_strided_slice %6 {offsets = [4, 1, 0], sizes = [1, 1, 4], strides = [1, 1, 1]} : vector<7x7x4xf32> to vector<1x1x4xf32>
    %89 = vector.shape_cast %88 : vector<1x1x4xf32> to vector<4xf32>
    %90 = vector.shape_cast %89 : vector<4xf32> to vector<1x1x4xf32>
    %91 = vector.broadcast %90 : vector<1x1x4xf32> to vector<8x16x4xf32>
    %92 = arith.mulf %87, %91 : vector<8x16x4xf32>
    %93 = arith.addf %86, %92 : vector<8x16x4xf32>
    %94 = vector.extract_strided_slice %58 {offsets = [5, 0, 0], sizes = [8, 16, 4], strides = [1, 1, 1]} : vector<14x16x4xf32> to vector<8x16x4xf32>
    %95 = vector.extract_strided_slice %6 {offsets = [5, 1, 0], sizes = [1, 1, 4], strides = [1, 1, 1]} : vector<7x7x4xf32> to vector<1x1x4xf32>
    %96 = vector.shape_cast %95 : vector<1x1x4xf32> to vector<4xf32>
    %97 = vector.shape_cast %96 : vector<4xf32> to vector<1x1x4xf32>
    %98 = vector.broadcast %97 : vector<1x1x4xf32> to vector<8x16x4xf32>
    %99 = arith.mulf %94, %98 : vector<8x16x4xf32>
    %100 = arith.addf %93, %99 : vector<8x16x4xf32>
    %101 = vector.extract_strided_slice %58 {offsets = [6, 0, 0], sizes = [8, 16, 4], strides = [1, 1, 1]} : vector<14x16x4xf32> to vector<8x16x4xf32>
    %102 = vector.extract_strided_slice %6 {offsets = [6, 1, 0], sizes = [1, 1, 4], strides = [1, 1, 1]} : vector<7x7x4xf32> to vector<1x1x4xf32>
    %103 = vector.shape_cast %102 : vector<1x1x4xf32> to vector<4xf32>
    %104 = vector.shape_cast %103 : vector<4xf32> to vector<1x1x4xf32>
    %105 = vector.broadcast %104 : vector<1x1x4xf32> to vector<8x16x4xf32>
    %106 = arith.mulf %101, %105 : vector<8x16x4xf32>
    %107 = arith.addf %100, %106 : vector<8x16x4xf32>
    %c0_20 = arith.constant 0 : index
    %c2 = arith.constant 2 : index
    %c0_21 = arith.constant 0 : index
    %108 = vector.load %arg14[%c0_20, %c2, %c0_21] : memref<14x22x4xf32, #tpu.memory_space<vmem>>, vector<14x16x4xf32>
    %109 = vector.extract_strided_slice %108 {offsets = [0, 0, 0], sizes = [8, 16, 4], strides = [1, 1, 1]} : vector<14x16x4xf32> to vector<8x16x4xf32>
    %110 = vector.extract_strided_slice %6 {offsets = [0, 2, 0], sizes = [1, 1, 4], strides = [1, 1, 1]} : vector<7x7x4xf32> to vector<1x1x4xf32>
    %111 = vector.shape_cast %110 : vector<1x1x4xf32> to vector<4xf32>
    %112 = vector.shape_cast %111 : vector<4xf32> to vector<1x1x4xf32>
    %113 = vector.broadcast %112 : vector<1x1x4xf32> to vector<8x16x4xf32>
    %114 = arith.mulf %109, %113 : vector<8x16x4xf32>
    %115 = arith.addf %107, %114 : vector<8x16x4xf32>
    %116 = vector.extract_strided_slice %108 {offsets = [1, 0, 0], sizes = [8, 16, 4], strides = [1, 1, 1]} : vector<14x16x4xf32> to vector<8x16x4xf32>
    %117 = vector.extract_strided_slice %6 {offsets = [1, 2, 0], sizes = [1, 1, 4], strides = [1, 1, 1]} : vector<7x7x4xf32> to vector<1x1x4xf32>
    %118 = vector.shape_cast %117 : vector<1x1x4xf32> to vector<4xf32>
    %119 = vector.shape_cast %118 : vector<4xf32> to vector<1x1x4xf32>
    %120 = vector.broadcast %119 : vector<1x1x4xf32> to vector<8x16x4xf32>
    %121 = arith.mulf %116, %120 : vector<8x16x4xf32>
    %122 = arith.addf %115, %121 : vector<8x16x4xf32>
    %123 = vector.extract_strided_slice %108 {offsets = [2, 0, 0], sizes = [8, 16, 4], strides = [1, 1, 1]} : vector<14x16x4xf32> to vector<8x16x4xf32>
    %124 = vector.extract_strided_slice %6 {offsets = [2, 2, 0], sizes = [1, 1, 4], strides = [1, 1, 1]} : vector<7x7x4xf32> to vector<1x1x4xf32>
    %125 = vector.shape_cast %124 : vector<1x1x4xf32> to vector<4xf32>
    %126 = vector.shape_cast %125 : vector<4xf32> to vector<1x1x4xf32>
    %127 = vector.broadcast %126 : vector<1x1x4xf32> to vector<8x16x4xf32>
    %128 = arith.mulf %123, %127 : vector<8x16x4xf32>
    %129 = arith.addf %122, %128 : vector<8x16x4xf32>
    %130 = vector.extract_strided_slice %108 {offsets = [3, 0, 0], sizes = [8, 16, 4], strides = [1, 1, 1]} : vector<14x16x4xf32> to vector<8x16x4xf32>
    %131 = vector.extract_strided_slice %6 {offsets = [3, 2, 0], sizes = [1, 1, 4], strides = [1, 1, 1]} : vector<7x7x4xf32> to vector<1x1x4xf32>
    %132 = vector.shape_cast %131 : vector<1x1x4xf32> to vector<4xf32>
    %133 = vector.shape_cast %132 : vector<4xf32> to vector<1x1x4xf32>
    %134 = vector.broadcast %133 : vector<1x1x4xf32> to vector<8x16x4xf32>
    %135 = arith.mulf %130, %134 : vector<8x16x4xf32>
    %136 = arith.addf %129, %135 : vector<8x16x4xf32>
    %137 = vector.extract_strided_slice %108 {offsets = [4, 0, 0], sizes = [8, 16, 4], strides = [1, 1, 1]} : vector<14x16x4xf32> to vector<8x16x4xf32>
    %138 = vector.extract_strided_slice %6 {offsets = [4, 2, 0], sizes = [1, 1, 4], strides = [1, 1, 1]} : vector<7x7x4xf32> to vector<1x1x4xf32>
    %139 = vector.shape_cast %138 : vector<1x1x4xf32> to vector<4xf32>
    %140 = vector.shape_cast %139 : vector<4xf32> to vector<1x1x4xf32>
    %141 = vector.broadcast %140 : vector<1x1x4xf32> to vector<8x16x4xf32>
    %142 = arith.mulf %137, %141 : vector<8x16x4xf32>
    %143 = arith.addf %136, %142 : vector<8x16x4xf32>
    %144 = vector.extract_strided_slice %108 {offsets = [5, 0, 0], sizes = [8, 16, 4], strides = [1, 1, 1]} : vector<14x16x4xf32> to vector<8x16x4xf32>
    %145 = vector.extract_strided_slice %6 {offsets = [5, 2, 0], sizes = [1, 1, 4], strides = [1, 1, 1]} : vector<7x7x4xf32> to vector<1x1x4xf32>
    %146 = vector.shape_cast %145 : vector<1x1x4xf32> to vector<4xf32>
    %147 = vector.shape_cast %146 : vector<4xf32> to vector<1x1x4xf32>
    %148 = vector.broadcast %147 : vector<1x1x4xf32> to vector<8x16x4xf32>
    %149 = arith.mulf %144, %148 : vector<8x16x4xf32>
    %150 = arith.addf %143, %149 : vector<8x16x4xf32>
    %151 = vector.extract_strided_slice %108 {offsets = [6, 0, 0], sizes = [8, 16, 4], strides = [1, 1, 1]} : vector<14x16x4xf32> to vector<8x16x4xf32>
    %152 = vector.extract_strided_slice %6 {offsets = [6, 2, 0], sizes = [1, 1, 4], strides = [1, 1, 1]} : vector<7x7x4xf32> to vector<1x1x4xf32>
    %153 = vector.shape_cast %152 : vector<1x1x4xf32> to vector<4xf32>
    %154 = vector.shape_cast %153 : vector<4xf32> to vector<1x1x4xf32>
    %155 = vector.broadcast %154 : vector<1x1x4xf32> to vector<8x16x4xf32>
    %156 = arith.mulf %151, %155 : vector<8x16x4xf32>
    %157 = arith.addf %150, %156 : vector<8x16x4xf32>
    %c0_22 = arith.constant 0 : index
    %c3 = arith.constant 3 : index
    %c0_23 = arith.constant 0 : index
    %158 = vector.load %arg14[%c0_22, %c3, %c0_23] : memref<14x22x4xf32, #tpu.memory_space<vmem>>, vector<14x16x4xf32>
    %159 = vector.extract_strided_slice %158 {offsets = [0, 0, 0], sizes = [8, 16, 4], strides = [1, 1, 1]} : vector<14x16x4xf32> to vector<8x16x4xf32>
    %160 = vector.extract_strided_slice %6 {offsets = [0, 3, 0], sizes = [1, 1, 4], strides = [1, 1, 1]} : vector<7x7x4xf32> to vector<1x1x4xf32>
    %161 = vector.shape_cast %160 : vector<1x1x4xf32> to vector<4xf32>
    %162 = vector.shape_cast %161 : vector<4xf32> to vector<1x1x4xf32>
    %163 = vector.broadcast %162 : vector<1x1x4xf32> to vector<8x16x4xf32>
    %164 = arith.mulf %159, %163 : vector<8x16x4xf32>
    %165 = arith.addf %157, %164 : vector<8x16x4xf32>
    %166 = vector.extract_strided_slice %158 {offsets = [1, 0, 0], sizes = [8, 16, 4], strides = [1, 1, 1]} : vector<14x16x4xf32> to vector<8x16x4xf32>
    %167 = vector.extract_strided_slice %6 {offsets = [1, 3, 0], sizes = [1, 1, 4], strides = [1, 1, 1]} : vector<7x7x4xf32> to vector<1x1x4xf32>
    %168 = vector.shape_cast %167 : vector<1x1x4xf32> to vector<4xf32>
    %169 = vector.shape_cast %168 : vector<4xf32> to vector<1x1x4xf32>
    %170 = vector.broadcast %169 : vector<1x1x4xf32> to vector<8x16x4xf32>
    %171 = arith.mulf %166, %170 : vector<8x16x4xf32>
    %172 = arith.addf %165, %171 : vector<8x16x4xf32>
    %173 = vector.extract_strided_slice %158 {offsets = [2, 0, 0], sizes = [8, 16, 4], strides = [1, 1, 1]} : vector<14x16x4xf32> to vector<8x16x4xf32>
    %174 = vector.extract_strided_slice %6 {offsets = [2, 3, 0], sizes = [1, 1, 4], strides = [1, 1, 1]} : vector<7x7x4xf32> to vector<1x1x4xf32>
    %175 = vector.shape_cast %174 : vector<1x1x4xf32> to vector<4xf32>
    %176 = vector.shape_cast %175 : vector<4xf32> to vector<1x1x4xf32>
    %177 = vector.broadcast %176 : vector<1x1x4xf32> to vector<8x16x4xf32>
    %178 = arith.mulf %173, %177 : vector<8x16x4xf32>
    %179 = arith.addf %172, %178 : vector<8x16x4xf32>
    %180 = vector.extract_strided_slice %158 {offsets = [3, 0, 0], sizes = [8, 16, 4], strides = [1, 1, 1]} : vector<14x16x4xf32> to vector<8x16x4xf32>
    %181 = vector.extract_strided_slice %6 {offsets = [3, 3, 0], sizes = [1, 1, 4], strides = [1, 1, 1]} : vector<7x7x4xf32> to vector<1x1x4xf32>
    %182 = vector.shape_cast %181 : vector<1x1x4xf32> to vector<4xf32>
    %183 = vector.shape_cast %182 : vector<4xf32> to vector<1x1x4xf32>
    %184 = vector.broadcast %183 : vector<1x1x4xf32> to vector<8x16x4xf32>
    %185 = arith.mulf %180, %184 : vector<8x16x4xf32>
    %186 = arith.addf %179, %185 : vector<8x16x4xf32>
    %187 = vector.extract_strided_slice %158 {offsets = [4, 0, 0], sizes = [8, 16, 4], strides = [1, 1, 1]} : vector<14x16x4xf32> to vector<8x16x4xf32>
    %188 = vector.extract_strided_slice %6 {offsets = [4, 3, 0], sizes = [1, 1, 4], strides = [1, 1, 1]} : vector<7x7x4xf32> to vector<1x1x4xf32>
    %189 = vector.shape_cast %188 : vector<1x1x4xf32> to vector<4xf32>
    %190 = vector.shape_cast %189 : vector<4xf32> to vector<1x1x4xf32>
    %191 = vector.broadcast %190 : vector<1x1x4xf32> to vector<8x16x4xf32>
    %192 = arith.mulf %187, %191 : vector<8x16x4xf32>
    %193 = arith.addf %186, %192 : vector<8x16x4xf32>
    %194 = vector.extract_strided_slice %158 {offsets = [5, 0, 0], sizes = [8, 16, 4], strides = [1, 1, 1]} : vector<14x16x4xf32> to vector<8x16x4xf32>
    %195 = vector.extract_strided_slice %6 {offsets = [5, 3, 0], sizes = [1, 1, 4], strides = [1, 1, 1]} : vector<7x7x4xf32> to vector<1x1x4xf32>
    %196 = vector.shape_cast %195 : vector<1x1x4xf32> to vector<4xf32>
    %197 = vector.shape_cast %196 : vector<4xf32> to vector<1x1x4xf32>
    %198 = vector.broadcast %197 : vector<1x1x4xf32> to vector<8x16x4xf32>
    %199 = arith.mulf %194, %198 : vector<8x16x4xf32>
    %200 = arith.addf %193, %199 : vector<8x16x4xf32>
    %201 = vector.extract_strided_slice %158 {offsets = [6, 0, 0], sizes = [8, 16, 4], strides = [1, 1, 1]} : vector<14x16x4xf32> to vector<8x16x4xf32>
    %202 = vector.extract_strided_slice %6 {offsets = [6, 3, 0], sizes = [1, 1, 4], strides = [1, 1, 1]} : vector<7x7x4xf32> to vector<1x1x4xf32>
    %203 = vector.shape_cast %202 : vector<1x1x4xf32> to vector<4xf32>
    %204 = vector.shape_cast %203 : vector<4xf32> to vector<1x1x4xf32>
    %205 = vector.broadcast %204 : vector<1x1x4xf32> to vector<8x16x4xf32>
    %206 = arith.mulf %201, %205 : vector<8x16x4xf32>
    %207 = arith.addf %200, %206 : vector<8x16x4xf32>
    %c0_24 = arith.constant 0 : index
    %c4 = arith.constant 4 : index
    %c0_25 = arith.constant 0 : index
    %208 = vector.load %arg14[%c0_24, %c4, %c0_25] : memref<14x22x4xf32, #tpu.memory_space<vmem>>, vector<14x16x4xf32>
    %209 = vector.extract_strided_slice %208 {offsets = [0, 0, 0], sizes = [8, 16, 4], strides = [1, 1, 1]} : vector<14x16x4xf32> to vector<8x16x4xf32>
    %210 = vector.extract_strided_slice %6 {offsets = [0, 4, 0], sizes = [1, 1, 4], strides = [1, 1, 1]} : vector<7x7x4xf32> to vector<1x1x4xf32>
    %211 = vector.shape_cast %210 : vector<1x1x4xf32> to vector<4xf32>
    %212 = vector.shape_cast %211 : vector<4xf32> to vector<1x1x4xf32>
    %213 = vector.broadcast %212 : vector<1x1x4xf32> to vector<8x16x4xf32>
    %214 = arith.mulf %209, %213 : vector<8x16x4xf32>
    %215 = arith.addf %207, %214 : vector<8x16x4xf32>
    %216 = vector.extract_strided_slice %208 {offsets = [1, 0, 0], sizes = [8, 16, 4], strides = [1, 1, 1]} : vector<14x16x4xf32> to vector<8x16x4xf32>
    %217 = vector.extract_strided_slice %6 {offsets = [1, 4, 0], sizes = [1, 1, 4], strides = [1, 1, 1]} : vector<7x7x4xf32> to vector<1x1x4xf32>
    %218 = vector.shape_cast %217 : vector<1x1x4xf32> to vector<4xf32>
    %219 = vector.shape_cast %218 : vector<4xf32> to vector<1x1x4xf32>
    %220 = vector.broadcast %219 : vector<1x1x4xf32> to vector<8x16x4xf32>
    %221 = arith.mulf %216, %220 : vector<8x16x4xf32>
    %222 = arith.addf %215, %221 : vector<8x16x4xf32>
    %223 = vector.extract_strided_slice %208 {offsets = [2, 0, 0], sizes = [8, 16, 4], strides = [1, 1, 1]} : vector<14x16x4xf32> to vector<8x16x4xf32>
    %224 = vector.extract_strided_slice %6 {offsets = [2, 4, 0], sizes = [1, 1, 4], strides = [1, 1, 1]} : vector<7x7x4xf32> to vector<1x1x4xf32>
    %225 = vector.shape_cast %224 : vector<1x1x4xf32> to vector<4xf32>
    %226 = vector.shape_cast %225 : vector<4xf32> to vector<1x1x4xf32>
    %227 = vector.broadcast %226 : vector<1x1x4xf32> to vector<8x16x4xf32>
    %228 = arith.mulf %223, %227 : vector<8x16x4xf32>
    %229 = arith.addf %222, %228 : vector<8x16x4xf32>
    %230 = vector.extract_strided_slice %208 {offsets = [3, 0, 0], sizes = [8, 16, 4], strides = [1, 1, 1]} : vector<14x16x4xf32> to vector<8x16x4xf32>
    %231 = vector.extract_strided_slice %6 {offsets = [3, 4, 0], sizes = [1, 1, 4], strides = [1, 1, 1]} : vector<7x7x4xf32> to vector<1x1x4xf32>
    %232 = vector.shape_cast %231 : vector<1x1x4xf32> to vector<4xf32>
    %233 = vector.shape_cast %232 : vector<4xf32> to vector<1x1x4xf32>
    %234 = vector.broadcast %233 : vector<1x1x4xf32> to vector<8x16x4xf32>
    %235 = arith.mulf %230, %234 : vector<8x16x4xf32>
    %236 = arith.addf %229, %235 : vector<8x16x4xf32>
    %237 = vector.extract_strided_slice %208 {offsets = [4, 0, 0], sizes = [8, 16, 4], strides = [1, 1, 1]} : vector<14x16x4xf32> to vector<8x16x4xf32>
    %238 = vector.extract_strided_slice %6 {offsets = [4, 4, 0], sizes = [1, 1, 4], strides = [1, 1, 1]} : vector<7x7x4xf32> to vector<1x1x4xf32>
    %239 = vector.shape_cast %238 : vector<1x1x4xf32> to vector<4xf32>
    %240 = vector.shape_cast %239 : vector<4xf32> to vector<1x1x4xf32>
    %241 = vector.broadcast %240 : vector<1x1x4xf32> to vector<8x16x4xf32>
    %242 = arith.mulf %237, %241 : vector<8x16x4xf32>
    %243 = arith.addf %236, %242 : vector<8x16x4xf32>
    %244 = vector.extract_strided_slice %208 {offsets = [5, 0, 0], sizes = [8, 16, 4], strides = [1, 1, 1]} : vector<14x16x4xf32> to vector<8x16x4xf32>
    %245 = vector.extract_strided_slice %6 {offsets = [5, 4, 0], sizes = [1, 1, 4], strides = [1, 1, 1]} : vector<7x7x4xf32> to vector<1x1x4xf32>
    %246 = vector.shape_cast %245 : vector<1x1x4xf32> to vector<4xf32>
    %247 = vector.shape_cast %246 : vector<4xf32> to vector<1x1x4xf32>
    %248 = vector.broadcast %247 : vector<1x1x4xf32> to vector<8x16x4xf32>
    %249 = arith.mulf %244, %248 : vector<8x16x4xf32>
    %250 = arith.addf %243, %249 : vector<8x16x4xf32>
    %251 = vector.extract_strided_slice %208 {offsets = [6, 0, 0], sizes = [8, 16, 4], strides = [1, 1, 1]} : vector<14x16x4xf32> to vector<8x16x4xf32>
    %252 = vector.extract_strided_slice %6 {offsets = [6, 4, 0], sizes = [1, 1, 4], strides = [1, 1, 1]} : vector<7x7x4xf32> to vector<1x1x4xf32>
    %253 = vector.shape_cast %252 : vector<1x1x4xf32> to vector<4xf32>
    %254 = vector.shape_cast %253 : vector<4xf32> to vector<1x1x4xf32>
    %255 = vector.broadcast %254 : vector<1x1x4xf32> to vector<8x16x4xf32>
    %256 = arith.mulf %251, %255 : vector<8x16x4xf32>
    %257 = arith.addf %250, %256 : vector<8x16x4xf32>
    %c0_26 = arith.constant 0 : index
    %c5 = arith.constant 5 : index
    %c0_27 = arith.constant 0 : index
    %258 = vector.load %arg14[%c0_26, %c5, %c0_27] : memref<14x22x4xf32, #tpu.memory_space<vmem>>, vector<14x16x4xf32>
    %259 = vector.extract_strided_slice %258 {offsets = [0, 0, 0], sizes = [8, 16, 4], strides = [1, 1, 1]} : vector<14x16x4xf32> to vector<8x16x4xf32>
    %260 = vector.extract_strided_slice %6 {offsets = [0, 5, 0], sizes = [1, 1, 4], strides = [1, 1, 1]} : vector<7x7x4xf32> to vector<1x1x4xf32>
    %261 = vector.shape_cast %260 : vector<1x1x4xf32> to vector<4xf32>
    %262 = vector.shape_cast %261 : vector<4xf32> to vector<1x1x4xf32>
    %263 = vector.broadcast %262 : vector<1x1x4xf32> to vector<8x16x4xf32>
    %264 = arith.mulf %259, %263 : vector<8x16x4xf32>
    %265 = arith.addf %257, %264 : vector<8x16x4xf32>
    %266 = vector.extract_strided_slice %258 {offsets = [1, 0, 0], sizes = [8, 16, 4], strides = [1, 1, 1]} : vector<14x16x4xf32> to vector<8x16x4xf32>
    %267 = vector.extract_strided_slice %6 {offsets = [1, 5, 0], sizes = [1, 1, 4], strides = [1, 1, 1]} : vector<7x7x4xf32> to vector<1x1x4xf32>
    %268 = vector.shape_cast %267 : vector<1x1x4xf32> to vector<4xf32>
    %269 = vector.shape_cast %268 : vector<4xf32> to vector<1x1x4xf32>
    %270 = vector.broadcast %269 : vector<1x1x4xf32> to vector<8x16x4xf32>
    %271 = arith.mulf %266, %270 : vector<8x16x4xf32>
    %272 = arith.addf %265, %271 : vector<8x16x4xf32>
    %273 = vector.extract_strided_slice %258 {offsets = [2, 0, 0], sizes = [8, 16, 4], strides = [1, 1, 1]} : vector<14x16x4xf32> to vector<8x16x4xf32>
    %274 = vector.extract_strided_slice %6 {offsets = [2, 5, 0], sizes = [1, 1, 4], strides = [1, 1, 1]} : vector<7x7x4xf32> to vector<1x1x4xf32>
    %275 = vector.shape_cast %274 : vector<1x1x4xf32> to vector<4xf32>
    %276 = vector.shape_cast %275 : vector<4xf32> to vector<1x1x4xf32>
    %277 = vector.broadcast %276 : vector<1x1x4xf32> to vector<8x16x4xf32>
    %278 = arith.mulf %273, %277 : vector<8x16x4xf32>
    %279 = arith.addf %272, %278 : vector<8x16x4xf32>
    %280 = vector.extract_strided_slice %258 {offsets = [3, 0, 0], sizes = [8, 16, 4], strides = [1, 1, 1]} : vector<14x16x4xf32> to vector<8x16x4xf32>
    %281 = vector.extract_strided_slice %6 {offsets = [3, 5, 0], sizes = [1, 1, 4], strides = [1, 1, 1]} : vector<7x7x4xf32> to vector<1x1x4xf32>
    %282 = vector.shape_cast %281 : vector<1x1x4xf32> to vector<4xf32>
    %283 = vector.shape_cast %282 : vector<4xf32> to vector<1x1x4xf32>
    %284 = vector.broadcast %283 : vector<1x1x4xf32> to vector<8x16x4xf32>
    %285 = arith.mulf %280, %284 : vector<8x16x4xf32>
    %286 = arith.addf %279, %285 : vector<8x16x4xf32>
    %287 = vector.extract_strided_slice %258 {offsets = [4, 0, 0], sizes = [8, 16, 4], strides = [1, 1, 1]} : vector<14x16x4xf32> to vector<8x16x4xf32>
    %288 = vector.extract_strided_slice %6 {offsets = [4, 5, 0], sizes = [1, 1, 4], strides = [1, 1, 1]} : vector<7x7x4xf32> to vector<1x1x4xf32>
    %289 = vector.shape_cast %288 : vector<1x1x4xf32> to vector<4xf32>
    %290 = vector.shape_cast %289 : vector<4xf32> to vector<1x1x4xf32>
    %291 = vector.broadcast %290 : vector<1x1x4xf32> to vector<8x16x4xf32>
    %292 = arith.mulf %287, %291 : vector<8x16x4xf32>
    %293 = arith.addf %286, %292 : vector<8x16x4xf32>
    %294 = vector.extract_strided_slice %258 {offsets = [5, 0, 0], sizes = [8, 16, 4], strides = [1, 1, 1]} : vector<14x16x4xf32> to vector<8x16x4xf32>
    %295 = vector.extract_strided_slice %6 {offsets = [5, 5, 0], sizes = [1, 1, 4], strides = [1, 1, 1]} : vector<7x7x4xf32> to vector<1x1x4xf32>
    %296 = vector.shape_cast %295 : vector<1x1x4xf32> to vector<4xf32>
    %297 = vector.shape_cast %296 : vector<4xf32> to vector<1x1x4xf32>
    %298 = vector.broadcast %297 : vector<1x1x4xf32> to vector<8x16x4xf32>
    %299 = arith.mulf %294, %298 : vector<8x16x4xf32>
    %300 = arith.addf %293, %299 : vector<8x16x4xf32>
    %301 = vector.extract_strided_slice %258 {offsets = [6, 0, 0], sizes = [8, 16, 4], strides = [1, 1, 1]} : vector<14x16x4xf32> to vector<8x16x4xf32>
    %302 = vector.extract_strided_slice %6 {offsets = [6, 5, 0], sizes = [1, 1, 4], strides = [1, 1, 1]} : vector<7x7x4xf32> to vector<1x1x4xf32>
    %303 = vector.shape_cast %302 : vector<1x1x4xf32> to vector<4xf32>
    %304 = vector.shape_cast %303 : vector<4xf32> to vector<1x1x4xf32>
    %305 = vector.broadcast %304 : vector<1x1x4xf32> to vector<8x16x4xf32>
    %306 = arith.mulf %301, %305 : vector<8x16x4xf32>
    %307 = arith.addf %300, %306 : vector<8x16x4xf32>
    %c0_28 = arith.constant 0 : index
    %c6 = arith.constant 6 : index
    %c0_29 = arith.constant 0 : index
    %308 = vector.load %arg14[%c0_28, %c6, %c0_29] : memref<14x22x4xf32, #tpu.memory_space<vmem>>, vector<14x16x4xf32>
    %309 = vector.extract_strided_slice %308 {offsets = [0, 0, 0], sizes = [8, 16, 4], strides = [1, 1, 1]} : vector<14x16x4xf32> to vector<8x16x4xf32>
    %310 = vector.extract_strided_slice %6 {offsets = [0, 6, 0], sizes = [1, 1, 4], strides = [1, 1, 1]} : vector<7x7x4xf32> to vector<1x1x4xf32>
    %311 = vector.shape_cast %310 : vector<1x1x4xf32> to vector<4xf32>
    %312 = vector.shape_cast %311 : vector<4xf32> to vector<1x1x4xf32>
    %313 = vector.broadcast %312 : vector<1x1x4xf32> to vector<8x16x4xf32>
    %314 = arith.mulf %309, %313 : vector<8x16x4xf32>
    %315 = arith.addf %307, %314 : vector<8x16x4xf32>
    %316 = vector.extract_strided_slice %308 {offsets = [1, 0, 0], sizes = [8, 16, 4], strides = [1, 1, 1]} : vector<14x16x4xf32> to vector<8x16x4xf32>
    %317 = vector.extract_strided_slice %6 {offsets = [1, 6, 0], sizes = [1, 1, 4], strides = [1, 1, 1]} : vector<7x7x4xf32> to vector<1x1x4xf32>
    %318 = vector.shape_cast %317 : vector<1x1x4xf32> to vector<4xf32>
    %319 = vector.shape_cast %318 : vector<4xf32> to vector<1x1x4xf32>
    %320 = vector.broadcast %319 : vector<1x1x4xf32> to vector<8x16x4xf32>
    %321 = arith.mulf %316, %320 : vector<8x16x4xf32>
    %322 = arith.addf %315, %321 : vector<8x16x4xf32>
    %323 = vector.extract_strided_slice %308 {offsets = [2, 0, 0], sizes = [8, 16, 4], strides = [1, 1, 1]} : vector<14x16x4xf32> to vector<8x16x4xf32>
    %324 = vector.extract_strided_slice %6 {offsets = [2, 6, 0], sizes = [1, 1, 4], strides = [1, 1, 1]} : vector<7x7x4xf32> to vector<1x1x4xf32>
    %325 = vector.shape_cast %324 : vector<1x1x4xf32> to vector<4xf32>
    %326 = vector.shape_cast %325 : vector<4xf32> to vector<1x1x4xf32>
    %327 = vector.broadcast %326 : vector<1x1x4xf32> to vector<8x16x4xf32>
    %328 = arith.mulf %323, %327 : vector<8x16x4xf32>
    %329 = arith.addf %322, %328 : vector<8x16x4xf32>
    %330 = vector.extract_strided_slice %308 {offsets = [3, 0, 0], sizes = [8, 16, 4], strides = [1, 1, 1]} : vector<14x16x4xf32> to vector<8x16x4xf32>
    %331 = vector.extract_strided_slice %6 {offsets = [3, 6, 0], sizes = [1, 1, 4], strides = [1, 1, 1]} : vector<7x7x4xf32> to vector<1x1x4xf32>
    %332 = vector.shape_cast %331 : vector<1x1x4xf32> to vector<4xf32>
    %333 = vector.shape_cast %332 : vector<4xf32> to vector<1x1x4xf32>
    %334 = vector.broadcast %333 : vector<1x1x4xf32> to vector<8x16x4xf32>
    %335 = arith.mulf %330, %334 : vector<8x16x4xf32>
    %336 = arith.addf %329, %335 : vector<8x16x4xf32>
    %337 = vector.extract_strided_slice %308 {offsets = [4, 0, 0], sizes = [8, 16, 4], strides = [1, 1, 1]} : vector<14x16x4xf32> to vector<8x16x4xf32>
    %338 = vector.extract_strided_slice %6 {offsets = [4, 6, 0], sizes = [1, 1, 4], strides = [1, 1, 1]} : vector<7x7x4xf32> to vector<1x1x4xf32>
    %339 = vector.shape_cast %338 : vector<1x1x4xf32> to vector<4xf32>
    %340 = vector.shape_cast %339 : vector<4xf32> to vector<1x1x4xf32>
    %341 = vector.broadcast %340 : vector<1x1x4xf32> to vector<8x16x4xf32>
    %342 = arith.mulf %337, %341 : vector<8x16x4xf32>
    %343 = arith.addf %336, %342 : vector<8x16x4xf32>
    %344 = vector.extract_strided_slice %308 {offsets = [5, 0, 0], sizes = [8, 16, 4], strides = [1, 1, 1]} : vector<14x16x4xf32> to vector<8x16x4xf32>
    %345 = vector.extract_strided_slice %6 {offsets = [5, 6, 0], sizes = [1, 1, 4], strides = [1, 1, 1]} : vector<7x7x4xf32> to vector<1x1x4xf32>
    %346 = vector.shape_cast %345 : vector<1x1x4xf32> to vector<4xf32>
    %347 = vector.shape_cast %346 : vector<4xf32> to vector<1x1x4xf32>
    %348 = vector.broadcast %347 : vector<1x1x4xf32> to vector<8x16x4xf32>
    %349 = arith.mulf %344, %348 : vector<8x16x4xf32>
    %350 = arith.addf %343, %349 : vector<8x16x4xf32>
    %351 = vector.extract_strided_slice %308 {offsets = [6, 0, 0], sizes = [8, 16, 4], strides = [1, 1, 1]} : vector<14x16x4xf32> to vector<8x16x4xf32>
    %352 = vector.extract_strided_slice %6 {offsets = [6, 6, 0], sizes = [1, 1, 4], strides = [1, 1, 1]} : vector<7x7x4xf32> to vector<1x1x4xf32>
    %353 = vector.shape_cast %352 : vector<1x1x4xf32> to vector<4xf32>
    %354 = vector.shape_cast %353 : vector<4xf32> to vector<1x1x4xf32>
    %355 = vector.broadcast %354 : vector<1x1x4xf32> to vector<8x16x4xf32>
    %356 = arith.mulf %351, %355 : vector<8x16x4xf32>
    %357 = arith.addf %350, %356 : vector<8x16x4xf32>
    %c0_30 = arith.constant 0 : index
    %c0_31 = arith.constant 0 : index
    %358 = vector.load %arg5[%c0_30, %c0_31] : memref<1x4xf32, #tpu.memory_space<vmem>>, vector<1x4xf32>
    %359 = vector.shape_cast %358 : vector<1x4xf32> to vector<4xf32>
    %360 = vector.shape_cast %359 : vector<4xf32> to vector<1x1x4xf32>
    %361 = vector.broadcast %360 : vector<1x1x4xf32> to vector<8x16x4xf32>
    %362 = arith.addf %357, %361 : vector<8x16x4xf32>
    %363 = vector.shape_cast %362 : vector<8x16x4xf32> to vector<128x4xf32>
    %cst_32 = arith.constant dense<0.000000e+00> : vector<128xf32>
    %364 = vector.multi_reduction <add>, %363, %cst_32 [1] : vector<128x4xf32> to vector<128xf32>
    %365 = vector.shape_cast %364 : vector<128xf32> to vector<128x1xf32>
    %cst_33 = arith.constant 4.000000e+00 : f32
    %366 = vector.broadcast %cst_33 : f32 to vector<128x1xf32>
    %367 = arith.divf %365, %366 : vector<128x1xf32>
    %368 = vector.broadcast %367 : vector<128x1xf32> to vector<128x4xf32>
    %369 = arith.subf %363, %368 : vector<128x4xf32>
    %370 = arith.mulf %369, %369 : vector<128x4xf32>
    %cst_34 = arith.constant dense<0.000000e+00> : vector<128xf32>
    %371 = vector.multi_reduction <add>, %370, %cst_34 [1] : vector<128x4xf32> to vector<128xf32>
    %372 = vector.shape_cast %371 : vector<128xf32> to vector<128x1xf32>
    %cst_35 = arith.constant 4.000000e+00 : f32
    %373 = vector.broadcast %cst_35 : f32 to vector<128x1xf32>
    %374 = arith.divf %372, %373 : vector<128x1xf32>
    %cst_36 = arith.constant 9.99999997E-7 : f32
    %375 = vector.broadcast %cst_36 : f32 to vector<128x1xf32>
    %376 = arith.addf %374, %375 : vector<128x1xf32>
    %377 = math.rsqrt %376 : vector<128x1xf32>
    %378 = vector.broadcast %377 : vector<128x1xf32> to vector<128x4xf32>
    %379 = arith.mulf %369, %378 : vector<128x4xf32>
    %c0_37 = arith.constant 0 : index
    %c0_38 = arith.constant 0 : index
    %380 = vector.load %arg6[%c0_37, %c0_38] : memref<1x4xf32, #tpu.memory_space<vmem>>, vector<1x4xf32>
    %381 = vector.shape_cast %380 : vector<1x4xf32> to vector<4xf32>
    %382 = vector.shape_cast %381 : vector<4xf32> to vector<1x4xf32>
    %383 = vector.broadcast %382 : vector<1x4xf32> to vector<128x4xf32>
    %384 = arith.mulf %379, %383 : vector<128x4xf32>
    %c0_39 = arith.constant 0 : index
    %c0_40 = arith.constant 0 : index
    %385 = vector.load %arg7[%c0_39, %c0_40] : memref<1x4xf32, #tpu.memory_space<vmem>>, vector<1x4xf32>
    %386 = vector.shape_cast %385 : vector<1x4xf32> to vector<4xf32>
    %387 = vector.shape_cast %386 : vector<4xf32> to vector<1x4xf32>
    %388 = vector.broadcast %387 : vector<1x4xf32> to vector<128x4xf32>
    %389 = arith.addf %384, %388 : vector<128x4xf32>
    %390 = arith.truncf %389 : vector<128x4xf32> to vector<128x4xbf16>
    %c0_41 = arith.constant 0 : index
    %c0_42 = arith.constant 0 : index
    %391 = vector.load %arg8[%c0_41, %c0_42] : memref<4x16xbf16, #tpu.memory_space<vmem>>, vector<4x16xbf16>
    %cst_43 = arith.constant dense<0.000000e+00> : vector<128x16xf32>
    %392 = tpu.matmul %390, %391, %cst_43 {dimension_numbers = #tpu.dot_dimension_numbers<[1], [0], [0], [1], [0, 0, 1, 1], [], []>} : vector<128x4xbf16>, vector<4x16xbf16>, vector<128x16xf32> -> vector<128x16xf32>
    %c0_44 = arith.constant 0 : index
    %c0_45 = arith.constant 0 : index
    %393 = vector.load %arg9[%c0_44, %c0_45] : memref<1x16xf32, #tpu.memory_space<vmem>>, vector<1x16xf32>
    %394 = vector.shape_cast %393 : vector<1x16xf32> to vector<16xf32>
    %395 = vector.shape_cast %394 : vector<16xf32> to vector<1x16xf32>
    %396 = vector.broadcast %395 : vector<1x16xf32> to vector<128x16xf32>
    %397 = arith.addf %392, %396 : vector<128x16xf32>
    %cst_46 = arith.constant 5.000000e-01 : f32
    %398 = vector.broadcast %cst_46 : f32 to vector<128x16xf32>
    %399 = arith.mulf %398, %397 : vector<128x16xf32>
    %cst_47 = arith.constant 0.707106769 : f32
    %400 = vector.broadcast %cst_47 : f32 to vector<128x16xf32>
    %401 = arith.mulf %397, %400 : vector<128x16xf32>
    %402 = math.erf %401 : vector<128x16xf32>
    %cst_48 = arith.constant 1.000000e+00 : f32
    %403 = vector.broadcast %cst_48 : f32 to vector<128x16xf32>
    %404 = arith.addf %403, %402 : vector<128x16xf32>
    %405 = arith.mulf %399, %404 : vector<128x16xf32>
    %406 = arith.truncf %405 : vector<128x16xf32> to vector<128x16xbf16>
    %c0_49 = arith.constant 0 : index
    %c0_50 = arith.constant 0 : index
    %407 = vector.load %arg10[%c0_49, %c0_50] : memref<16x4xbf16, #tpu.memory_space<vmem>>, vector<16x4xbf16>
    %cst_51 = arith.constant dense<0.000000e+00> : vector<128x4xf32>
    %408 = tpu.matmul %406, %407, %cst_51 {dimension_numbers = #tpu.dot_dimension_numbers<[1], [0], [0], [1], [0, 0, 1, 1], [], []>} : vector<128x16xbf16>, vector<16x4xbf16>, vector<128x4xf32> -> vector<128x4xf32>
    %c0_52 = arith.constant 0 : index
    %c0_53 = arith.constant 0 : index
    %409 = vector.load %arg11[%c0_52, %c0_53] : memref<1x4xf32, #tpu.memory_space<vmem>>, vector<1x4xf32>
    %410 = vector.shape_cast %409 : vector<1x4xf32> to vector<4xf32>
    %411 = vector.shape_cast %410 : vector<4xf32> to vector<1x4xf32>
    %412 = vector.broadcast %411 : vector<1x4xf32> to vector<128x4xf32>
    %413 = arith.addf %408, %412 : vector<128x4xf32>
    %c0_54 = arith.constant 0 : index
    %c0_55 = arith.constant 0 : index
    %414 = vector.load %arg12[%c0_54, %c0_55] : memref<1x4xf32, #tpu.memory_space<vmem>>, vector<1x4xf32>
    %415 = vector.shape_cast %414 : vector<1x4xf32> to vector<4xf32>
    %416 = vector.shape_cast %415 : vector<4xf32> to vector<1x4xf32>
    %417 = vector.broadcast %416 : vector<1x4xf32> to vector<128x4xf32>
    %418 = arith.mulf %413, %417 : vector<128x4xf32>
    %c3_56 = arith.constant 3 : index
    %c3_57 = arith.constant 3 : index
    %c0_58 = arith.constant 0 : index
    %419 = vector.load %arg14[%c3_56, %c3_57, %c0_58] : memref<14x22x4xf32, #tpu.memory_space<vmem>>, vector<8x16x4xf32>
    %420 = vector.shape_cast %418 : vector<128x4xf32> to vector<8x16x4xf32>
    %421 = arith.addf %419, %420 : vector<8x16x4xf32>
    %c0_59 = arith.constant 0 : index
    %c0_60 = arith.constant 0 : index
    %c0_61 = arith.constant 0 : index
    %c0_62 = arith.constant 0 : index
    %422 = vector.load %arg13[%c0_59, %c0_60, %c0_61, %c0_62] : memref<1x8x16x4xf32, #tpu.memory_space<vmem>>, vector<1x8x16x4xf32>
    %423 = vector.shape_cast %422 : vector<1x8x16x4xf32> to vector<8x16x4xf32>
    %424 = vector.shape_cast %421 : vector<8x16x4xf32> to vector<1x8x16x4xf32>
    tpu.vector_store %arg13[%c0_59, %c0_60, %c0_61, %c0_62], %424 {strides = array<i32>} : memref<1x8x16x4xf32, #tpu.memory_space<vmem>>, vector<1x8x16x4xf32>,
    return
  }
  func.func @transform_0(%arg0: i32, %arg1: i32) -> (i32, i32, i32, i32) {
    %c0_i32 = arith.constant 0 : i32
    %c0_i32_0 = arith.constant 0 : i32
    %c0_i32_1 = arith.constant 0 : i32
    return %arg0, %arg1, %c0_i32, %c0_i32_0 : i32, i32, i32, i32
  }
  func.func @transform_1(%arg0: i32, %arg1: i32) -> (i32, i32, i32, i32) {
    %c1_i32 = arith.constant 1 : i32
    %0 = arith.addi %arg1, %c1_i32 : i32
    %c1_i32_0 = arith.constant 1 : i32
    %1 = arith.muli %0, %c1_i32_0 : i32
    %c0_i32 = arith.constant 0 : i32
    %c0_i32_1 = arith.constant 0 : i32
    %c0_i32_2 = arith.constant 0 : i32
    return %arg0, %1, %c0_i32, %c0_i32_1 : i32, i32, i32, i32
  }
  func.func @transform_2(%arg0: i32, %arg1: i32) -> (i32, i32, i32) {
    %c0_i32 = arith.constant 0 : i32
    %c0_i32_0 = arith.constant 0 : i32
    %c0_i32_1 = arith.constant 0 : i32
    %c0_i32_2 = arith.constant 0 : i32
    return %c0_i32, %c0_i32_0, %c0_i32_1 : i32, i32, i32
  }
  func.func @transform_3(%arg0: i32, %arg1: i32) -> (i32, i32) {
    %c0_i32 = arith.constant 0 : i32
    %c0_i32_0 = arith.constant 0 : i32
    %c0_i32_1 = arith.constant 0 : i32
    return %c0_i32, %c0_i32_0 : i32, i32
  }
  func.func @transform_4(%arg0: i32, %arg1: i32) -> (i32, i32) {
    %c0_i32 = arith.constant 0 : i32
    %c0_i32_0 = arith.constant 0 : i32
    %c0_i32_1 = arith.constant 0 : i32
    return %c0_i32, %c0_i32_0 : i32, i32
  }
  func.func @transform_5(%arg0: i32, %arg1: i32) -> (i32, i32) {
    %c0_i32 = arith.constant 0 : i32
    %c0_i32_0 = arith.constant 0 : i32
    %c0_i32_1 = arith.constant 0 : i32
    return %c0_i32, %c0_i32_0 : i32, i32
  }
  func.func @transform_6(%arg0: i32, %arg1: i32) -> (i32, i32) {
    %c0_i32 = arith.constant 0 : i32
    %c0_i32_0 = arith.constant 0 : i32
    %c0_i32_1 = arith.constant 0 : i32
    return %c0_i32, %c0_i32_0 : i32, i32
  }
  func.func @transform_7(%arg0: i32, %arg1: i32) -> (i32, i32) {
    %c0_i32 = arith.constant 0 : i32
    %c0_i32_0 = arith.constant 0 : i32
    %c0_i32_1 = arith.constant 0 : i32
    return %c0_i32, %c0_i32_0 : i32, i32
  }
  func.func @transform_8(%arg0: i32, %arg1: i32) -> (i32, i32) {
    %c0_i32 = arith.constant 0 : i32
    %c0_i32_0 = arith.constant 0 : i32
    %c0_i32_1 = arith.constant 0 : i32
    return %c0_i32, %c0_i32_0 : i32, i32
  }
  func.func @transform_9(%arg0: i32, %arg1: i32) -> (i32, i32) {
    %c0_i32 = arith.constant 0 : i32
    %c0_i32_0 = arith.constant 0 : i32
    %c0_i32_1 = arith.constant 0 : i32
    return %c0_i32, %c0_i32_0 : i32, i32
  }
  func.func @transform_10(%arg0: i32, %arg1: i32) -> (i32, i32) {
    %c0_i32 = arith.constant 0 : i32
    %c0_i32_0 = arith.constant 0 : i32
    %c0_i32_1 = arith.constant 0 : i32
    return %c0_i32, %c0_i32_0 : i32, i32
  }
  func.func @transform_11(%arg0: i32, %arg1: i32) -> (i32, i32, i32, i32) {
    %c0_i32 = arith.constant 0 : i32
    %c0_i32_0 = arith.constant 0 : i32
    %c0_i32_1 = arith.constant 0 : i32
    return %arg0, %arg1, %c0_i32, %c0_i32_0 : i32, i32, i32, i32
  }
}

</mosaic_0001>

<llo_original>
// kernel: tpu_custom_call.1
$region0: #{tpu_custom_call.1}
  #allocation0 [shape = 'u32[]', space=smem, size = 0x4, offset = 0x4, fixed_abs, tag = 'smem constant byte address 0x4 - core index']
  #allocation1 [shape = 'u32[144,128]{1,0:T(1,128)}', space=vmem, size = 0x12000, scoped, tag = 'internal scratch']
  #allocation2 [shape = 'f32[14,22,4]{2,1,0:T(8,128)}', space=vmem, size = 0x2a000, scoped, tag = 'scratch operand']
  %s0 = inlined_call_operand.vmem [shape: f32[2,24,22,4], index: 0, kind: input, shape index: {}]
  %s1 = inlined_call_operand.vmem [shape: f32[2,24,22,4], index: 1, kind: input, shape index: {}]
  %s2 = inlined_call_operand.vmem [shape: f32[7,7,4], index: 2, kind: input, shape index: {}]
  %s3 = inlined_call_operand.vmem [shape: f32[1,4], index: 3, kind: input, shape index: {}]
  %s4 = inlined_call_operand.vmem [shape: f32[1,4], index: 4, kind: input, shape index: {}]
  %s5 = inlined_call_operand.vmem [shape: f32[1,4], index: 5, kind: input, shape index: {}]
  %s6 = inlined_call_operand.vmem [shape: bf16[4,16], index: 6, kind: input, shape index: {}]
  %s7 = inlined_call_operand.vmem [shape: f32[1,16], index: 7, kind: input, shape index: {}]
  %s8 = inlined_call_operand.vmem [shape: bf16[16,4], index: 8, kind: input, shape index: {}]
  %s9 = inlined_call_operand.vmem [shape: f32[1,4], index: 9, kind: input, shape index: {}]
  %s10 = inlined_call_operand.vmem [shape: f32[1,4], index: 10, kind: input, shape index: {}]
  %s11 = inlined_call_operand.vmem [shape: f32[2,16,16,4], index: 11, kind: output, shape index: {}]
  %s12 = sld [smem:[#allocation0]]
  $region77: #{tpu_custom_call.1} parent=0
    _
  %s14 = ssub.s32 1, %s12
  %s15 = scalar_select 0, %s14, %s12
  loop: start=0, step=1, limit=6
  $region2: #{tpu_custom_call.1} parent=0 // loop_pre_header
    _
  $region3: #{tpu_custom_call.1} parent=0 // loop_header
    %s17 = sphi 0, %s21
    %p18 = scmp.ge.s32.totalorder %s17, 6
    %s24 = sphi 0, %s36
    %s25 = sphi 0, %s32
    %s26 = sphi 0, %s24
    %s27 = sphi 0, %s25
    %s28 = sphi 0, %s26
    %s29 = sphi 0, %s27
    %s41 = sphi 0, %s43
    %s44 = sphi 0, %s41
    %s45 = sphi 0, %s44
    %s61 = sphi 0, %s45
    %s71 = sphi 0, %s73
    %s74 = sphi 0, %s71
    %s75 = sphi 0, %s74
    %s91 = sphi 0, %s75
    %s95 = sphi 0, %s95
    %s97 = sphi 0, %s95
    %s98 = sphi 0, %s97
    %s112 = sphi 0, %s98
    %s116 = sphi 0, %s116
    %s118 = sphi 0, %s116
    %s119 = sphi 0, %s118
    %s133 = sphi 0, %s119
    %s137 = sphi 0, %s137
    %s139 = sphi 0, %s137
    %s140 = sphi 0, %s139
    %s154 = sphi 0, %s140
    %s158 = sphi 0, %s158
    %s160 = sphi 0, %s158
    %s161 = sphi 0, %s160
    %s175 = sphi 0, %s161
    %s179 = sphi 0, %s179
    %s181 = sphi 0, %s179
    %s182 = sphi 0, %s181
    %s196 = sphi 0, %s182
    %s200 = sphi 0, %s200
    %s202 = sphi 0, %s200
    %s203 = sphi 0, %s202
    %s217 = sphi 0, %s203
    %s221 = sphi 0, %s221
    %s223 = sphi 0, %s221
    %s224 = sphi 0, %s223
    %s238 = sphi 0, %s224
    %s242 = sphi 0, %s242
    %s244 = sphi 0, %s242
    %s245 = sphi 0, %s244
    %s259 = sphi 0, %s245
    %s263 = sphi 0, %s263
    %s265 = sphi 0, %s263
    %s266 = sphi 0, %s265
    %s280 = sphi 0, %s266
    %s288 = sphi 0, %s290
    %s291 = sphi 0, %s288
    %s292 = sphi 0, %s291
    %s308 = sphi 0, %s292
  $region4: #{tpu_custom_call.1} parent=0 // loop_header_branch
    %20 = sbr.rel (%p18) target = $region8
  $region5: #{tpu_custom_call.1} parent=0 // loop_body
    %s22 = ssub.s32 %s17, 1
    %s23 = ssub.s32 %s17, 2
    %s30 = sadd.s32 1, %s25
    %p31 = scmp.ge.s32.totalorder %s30, 2
    %s32 = scalar_select %p31, 0, %s30
    %s33 = sadd.s32 1, %s24
    %s34 = scalar_select %p31, %s33, %s24
    %p35 = scmp.ge.s32.totalorder %s34, 2
    %s36 = scalar_select %p35, 0, %s34
    %s37 = ssub.s32 %s24, %s36
    %s38 = ssub.s32 %s25, %s32
    %s39 = sor.u32 %s37, %s38
    %p40 = scmp.eq.s32.totalorder %s39, 0
    %s42 = sadd.s32 %s41, 1
    %s43 = scalar_select %p40, %s41, %s42
    %p46 = pneg %p40
    %p47 = scmp.eq.s32.totalorder %s17, 3
    %p48 = por %p46, %p47
    %p49 = scmp.ne.s32.totalorder %s41, %s44
    %p50 = scmp.eq.s32.totalorder %s17, 0
    %p51 = por %p49, %p50
    %p52 = scmp.ne.s32.totalorder %s41, %s44
    %p53 = scmp.eq.s32.totalorder %s22, 3
    %p54 = por %p52, %p53
    %p55 = scmp.ne.s32.totalorder %s44, %s45
    %p56 = scmp.eq.s32.totalorder %s22, 0
    %p57 = por %p55, %p56
    %p58 = scmp.ne.s32.totalorder %s44, %s45
    %p59 = scmp.eq.s32.totalorder %s23, 3
    %p60 = por %p58, %p59
    %p62 = scmp.ne.s32.totalorder %s45, %s61
    %p63 = scmp.eq.s32.totalorder %s23, 0
    %p64 = por %p62, %p63
    %s65 = sadd.s32 %s25, 1
    %s66 = sadd.s32 %s32, 1
    %s67 = ssub.s32 %s24, %s36
    %s68 = ssub.s32 %s65, %s66
    %s69 = sor.u32 %s67, %s68
    %p70 = scmp.eq.s32.totalorder %s69, 0
    %s72 = sadd.s32 %s71, 1
    %s73 = scalar_select %p70, %s71, %s72
    %p76 = pneg %p70
    %p77 = scmp.eq.s32.totalorder %s17, 3
    %p78 = por %p76, %p77
    %p79 = scmp.ne.s32.totalorder %s71, %s74
    %p80 = scmp.eq.s32.totalorder %s17, 0
    %p81 = por %p79, %p80
    %p82 = scmp.ne.s32.totalorder %s71, %s74
    %p83 = scmp.eq.s32.totalorder %s22, 3
    %p84 = por %p82, %p83
    %p85 = scmp.ne.s32.totalorder %s74, %s75
    %p86 = scmp.eq.s32.totalorder %s22, 0
    %p87 = por %p85, %p86
    %p88 = scmp.ne.s32.totalorder %s74, %s75
    %p89 = scmp.eq.s32.totalorder %s23, 3
    %p90 = por %p88, %p89
    %p92 = scmp.ne.s32.totalorder %s75, %s91
    %p93 = scmp.eq.s32.totalorder %s23, 0
    %p94 = por %p92, %p93
    %s96 = sadd.s32 %s95, 1
    %p99 = scmp.eq.s32.totalorder %s17, 3
    %p100 = scmp.ne.s32.totalorder %s95, %s97
    %p101 = scmp.eq.s32.totalorder %s17, 0
    %p102 = por %p100, %p101
    %p103 = scmp.ne.s32.totalorder %s95, %s97
    %p104 = scmp.eq.s32.totalorder %s22, 3
    %p105 = por %p103, %p104
    %p106 = scmp.ne.s32.totalorder %s97, %s98
    %p107 = scmp.eq.s32.totalorder %s22, 0
    %p108 = por %p106, %p107
    %p109 = scmp.ne.s32.totalorder %s97, %s98
    %p110 = scmp.eq.s32.totalorder %s23, 3
    %p111 = por %p109, %p110
    %p113 = scmp.ne.s32.totalorder %s98, %s112
    %p114 = scmp.eq.s32.totalorder %s23, 0
    %p115 = por %p113, %p114
    %s117 = sadd.s32 %s116, 1
    %p120 = scmp.eq.s32.totalorder %s17, 3
    %p121 = scmp.ne.s32.totalorder %s116, %s118
    %p122 = scmp.eq.s32.totalorder %s17, 0
    %p123 = por %p121, %p122
    %p124 = scmp.ne.s32.totalorder %s116, %s118
    %p125 = scmp.eq.s32.totalorder %s22, 3
    %p126 = por %p124, %p125
    %p127 = scmp.ne.s32.totalorder %s118, %s119
    %p128 = scmp.eq.s32.totalorder %s22, 0
    %p129 = por %p127, %p128
    %p130 = scmp.ne.s32.totalorder %s118, %s119
    %p131 = scmp.eq.s32.totalorder %s23, 3
    %p132 = por %p130, %p131
    %p134 = scmp.ne.s32.totalorder %s119, %s133
    %p135 = scmp.eq.s32.totalorder %s23, 0
    %p136 = por %p134, %p135
    %s138 = sadd.s32 %s137, 1
    %p141 = scmp.eq.s32.totalorder %s17, 3
    %p142 = scmp.ne.s32.totalorder %s137, %s139
    %p143 = scmp.eq.s32.totalorder %s17, 0
    %p144 = por %p142, %p143
    %p145 = scmp.ne.s32.totalorder %s137, %s139
    %p146 = scmp.eq.s32.totalorder %s22, 3
    %p147 = por %p145, %p146
    %p148 = scmp.ne.s32.totalorder %s139, %s140
    %p149 = scmp.eq.s32.totalorder %s22, 0
    %p150 = por %p148, %p149
    %p151 = scmp.ne.s32.totalorder %s139, %s140
    %p152 = scmp.eq.s32.totalorder %s23, 3
    %p153 = por %p151, %p152
    %p155 = scmp.ne.s32.totalorder %s140, %s154
    %p156 = scmp.eq.s32.totalorder %s23, 0
    %p157 = por %p155, %p156
    %s159 = sadd.s32 %s158, 1
    %p162 = scmp.eq.s32.totalorder %s17, 3
    %p163 = scmp.ne.s32.totalorder %s158, %s160
    %p164 = scmp.eq.s32.totalorder %s17, 0
    %p165 = por %p163, %p164
    %p166 = scmp.ne.s32.totalorder %s158, %s160
    %p167 = scmp.eq.s32.totalorder %s22, 3
    %p168 = por %p166, %p167
    %p169 = scmp.ne.s32.totalorder %s160, %s161
    %p170 = scmp.eq.s32.totalorder %s22, 0
    %p171 = por %p169, %p170
    %p172 = scmp.ne.s32.totalorder %s160, %s161
    %p173 = scmp.eq.s32.totalorder %s23, 3
    %p174 = por %p172, %p173
    %p176 = scmp.ne.s32.totalorder %s161, %s175
    %p177 = scmp.eq.s32.totalorder %s23, 0
    %p178 = por %p176, %p177
    %s180 = sadd.s32 %s179, 1
    %p183 = scmp.eq.s32.totalorder %s17, 3
    %p184 = scmp.ne.s32.totalorder %s179, %s181
    %p185 = scmp.eq.s32.totalorder %s17, 0
    %p186 = por %p184, %p185
    %p187 = scmp.ne.s32.totalorder %s179, %s181
    %p188 = scmp.eq.s32.totalorder %s22, 3
    %p189 = por %p187, %p188
    %p190 = scmp.ne.s32.totalorder %s181, %s182
    %p191 = scmp.eq.s32.totalorder %s22, 0
    %p192 = por %p190, %p191
    %p193 = scmp.ne.s32.totalorder %s181, %s182
    %p194 = scmp.eq.s32.totalorder %s23, 3
    %p195 = por %p193, %p194
    %p197 = scmp.ne.s32.totalorder %s182, %s196
    %p198 = scmp.eq.s32.totalorder %s23, 0
    %p199 = por %p197, %p198
    %s201 = sadd.s32 %s200, 1
    %p204 = scmp.eq.s32.totalorder %s17, 3
    %p205 = scmp.ne.s32.totalorder %s200, %s202
    %p206 = scmp.eq.s32.totalorder %s17, 0
    %p207 = por %p205, %p206
    %p208 = scmp.ne.s32.totalorder %s200, %s202
    %p209 = scmp.eq.s32.totalorder %s22, 3
    %p210 = por %p208, %p209
    %p211 = scmp.ne.s32.totalorder %s202, %s203
    %p212 = scmp.eq.s32.totalorder %s22, 0
    %p213 = por %p211, %p212
    %p214 = scmp.ne.s32.totalorder %s202, %s203
    %p215 = scmp.eq.s32.totalorder %s23, 3
    %p216 = por %p214, %p215
    %p218 = scmp.ne.s32.totalorder %s203, %s217
    %p219 = scmp.eq.s32.totalorder %s23, 0
    %p220 = por %p218, %p219
    %s222 = sadd.s32 %s221, 1
    %p225 = scmp.eq.s32.totalorder %s17, 3
    %p226 = scmp.ne.s32.totalorder %s221, %s223
    %p227 = scmp.eq.s32.totalorder %s17, 0
    %p228 = por %p226, %p227
    %p229 = scmp.ne.s32.totalorder %s221, %s223
    %p230 = scmp.eq.s32.totalorder %s22, 3
    %p231 = por %p229, %p230
    %p232 = scmp.ne.s32.totalorder %s223, %s224
    %p233 = scmp.eq.s32.totalorder %s22, 0
    %p234 = por %p232, %p233
    %p235 = scmp.ne.s32.totalorder %s223, %s224
    %p236 = scmp.eq.s32.totalorder %s23, 3
    %p237 = por %p235, %p236
    %p239 = scmp.ne.s32.totalorder %s224, %s238
    %p240 = scmp.eq.s32.totalorder %s23, 0
    %p241 = por %p239, %p240
    %s243 = sadd.s32 %s242, 1
    %p246 = scmp.eq.s32.totalorder %s17, 3
    %p247 = scmp.ne.s32.totalorder %s242, %s244
    %p248 = scmp.eq.s32.totalorder %s17, 0
    %p249 = por %p247, %p248
    %p250 = scmp.ne.s32.totalorder %s242, %s244
    %p251 = scmp.eq.s32.totalorder %s22, 3
    %p252 = por %p250, %p251
    %p253 = scmp.ne.s32.totalorder %s244, %s245
    %p254 = scmp.eq.s32.totalorder %s22, 0
    %p255 = por %p253, %p254
    %p256 = scmp.ne.s32.totalorder %s244, %s245
    %p257 = scmp.eq.s32.totalorder %s23, 3
    %p258 = por %p256, %p257
    %p260 = scmp.ne.s32.totalorder %s245, %s259
    %p261 = scmp.eq.s32.totalorder %s23, 0
    %p262 = por %p260, %p261
    %s264 = sadd.s32 %s263, 1
    %p267 = scmp.eq.s32.totalorder %s17, 3
    %p268 = scmp.ne.s32.totalorder %s263, %s265
    %p269 = scmp.eq.s32.totalorder %s17, 0
    %p270 = por %p268, %p269
    %p271 = scmp.ne.s32.totalorder %s263, %s265
    %p272 = scmp.eq.s32.totalorder %s22, 3
    %p273 = por %p271, %p272
    %p274 = scmp.ne.s32.totalorder %s265, %s266
    %p275 = scmp.eq.s32.totalorder %s22, 0
    %p276 = por %p274, %p275
    %p277 = scmp.ne.s32.totalorder %s265, %s266
    %p278 = scmp.eq.s32.totalorder %s23, 3
    %p279 = por %p277, %p278
    %p281 = scmp.ne.s32.totalorder %s266, %s280
    %p282 = scmp.eq.s32.totalorder %s23, 0
    %p283 = por %p281, %p282
    %s284 = ssub.s32 %s24, %s36
    %s285 = ssub.s32 %s25, %s32
    %s286 = sor.u32 %s284, %s285
    %p287 = scmp.eq.s32.totalorder %s286, 0
    %s289 = sadd.s32 %s288, 1
    %s290 = scalar_select %p287, %s288, %s289
    %p293 = pneg %p287
    %p294 = scmp.eq.s32.totalorder %s17, 3
    %p295 = por %p293, %p294
    %p296 = scmp.ne.s32.totalorder %s288, %s291
    %p297 = scmp.eq.s32.totalorder %s17, 0
    %p298 = por %p296, %p297
    %p299 = scmp.ne.s32.totalorder %s288, %s291
    %p300 = scmp.eq.s32.totalorder %s22, 3
    %p301 = por %p299, %p300
    %p302 = scmp.ne.s32.totalorder %s291, %s292
    %p303 = scmp.eq.s32.totalorder %s22, 0
    %p304 = por %p302, %p303
    %p305 = scmp.ne.s32.totalorder %s291, %s292
    %p306 = scmp.eq.s32.totalorder %s23, 3
    %p307 = por %p305, %p306
    %p309 = scmp.ne.s32.totalorder %s292, %s308
    %p310 = scmp.eq.s32.totalorder %s23, 0
    %p311 = por %p309, %p310
    %p312 = scmp.le.s32.totalorder 1, %s17
    %p313 = scmp.lt.s32.totalorder %s17, 5
    %p314 = pnand %p312, %p313
    %p315 = pneg %p314
    // Predicated region
    $region9: #{tpu_custom_call.1} parent=5 // pred_check
      _
    $region10: #{tpu_custom_call.1} parent=5 // pred_check_branch
      %317 = sbr.rel (%p314) target = $region12
    $region11: #{tpu_custom_call.1} parent=5 // pred_region
      %s318 = ssub.s32 %s17, 1
      // Predicated region
      $region13: #{tpu_custom_call.1} parent=11 // pred_check
        %p319 = pneg %p108
      $region14: #{tpu_custom_call.1} parent=11 // pred_check_branch
        %321 = sbr.rel (%p319) target = $region16
      $region15: #{tpu_custom_call.1} parent=11 // pred_region
        _
      $region16: #{tpu_custom_call.1} parent=11 // pred_fallthru
        _
      // Predicated region
      $region17: #{tpu_custom_call.1} parent=11 // pred_check
        %p322 = pneg %p129
      $region18: #{tpu_custom_call.1} parent=11 // pred_check_branch
        %324 = sbr.rel (%p322) target = $region20
      $region19: #{tpu_custom_call.1} parent=11 // pred_region
        _
      $region20: #{tpu_custom_call.1} parent=11 // pred_fallthru
        _
      // Predicated region
      $region21: #{tpu_custom_call.1} parent=11 // pred_check
        %p325 = pneg %p150
      $region22: #{tpu_custom_call.1} parent=11 // pred_check_branch
        %327 = sbr.rel (%p325) target = $region24
      $region23: #{tpu_custom_call.1} parent=11 // pred_region
        _
      $region24: #{tpu_custom_call.1} parent=11 // pred_fallthru
        _
      // Predicated region
      $region25: #{tpu_custom_call.1} parent=11 // pred_check
        %p328 = pneg %p171
      $region26: #{tpu_custom_call.1} parent=11 // pred_check_branch
        %330 = sbr.rel (%p328) target = $region28
      $region27: #{tpu_custom_call.1} parent=11 // pred_region
        _
      $region28: #{tpu_custom_call.1} parent=11 // pred_fallthru
        _
      // Predicated region
      $region29: #{tpu_custom_call.1} parent=11 // pred_check
        %p331 = pneg %p192
      $region30: #{tpu_custom_call.1} parent=11 // pred_check_branch
        %333 = sbr.rel (%p331) target = $region32
      $region31: #{tpu_custom_call.1} parent=11 // pred_region
        _
      $region32: #{tpu_custom_call.1} parent=11 // pred_fallthru
        _
      // Predicated region
      $region33: #{tpu_custom_call.1} parent=11 // pred_check
        %p334 = pneg %p213
      $region34: #{tpu_custom_call.1} parent=11 // pred_check_branch
        %336 = sbr.rel (%p334) target = $region36
      $region35: #{tpu_custom_call.1} parent=11 // pred_region
        _
      $region36: #{tpu_custom_call.1} parent=11 // pred_fallthru
        _
      // Predicated region
      $region37: #{tpu_custom_call.1} parent=11 // pred_check
        %p337 = pneg %p234
      $region38: #{tpu_custom_call.1} parent=11 // pred_check_branch
        %339 = sbr.rel (%p337) target = $region40
      $region39: #{tpu_custom_call.1} parent=11 // pred_region
        _
      $region40: #{tpu_custom_call.1} parent=11 // pred_fallthru
        _
      // Predicated region
      $region41: #{tpu_custom_call.1} parent=11 // pred_check
        %p340 = pneg %p255
      $region42: #{tpu_custom_call.1} parent=11 // pred_check_branch
        %342 = sbr.rel (%p340) target = $region44
      $region43: #{tpu_custom_call.1} parent=11 // pred_region
        _
      $region44: #{tpu_custom_call.1} parent=11 // pred_fallthru
        _
      // Predicated region
      $region45: #{tpu_custom_call.1} parent=11 // pred_check
        %p343 = pneg %p276
      $region46: #{tpu_custom_call.1} parent=11 // pred_check_branch
        %345 = sbr.rel (%p343) target = $region48
      $region47: #{tpu_custom_call.1} parent=11 // pred_region
        _
      $region48: #{tpu_custom_call.1} parent=11 // pred_fallthru
        _
    $region12: #{tpu_custom_call.1} parent=5 // pred_fallthru
      _
    %p346 = scmp.lt.s32.totalorder %s17, 4
    // Predicated region
    $region49: #{tpu_custom_call.1} parent=5 // pred_check
      %p347 = pneg %p346
    $region50: #{tpu_custom_call.1} parent=5 // pred_check_branch
      %349 = sbr.rel (%p347) target = $region52
    $region51: #{tpu_custom_call.1} parent=5 // pred_region
      // Predicated region
      $region53: #{tpu_custom_call.1} parent=51 // pred_check
        %p350 = pneg %p51
      $region54: #{tpu_custom_call.1} parent=51 // pred_check_branch
        %352 = sbr.rel (%p350) target = $region56
      $region55: #{tpu_custom_call.1} parent=51 // pred_region
        %s353 = smul.u32 8, %s25
        %p354 = scmp.lt.s32.totalorder %s24, 1
        %s355 = scalar_select %p354, %s24, 1
        %p356 = scmp.lt.s32.totalorder %s353, 23
        %s357 = scalar_select %p356, %s353, 23
        %s358 = smul.addr %s357, 3
        %s359 = smul.addr %s355, 72
        %s360 = sadd.s32 %s358, %s359
        %s361 = smul.addr %s360, 8
        %s362 = scalar_lea.vmem %s0, %s361
        %s363 = smul.u32 8, %s25
      $region56: #{tpu_custom_call.1} parent=51 // pred_fallthru
        _
      // Predicated region
      $region57: #{tpu_custom_call.1} parent=51 // pred_check
        %p364 = pneg %p81
      $region58: #{tpu_custom_call.1} parent=51 // pred_check_branch
        %366 = sbr.rel (%p364) target = $region60
      $region59: #{tpu_custom_call.1} parent=51 // pred_region
        %s367 = sadd.s32 %s25, 1
        %s368 = smul.u32 8, %s367
        %p369 = scmp.lt.s32.totalorder %s24, 1
        %s370 = scalar_select %p369, %s24, 1
        %p371 = scmp.lt.s32.totalorder %s368, 23
        %s372 = scalar_select %p371, %s368, 23
        %s373 = smul.addr %s372, 3
        %s374 = smul.addr %s370, 72
        %s375 = sadd.s32 %s373, %s374
        %s376 = smul.addr %s375, 8
        %s377 = scalar_lea.vmem %s1, %s376
        %s378 = sadd.s32 %s25, 1
        %s379 = smul.u32 8, %s378
      $region60: #{tpu_custom_call.1} parent=51 // pred_fallthru
        _
    $region52: #{tpu_custom_call.1} parent=5 // pred_fallthru
      _
    %p380 = scmp.le.s32.totalorder 1, %s17
    %p381 = scmp.lt.s32.totalorder %s17, 5
    %p382 = pnand %p380, %p381
    %p383 = pneg %p382
    // Predicated region
    $region61: #{tpu_custom_call.1} parent=5 // pred_check
      _
    $region62: #{tpu_custom_call.1} parent=5 // pred_check_branch
      %385 = sbr.rel (%p382) target = $region64
    $region63: #{tpu_custom_call.1} parent=5 // pred_region
      %s386 = ssub.s32 %s17, 1
      %s387 = smul.u32 8, %s27
      %p388 = scmp.lt.s32.totalorder %s26, 1
      %s389 = scalar_select %p388, %s26, 1
      %p390 = scmp.lt.s32.totalorder %s387, 23
      %s391 = scalar_select %p390, %s387, 23
      %s392 = smul.addr %s391, 3
      %s393 = smul.addr %s389, 72
      %s394 = sadd.s32 %s392, %s393
      %s395 = smul.addr %s394, 8
      %s396 = scalar_lea.vmem %s0, %s395
      %p397 = pneg %p57
      %p398 = pneg %p54
      %s399 = sadd.s32 %s27, 1
      %s400 = smul.u32 8, %s399
      %p401 = scmp.lt.s32.totalorder %s26, 1
      %s402 = scalar_select %p401, %s26, 1
      %p403 = scmp.lt.s32.totalorder %s400, 23
      %s404 = scalar_select %p403, %s400, 23
      %s405 = smul.addr %s404, 3
      %s406 = smul.addr %s402, 72
      %s407 = sadd.s32 %s405, %s406
      %s408 = smul.addr %s407, 8
      %s409 = scalar_lea.vmem %s1, %s408
      %p410 = pneg %p87
      %p411 = pneg %p84
      %p412 = pneg %p108
      %p413 = pneg %p105
      %p414 = pneg %p129
      %p415 = pneg %p126
      %p416 = pneg %p150
      %p417 = pneg %p147
      %p418 = pneg %p171
      %p419 = pneg %p168
      %p420 = pneg %p192
      %p421 = pneg %p189
      %p422 = pneg %p213
      %p423 = pneg %p210
      %p424 = pneg %p234
      %p425 = pneg %p231
      %p426 = pneg %p255
      %p427 = pneg %p252
      %p428 = pneg %p276
      %p429 = pneg %p273
      %p430 = pneg %p304
      %p431 = pneg %p301
      %s432 = smul.u32 8, %s27
      %p433 = scmp.lt.s32.totalorder %s26, 1
      %s434 = scalar_select %p433, %s26, 1
      %p435 = scmp.lt.s32.totalorder %s432, 15
      %s436 = scalar_select %p435, %s432, 15
      %s437 = smul.addr %s436, 2
      %s438 = smul.addr %s434, 32
      %s439 = sadd.s32 %s437, %s438
      %s440 = smul.addr %s439, 8
      %s441 = scalar_lea.vmem %s11, %s440
      %s442 = smul.u32 8, %s27
      %p443 = scmp.lt.s32.totalorder %s26, 1
      %s444 = scalar_select %p443, %s26, 1
      %p445 = scmp.lt.s32.totalorder %s442, 23
      %s446 = scalar_select %p445, %s442, 23
      %s447 = smul.addr %s446, 3
      %s448 = smul.addr %s444, 72
      %s449 = sadd.s32 %s447, %s448
      %s450 = smul.addr %s449, 8
      %s451 = scalar_lea.vmem %s0, %s450
      %s452 = smul.u32 8, %s27
      %s453 = sadd.s32 %s27, 1
      %s454 = smul.u32 8, %s453
      %p455 = scmp.lt.s32.totalorder %s26, 1
      %s456 = scalar_select %p455, %s26, 1
      %p457 = scmp.lt.s32.totalorder %s454, 23
      %s458 = scalar_select %p457, %s454, 23
      %s459 = smul.addr %s458, 3
      %s460 = smul.addr %s456, 72
      %s461 = sadd.s32 %s459, %s460
      %s462 = smul.addr %s461, 8
      %s463 = scalar_lea.vmem %s1, %s462
      %s464 = sadd.s32 %s27, 1
      %s465 = smul.u32 8, %s464
      %s466 = smul.u32 8, %s27
      %p467 = scmp.lt.s32.totalorder %s26, 1
      %s468 = scalar_select %p467, %s26, 1
      %p469 = scmp.lt.s32.totalorder %s466, 15
      %s470 = scalar_select %p469, %s466, 15
      %s471 = smul.addr %s470, 2
      %s472 = smul.addr %s468, 32
      %s473 = sadd.s32 %s471, %s472
      %s474 = smul.addr %s473, 8
      %s475 = scalar_lea.vmem %s11, %s474
      %s476 = smul.u32 8, %s27
      %v478 = vld [vmem:[%s451] sm:$0xff]
      %v479 = vld [vmem:[%s451 + $0x8] sm:$0xff]
      %v480 = vld [vmem:[%s451 + $0x10] sm:$0x3f]
      %v481 = vld [vmem:[%s451 + $0x18] sm:$0xff]
      %v482 = vld [vmem:[%s451 + $0x20] sm:$0xff]
      %v483 = vld [vmem:[%s451 + $0x28] sm:$0x3f]
      %v484 = vld [vmem:[%s451 + $0x30] sm:$0xff]
      %v485 = vld [vmem:[%s451 + $0x38] sm:$0xff]
      %v486 = vld [vmem:[%s451 + $0x40] sm:$0x3f]
      %v487 = vld [vmem:[%s451 + $0x48] sm:$0xff]
      %v488 = vld [vmem:[%s451 + $0x50] sm:$0xff]
      %v489 = vld [vmem:[%s451 + $0x58] sm:$0x3f]
      %v490 = vld [vmem:[%s451 + $0x60] sm:$0xff]
      %v491 = vld [vmem:[%s451 + $0x68] sm:$0xff]
      %v492 = vld [vmem:[%s451 + $0x70] sm:$0x3f]
      %v493 = vld [vmem:[%s451 + $0x78] sm:$0xff]
      %v494 = vld [vmem:[%s451 + $0x80] sm:$0xff]
      %v495 = vld [vmem:[%s451 + $0x88] sm:$0x3f]
      %v496 = vld [vmem:[%s451 + $0x90] sm:$0xff]
      %v497 = vld [vmem:[%s451 + $0x98] sm:$0xff]
      %v498 = vld [vmem:[%s451 + $0xa0] sm:$0x3f]
      %v499 = vld [vmem:[%s451 + $0xa8] sm:$0xff]
      %v500 = vld [vmem:[%s451 + $0xb0] sm:$0xff]
      %v501 = vld [vmem:[%s451 + $0xb8] sm:$0x3f]
      %vm502 = vcmask 31744
      %503 = vst.msk [vmem:[#allocation2] sm:$0xff] %vm502, %v478
      %504 = vst.msk [vmem:[#allocation2 + $0x8] sm:$0xff] %vm502, %v479
      %vm505 = vcmask 29696
      %506 = vst.msk [vmem:[#allocation2 + $0x10] sm:$0x3f] %vm505, %v480
      %507 = vst.msk [vmem:[#allocation2 + $0x18] sm:$0xff] %vm502, %v481
      %508 = vst.msk [vmem:[#allocation2 + $0x20] sm:$0xff] %vm502, %v482
      %509 = vst.msk [vmem:[#allocation2 + $0x28] sm:$0x3f] %vm505, %v483
      %510 = vst.msk [vmem:[#allocation2 + $0x30] sm:$0xff] %vm502, %v484
      %511 = vst.msk [vmem:[#allocation2 + $0x38] sm:$0xff] %vm502, %v485
      %512 = vst.msk [vmem:[#allocation2 + $0x40] sm:$0x3f] %vm505, %v486
      %513 = vst.msk [vmem:[#allocation2 + $0x48] sm:$0xff] %vm502, %v487
      %514 = vst.msk [vmem:[#allocation2 + $0x50] sm:$0xff] %vm502, %v488
      %515 = vst.msk [vmem:[#allocation2 + $0x58] sm:$0x3f] %vm505, %v489
      %516 = vst.msk [vmem:[#allocation2 + $0x60] sm:$0xff] %vm502, %v490
      %517 = vst.msk [vmem:[#allocation2 + $0x68] sm:$0xff] %vm502, %v491
      %518 = vst.msk [vmem:[#allocation2 + $0x70] sm:$0x3f] %vm505, %v492
      %519 = vst.msk [vmem:[#allocation2 + $0x78] sm:$0xff] %vm502, %v493
      %520 = vst.msk [vmem:[#allocation2 + $0x80] sm:$0xff] %vm502, %v494
      %521 = vst.msk [vmem:[#allocation2 + $0x88] sm:$0x3f] %vm505, %v495
      %522 = vst.msk [vmem:[#allocation2 + $0x90] sm:$0xff] %vm502, %v496
      %523 = vst.msk [vmem:[#allocation2 + $0x98] sm:$0xff] %vm502, %v497
      %524 = vst.msk [vmem:[#allocation2 + $0xa0] sm:$0x3f] %vm505, %v498
      %525 = vst.msk [vmem:[#allocation2 + $0xa8] sm:$0xff] %vm502, %v499
      %526 = vst.msk [vmem:[#allocation2 + $0xb0] sm:$0xff] %vm502, %v500
      %527 = vst.msk [vmem:[#allocation2 + $0xb8] sm:$0x3f] %vm505, %v501
      %v528 = vld [vmem:[%s463] sm:$0xff]
      %v529 = vld [vmem:[%s463 + $0x8] sm:$0xff]
      %v530 = vld [vmem:[%s463 + $0x10] sm:$0x3f]
      %v531 = vld [vmem:[%s463 + $0x18] sm:$0xff]
      %v532 = vld [vmem:[%s463 + $0x20] sm:$0xff]
      %v533 = vld [vmem:[%s463 + $0x28] sm:$0x3f]
      %v534 = vld [vmem:[%s463 + $0x30] sm:$0xff]
      %v535 = vld [vmem:[%s463 + $0x38] sm:$0xff]
      %v536 = vld [vmem:[%s463 + $0x40] sm:$0x3f]
      %v537 = vld [vmem:[%s463 + $0x48] sm:$0xff]
      %v538 = vld [vmem:[%s463 + $0x50] sm:$0xff]
      %v539 = vld [vmem:[%s463 + $0x58] sm:$0x3f]
      %v540 = vld [vmem:[%s463 + $0x60] sm:$0xff]
      %v541 = vld [vmem:[%s463 + $0x68] sm:$0xff]
      %v542 = vld [vmem:[%s463 + $0x70] sm:$0x3f]
      %v543 = vld [vmem:[%s463 + $0x78] sm:$0xff]
      %v544 = vld [vmem:[%s463 + $0x80] sm:$0xff]
      %v545 = vld [vmem:[%s463 + $0x88] sm:$0x3f]
      %s546 = scalar_lea.vmem [#allocation2], 192
      %547 = vst.msk [vmem:[%s546] sm:$0xff] %vm502, %v528
      %548 = vst.msk [vmem:[%s546 + $0x8] sm:$0xff] %vm502, %v529
      %549 = vst.msk [vmem:[%s546 + $0x10] sm:$0x3f] %vm505, %v530
      %550 = vst.msk [vmem:[%s546 + $0x18] sm:$0xff] %vm502, %v531
      %551 = vst.msk [vmem:[%s546 + $0x20] sm:$0xff] %vm502, %v532
      %552 = vst.msk [vmem:[%s546 + $0x28] sm:$0x3f] %vm505, %v533
      %553 = vst.msk [vmem:[%s546 + $0x30] sm:$0xff] %vm502, %v534
      %554 = vst.msk [vmem:[%s546 + $0x38] sm:$0xff] %vm502, %v535
      %555 = vst.msk [vmem:[%s546 + $0x40] sm:$0x3f] %vm505, %v536
      %556 = vst.msk [vmem:[%s546 + $0x48] sm:$0xff] %vm502, %v537
      %557 = vst.msk [vmem:[%s546 + $0x50] sm:$0xff] %vm502, %v538
      %558 = vst.msk [vmem:[%s546 + $0x58] sm:$0x3f] %vm505, %v539
      %559 = vst.msk [vmem:[%s546 + $0x60] sm:$0xff] %vm502, %v540
      %560 = vst.msk [vmem:[%s546 + $0x68] sm:$0xff] %vm502, %v541
      %561 = vst.msk [vmem:[%s546 + $0x70] sm:$0x3f] %vm505, %v542
      %562 = vst.msk [vmem:[%s546 + $0x78] sm:$0xff] %vm502, %v543
      %563 = vst.msk [vmem:[%s546 + $0x80] sm:$0xff] %vm502, %v544
      %564 = vst.msk [vmem:[%s546 + $0x88] sm:$0x3f] %vm505, %v545
      %v565 = vld [vmem:[%s2] sm:$0x7f]
      %v566 = vld [vmem:[%s2 + $0x8] sm:$0x7f]
      %v567 = vld [vmem:[%s2 + $0x10] sm:$0x7f]
      %v568 = vld [vmem:[%s2 + $0x18] sm:$0x7f]
      %v569 = vld [vmem:[%s2 + $0x20] sm:$0x7f]
      %v570 = vld [vmem:[%s2 + $0x28] sm:$0x7f]
      %v571 = vld [vmem:[%s2 + $0x30] sm:$0x7f]
      %v572 = vld [vmem:[#allocation2] sm:$0xff]
      %v573 = vld [vmem:[#allocation2 + $0x8] sm:$0xff]
      %v574 = vld [vmem:[#allocation2 + $0x18] sm:$0xff]
      %v575 = vld [vmem:[#allocation2 + $0x20] sm:$0xff]
      %v576 = vld [vmem:[#allocation2 + $0x30] sm:$0xff]
      %v577 = vld [vmem:[#allocation2 + $0x38] sm:$0xff]
      %v578 = vld [vmem:[#allocation2 + $0x48] sm:$0xff]
      %v579 = vld [vmem:[#allocation2 + $0x50] sm:$0xff]
      %v580 = vld [vmem:[#allocation2 + $0x60] sm:$0xff]
      %v581 = vld [vmem:[#allocation2 + $0x68] sm:$0xff]
      %v582 = vld [vmem:[#allocation2 + $0x78] sm:$0xff]
      %v583 = vld [vmem:[#allocation2 + $0x80] sm:$0xff]
      %v584 = vld [vmem:[#allocation2 + $0x90] sm:$0xff]
      %v585 = vld [vmem:[#allocation2 + $0x98] sm:$0xff]
      %v586 = vld [vmem:[#allocation2 + $0xa8] sm:$0xff]
      %v587 = vld [vmem:[#allocation2 + $0xb0] sm:$0xff]
      %v588 = vld [vmem:[#allocation2 + $0xc0] sm:$0xff]
      %v589 = vld [vmem:[#allocation2 + $0xc8] sm:$0xff]
      %v590 = vld [vmem:[#allocation2 + $0xd8] sm:$0xff]
      %v591 = vld [vmem:[#allocation2 + $0xe0] sm:$0xff]
      %v592 = vld [vmem:[#allocation2 + $0xf0] sm:$0xff]
      %v593 = vld [vmem:[#allocation2 + $0xf8] sm:$0xff]
      %v594 = vld [vmem:[#allocation2 + $0x108] sm:$0xff]
      %v595 = vld [vmem:[#allocation2 + $0x110] sm:$0xff]
      %v596 = vld [vmem:[#allocation2 + $0x120] sm:$0xff]
      %v597 = vld [vmem:[#allocation2 + $0x128] sm:$0xff]
      %v598 = vld [vmem:[#allocation2 + $0x138] sm:$0xff]
      %v599 = vld [vmem:[#allocation2 + $0x140] sm:$0xff]
      %v600 = vlaneseq
      %v601 = vshrl.u32 %v600, 7
      %v602 = vsub.s32 0, %v601
      %v603 = vrot.slane %v565, %v602
      %v604 = vmul.f32 %v572, %v603
      %v605 = vmul.f32 %v573, %v603
      %v606 = vmul.f32 %v574, %v603
      %v607 = vmul.f32 %v575, %v603
      %v608 = vmul.f32 %v576, %v603
      %v609 = vmul.f32 %v577, %v603
      %v610 = vmul.f32 %v578, %v603
      %v611 = vmul.f32 %v579, %v603
      %v612 = vmul.f32 %v580, %v603
      %v613 = vmul.f32 %v581, %v603
      %v614 = vmul.f32 %v582, %v603
      %v615 = vmul.f32 %v583, %v603
      %v616 = vmul.f32 %v584, %v603
      %v617 = vmul.f32 %v585, %v603
      %v618 = vmul.f32 %v586, %v603
      %v619 = vmul.f32 %v587, %v603
      %v620 = vadd.f32 %v604, 0.0
      %v621 = vadd.f32 %v605, 0.0
      %v622 = vadd.f32 %v606, 0.0
      %v623 = vadd.f32 %v607, 0.0
      %v624 = vadd.f32 %v608, 0.0
      %v625 = vadd.f32 %v609, 0.0
      %v626 = vadd.f32 %v610, 0.0
      %v627 = vadd.f32 %v611, 0.0
      %v628 = vadd.f32 %v612, 0.0
      %v629 = vadd.f32 %v613, 0.0
      %v630 = vadd.f32 %v614, 0.0
      %v631 = vadd.f32 %v615, 0.0
      %v632 = vadd.f32 %v616, 0.0
      %v633 = vadd.f32 %v617, 0.0
      %v634 = vadd.f32 %v618, 0.0
      %v635 = vadd.f32 %v619, 0.0
      %v636 = vlaneseq
      %v637 = vshrl.u32 %v636, 7
      %v638 = vsub.s32 0, %v637
      %v639 = vrot.slane %v566, %v638
      %v640 = vmul.f32 %v574, %v639
      %v641 = vmul.f32 %v575, %v639
      %v642 = vmul.f32 %v576, %v639
      %v643 = vmul.f32 %v577, %v639
      %v644 = vmul.f32 %v578, %v639
      %v645 = vmul.f32 %v579, %v639
      %v646 = vmul.f32 %v580, %v639
      %v647 = vmul.f32 %v581, %v639
      %v648 = vmul.f32 %v582, %v639
      %v649 = vmul.f32 %v583, %v639
      %v650 = vmul.f32 %v584, %v639
      %v651 = vmul.f32 %v585, %v639
      %v652 = vmul.f32 %v586, %v639
      %v653 = vmul.f32 %v587, %v639
      %v654 = vmul.f32 %v588, %v639
      %v655 = vmul.f32 %v589, %v639
      %v656 = vadd.f32 %v620, %v640
      %v657 = vadd.f32 %v621, %v641
      %v658 = vadd.f32 %v622, %v642
      %v659 = vadd.f32 %v623, %v643
      %v660 = vadd.f32 %v624, %v644
      %v661 = vadd.f32 %v625, %v645
      %v662 = vadd.f32 %v626, %v646
      %v663 = vadd.f32 %v627, %v647
      %v664 = vadd.f32 %v628, %v648
      %v665 = vadd.f32 %v629, %v649
      %v666 = vadd.f32 %v630, %v650
      %v667 = vadd.f32 %v631, %v651
      %v668 = vadd.f32 %v632, %v652
      %v669 = vadd.f32 %v633, %v653
      %v670 = vadd.f32 %v634, %v654
      %v671 = vadd.f32 %v635, %v655
      %v672 = vlaneseq
      %v673 = vshrl.u32 %v672, 7
      %v674 = vsub.s32 0, %v673
      %v675 = vrot.slane %v567, %v674
      %v676 = vmul.f32 %v576, %v675
      %v677 = vmul.f32 %v577, %v675
      %v678 = vmul.f32 %v578, %v675
      %v679 = vmul.f32 %v579, %v675
      %v680 = vmul.f32 %v580, %v675
      %v681 = vmul.f32 %v581, %v675
      %v682 = vmul.f32 %v582, %v675
      %v683 = vmul.f32 %v583, %v675
      %v684 = vmul.f32 %v584, %v675
      %v685 = vmul.f32 %v585, %v675
      %v686 = vmul.f32 %v586, %v675
      %v687 = vmul.f32 %v587, %v675
      %v688 = vmul.f32 %v588, %v675
      %v689 = vmul.f32 %v589, %v675
      %v690 = vmul.f32 %v590, %v675
      %v691 = vmul.f32 %v591, %v675
      %v692 = vadd.f32 %v656, %v676
      %v693 = vadd.f32 %v657, %v677
      %v694 = vadd.f32 %v658, %v678
      %v695 = vadd.f32 %v659, %v679
      %v696 = vadd.f32 %v660, %v680
      %v697 = vadd.f32 %v661, %v681
      %v698 = vadd.f32 %v662, %v682
      %v699 = vadd.f32 %v663, %v683
      %v700 = vadd.f32 %v664, %v684
      %v701 = vadd.f32 %v665, %v685
      %v702 = vadd.f32 %v666, %v686
      %v703 = vadd.f32 %v667, %v687
      %v704 = vadd.f32 %v668, %v688
      %v705 = vadd.f32 %v669, %v689
      %v706 = vadd.f32 %v670, %v690
      %v707 = vadd.f32 %v671, %v691
      %v708 = vlaneseq
      %v709 = vshrl.u32 %v708, 7
      %v710 = vsub.s32 0, %v709
      %v711 = vrot.slane %v568, %v710
      %v712 = vmul.f32 %v578, %v711
      %v713 = vmul.f32 %v579, %v711
      %v714 = vmul.f32 %v580, %v711
      %v715 = vmul.f32 %v581, %v711
      %v716 = vmul.f32 %v582, %v711
      %v717 = vmul.f32 %v583, %v711
      %v718 = vmul.f32 %v584, %v711
      %v719 = vmul.f32 %v585, %v711
      %v720 = vmul.f32 %v586, %v711
      %v721 = vmul.f32 %v587, %v711
      %v722 = vmul.f32 %v588, %v711
      %v723 = vmul.f32 %v589, %v711
      %v724 = vmul.f32 %v590, %v711
      %v725 = vmul.f32 %v591, %v711
      %v726 = vmul.f32 %v592, %v711
      %v727 = vmul.f32 %v593, %v711
      %v728 = vadd.f32 %v692, %v712
      %v729 = vadd.f32 %v693, %v713
      %v730 = vadd.f32 %v694, %v714
      %v731 = vadd.f32 %v695, %v715
      %v732 = vadd.f32 %v696, %v716
      %v733 = vadd.f32 %v697, %v717
      %v734 = vadd.f32 %v698, %v718
      %v735 = vadd.f32 %v699, %v719
      %v736 = vadd.f32 %v700, %v720
      %v737 = vadd.f32 %v701, %v721
      %v738 = vadd.f32 %v702, %v722
      %v739 = vadd.f32 %v703, %v723
      %v740 = vadd.f32 %v704, %v724
      %v741 = vadd.f32 %v705, %v725
      %v742 = vadd.f32 %v706, %v726
      %v743 = vadd.f32 %v707, %v727
      %v744 = vlaneseq
      %v745 = vshrl.u32 %v744, 7
      %v746 = vsub.s32 0, %v745
      %v747 = vrot.slane %v569, %v746
      %v748 = vmul.f32 %v580, %v747
      %v749 = vmul.f32 %v581, %v747
      %v750 = vmul.f32 %v582, %v747
      %v751 = vmul.f32 %v583, %v747
      %v752 = vmul.f32 %v584, %v747
      %v753 = vmul.f32 %v585, %v747
      %v754 = vmul.f32 %v586, %v747
      %v755 = vmul.f32 %v587, %v747
      %v756 = vmul.f32 %v588, %v747
      %v757 = vmul.f32 %v589, %v747
      %v758 = vmul.f32 %v590, %v747
      %v759 = vmul.f32 %v591, %v747
      %v760 = vmul.f32 %v592, %v747
      %v761 = vmul.f32 %v593, %v747
      %v762 = vmul.f32 %v594, %v747
      %v763 = vmul.f32 %v595, %v747
      %v764 = vadd.f32 %v728, %v748
      %v765 = vadd.f32 %v729, %v749
      %v766 = vadd.f32 %v730, %v750
      %v767 = vadd.f32 %v731, %v751
      %v768 = vadd.f32 %v732, %v752
      %v769 = vadd.f32 %v733, %v753
      %v770 = vadd.f32 %v734, %v754
      %v771 = vadd.f32 %v735, %v755
      %v772 = vadd.f32 %v736, %v756
      %v773 = vadd.f32 %v737, %v757
      %v774 = vadd.f32 %v738, %v758
      %v775 = vadd.f32 %v739, %v759
      %v776 = vadd.f32 %v740, %v760
      %v777 = vadd.f32 %v741, %v761
      %v778 = vadd.f32 %v742, %v762
      %v779 = vadd.f32 %v743, %v763
      %v780 = vlaneseq
      %v781 = vshrl.u32 %v780, 7
      %v782 = vsub.s32 0, %v781
      %v783 = vrot.slane %v570, %v782
      %v784 = vmul.f32 %v582, %v783
      %v785 = vmul.f32 %v583, %v783
      %v786 = vmul.f32 %v584, %v783
      %v787 = vmul.f32 %v585, %v783
      %v788 = vmul.f32 %v586, %v783
      %v789 = vmul.f32 %v587, %v783
      %v790 = vmul.f32 %v588, %v783
      %v791 = vmul.f32 %v589, %v783
      %v792 = vmul.f32 %v590, %v783
      %v793 = vmul.f32 %v591, %v783
      %v794 = vmul.f32 %v592, %v783
      %v795 = vmul.f32 %v593, %v783
      %v796 = vmul.f32 %v594, %v783
      %v797 = vmul.f32 %v595, %v783
      %v798 = vmul.f32 %v596, %v783
      %v799 = vmul.f32 %v597, %v783
      %v800 = vadd.f32 %v764, %v784
      %v801 = vadd.f32 %v765, %v785
      %v802 = vadd.f32 %v766, %v786
      %v803 = vadd.f32 %v767, %v787
      %v804 = vadd.f32 %v768, %v788
      %v805 = vadd.f32 %v769, %v789
      %v806 = vadd.f32 %v770, %v790
      %v807 = vadd.f32 %v771, %v791
      %v808 = vadd.f32 %v772, %v792
      %v809 = vadd.f32 %v773, %v793
      %v810 = vadd.f32 %v774, %v794
      %v811 = vadd.f32 %v775, %v795
      %v812 = vadd.f32 %v776, %v796
      %v813 = vadd.f32 %v777, %v797
      %v814 = vadd.f32 %v778, %v798
      %v815 = vadd.f32 %v779, %v799
      %v816 = vlaneseq
      %v817 = vshrl.u32 %v816, 7
      %v818 = vsub.s32 0, %v817
      %v819 = vrot.slane %v571, %v818
      %v820 = vmul.f32 %v584, %v819
      %v821 = vmul.f32 %v585, %v819
      %v822 = vmul.f32 %v586, %v819
      %v823 = vmul.f32 %v587, %v819
      %v824 = vmul.f32 %v588, %v819
      %v825 = vmul.f32 %v589, %v819
      %v826 = vmul.f32 %v590, %v819
      %v827 = vmul.f32 %v591, %v819
      %v828 = vmul.f32 %v592, %v819
      %v829 = vmul.f32 %v593, %v819
      %v830 = vmul.f32 %v594, %v819
      %v831 = vmul.f32 %v595, %v819
      %v832 = vmul.f32 %v596, %v819
      %v833 = vmul.f32 %v597, %v819
      %v834 = vmul.f32 %v598, %v819
      %v835 = vmul.f32 %v599, %v819
      %v836 = vadd.f32 %v800, %v820
      %v837 = vadd.f32 %v801, %v821
      %v838 = vadd.f32 %v802, %v822
      %v839 = vadd.f32 %v803, %v823
      %v840 = vadd.f32 %v804, %v824
      %v841 = vadd.f32 %v805, %v825
      %v842 = vadd.f32 %v806, %v826
      %v843 = vadd.f32 %v807, %v827
      %v844 = vadd.f32 %v808, %v828
      %v845 = vadd.f32 %v809, %v829
      %v846 = vadd.f32 %v810, %v830
      %v847 = vadd.f32 %v811, %v831
      %v848 = vadd.f32 %v812, %v832
      %v849 = vadd.f32 %v813, %v833
      %v850 = vadd.f32 %v814, %v834
      %v851 = vadd.f32 %v815, %v835
      %v852 = vld [vmem:[#allocation2 + $0x1] sm:$0xff]
      %v853 = vld [vmem:[#allocation2 + $0x9] sm:$0xff]
      %v854 = vld [vmem:[#allocation2 + $0x19] sm:$0xff]
      %v855 = vld [vmem:[#allocation2 + $0x21] sm:$0xff]
      %v856 = vld [vmem:[#allocation2 + $0x31] sm:$0xff]
      %v857 = vld [vmem:[#allocation2 + $0x39] sm:$0xff]
      %v858 = vld [vmem:[#allocation2 + $0x49] sm:$0xff]
      %v859 = vld [vmem:[#allocation2 + $0x51] sm:$0xff]
      %v860 = vld [vmem:[#allocation2 + $0x61] sm:$0xff]
      %v861 = vld [vmem:[#allocation2 + $0x69] sm:$0xff]
      %v862 = vld [vmem:[#allocation2 + $0x79] sm:$0xff]
      %v863 = vld [vmem:[#allocation2 + $0x81] sm:$0xff]
      %v864 = vld [vmem:[#allocation2 + $0x91] sm:$0xff]
      %v865 = vld [vmem:[#allocation2 + $0x99] sm:$0xff]
      %v866 = vld [vmem:[#allocation2 + $0xa9] sm:$0xff]
      %v867 = vld [vmem:[#allocation2 + $0xb1] sm:$0xff]
      %v868 = vld [vmem:[#allocation2 + $0xc1] sm:$0xff]
      %v869 = vld [vmem:[#allocation2 + $0xc9] sm:$0xff]
      %v870 = vld [vmem:[#allocation2 + $0xd9] sm:$0xff]
      %v871 = vld [vmem:[#allocation2 + $0xe1] sm:$0xff]
      %v872 = vld [vmem:[#allocation2 + $0xf1] sm:$0xff]
      %v873 = vld [vmem:[#allocation2 + $0xf9] sm:$0xff]
      %v874 = vld [vmem:[#allocation2 + $0x109] sm:$0xff]
      %v875 = vld [vmem:[#allocation2 + $0x111] sm:$0xff]
      %v876 = vld [vmem:[#allocation2 + $0x121] sm:$0xff]
      %v877 = vld [vmem:[#allocation2 + $0x129] sm:$0xff]
      %v878 = vld [vmem:[#allocation2 + $0x139] sm:$0xff]
      %v879 = vld [vmem:[#allocation2 + $0x141] sm:$0xff]
      %v880 = vlaneseq
      %v881 = vshrl.u32 %v880, 7
      %v882 = vsub.s32 1, %v881
      %v883 = vrot.slane %v565, %v882
      %v884 = vmul.f32 %v852, %v883
      %v885 = vmul.f32 %v853, %v883
      %v886 = vmul.f32 %v854, %v883
      %v887 = vmul.f32 %v855, %v883
      %v888 = vmul.f32 %v856, %v883
      %v889 = vmul.f32 %v857, %v883
      %v890 = vmul.f32 %v858, %v883
      %v891 = vmul.f32 %v859, %v883
      %v892 = vmul.f32 %v860, %v883
      %v893 = vmul.f32 %v861, %v883
      %v894 = vmul.f32 %v862, %v883
      %v895 = vmul.f32 %v863, %v883
      %v896 = vmul.f32 %v864, %v883
      %v897 = vmul.f32 %v865, %v883
      %v898 = vmul.f32 %v866, %v883
      %v899 = vmul.f32 %v867, %v883
      %v900 = vadd.f32 %v836, %v884
      %v901 = vadd.f32 %v837, %v885
      %v902 = vadd.f32 %v838, %v886
      %v903 = vadd.f32 %v839, %v887
      %v904 = vadd.f32 %v840, %v888
      %v905 = vadd.f32 %v841, %v889
      %v906 = vadd.f32 %v842, %v890
      %v907 = vadd.f32 %v843, %v891
      %v908 = vadd.f32 %v844, %v892
      %v909 = vadd.f32 %v845, %v893
      %v910 = vadd.f32 %v846, %v894
      %v911 = vadd.f32 %v847, %v895
      %v912 = vadd.f32 %v848, %v896
      %v913 = vadd.f32 %v849, %v897
      %v914 = vadd.f32 %v850, %v898
      %v915 = vadd.f32 %v851, %v899
      %v916 = vlaneseq
      %v917 = vshrl.u32 %v916, 7
      %v918 = vsub.s32 1, %v917
      %v919 = vrot.slane %v566, %v918
      %v920 = vmul.f32 %v854, %v919
      %v921 = vmul.f32 %v855, %v919
      %v922 = vmul.f32 %v856, %v919
      %v923 = vmul.f32 %v857, %v919
      %v924 = vmul.f32 %v858, %v919
      %v925 = vmul.f32 %v859, %v919
      %v926 = vmul.f32 %v860, %v919
      %v927 = vmul.f32 %v861, %v919
      %v928 = vmul.f32 %v862, %v919
      %v929 = vmul.f32 %v863, %v919
      %v930 = vmul.f32 %v864, %v919
      %v931 = vmul.f32 %v865, %v919
      %v932 = vmul.f32 %v866, %v919
      %v933 = vmul.f32 %v867, %v919
      %v934 = vmul.f32 %v868, %v919
      %v935 = vmul.f32 %v869, %v919
      %v936 = vadd.f32 %v900, %v920
      %v937 = vadd.f32 %v901, %v921
      %v938 = vadd.f32 %v902, %v922
      %v939 = vadd.f32 %v903, %v923
      %v940 = vadd.f32 %v904, %v924
      %v941 = vadd.f32 %v905, %v925
      %v942 = vadd.f32 %v906, %v926
      %v943 = vadd.f32 %v907, %v927
      %v944 = vadd.f32 %v908, %v928
      %v945 = vadd.f32 %v909, %v929
      %v946 = vadd.f32 %v910, %v930
      %v947 = vadd.f32 %v911, %v931
      %v948 = vadd.f32 %v912, %v932
      %v949 = vadd.f32 %v913, %v933
      %v950 = vadd.f32 %v914, %v934
      %v951 = vadd.f32 %v915, %v935
      %v952 = vlaneseq
      %v953 = vshrl.u32 %v952, 7
      %v954 = vsub.s32 1, %v953
      %v955 = vrot.slane %v567, %v954
      %v956 = vmul.f32 %v856, %v955
      %v957 = vmul.f32 %v857, %v955
      %v958 = vmul.f32 %v858, %v955
      %v959 = vmul.f32 %v859, %v955
      %v960 = vmul.f32 %v860, %v955
      %v961 = vmul.f32 %v861, %v955
      %v962 = vmul.f32 %v862, %v955
      %v963 = vmul.f32 %v863, %v955
      %v964 = vmul.f32 %v864, %v955
      %v965 = vmul.f32 %v865, %v955
      %v966 = vmul.f32 %v866, %v955
      %v967 = vmul.f32 %v867, %v955
      %v968 = vmul.f32 %v868, %v955
      %v969 = vmul.f32 %v869, %v955
      %v970 = vmul.f32 %v870, %v955
      %v971 = vmul.f32 %v871, %v955
      %v972 = vadd.f32 %v936, %v956
      %v973 = vadd.f32 %v937, %v957
      %v974 = vadd.f32 %v938, %v958
      %v975 = vadd.f32 %v939, %v959
      %v976 = vadd.f32 %v940, %v960
      %v977 = vadd.f32 %v941, %v961
      %v978 = vadd.f32 %v942, %v962
      %v979 = vadd.f32 %v943, %v963
      %v980 = vadd.f32 %v944, %v964
      %v981 = vadd.f32 %v945, %v965
      %v982 = vadd.f32 %v946, %v966
      %v983 = vadd.f32 %v947, %v967
      %v984 = vadd.f32 %v948, %v968
      %v985 = vadd.f32 %v949, %v969
      %v986 = vadd.f32 %v950, %v970
      %v987 = vadd.f32 %v951, %v971
      %v988 = vlaneseq
      %v989 = vshrl.u32 %v988, 7
      %v990 = vsub.s32 1, %v989
      %v991 = vrot.slane %v568, %v990
      %v992 = vmul.f32 %v858, %v991
      %v993 = vmul.f32 %v859, %v991
      %v994 = vmul.f32 %v860, %v991
      %v995 = vmul.f32 %v861, %v991
      %v996 = vmul.f32 %v862, %v991
      %v997 = vmul.f32 %v863, %v991
      %v998 = vmul.f32 %v864, %v991
      %v999 = vmul.f32 %v865, %v991
      %v1000 = vmul.f32 %v866, %v991
      %v1001 = vmul.f32 %v867, %v991
      %v1002 = vmul.f32 %v868, %v991
      %v1003 = vmul.f32 %v869, %v991
      %v1004 = vmul.f32 %v870, %v991
      %v1005 = vmul.f32 %v871, %v991
      %v1006 = vmul.f32 %v872, %v991
      %v1007 = vmul.f32 %v873, %v991
      %v1008 = vadd.f32 %v972, %v992
      %v1009 = vadd.f32 %v973, %v993
      %v1010 = vadd.f32 %v974, %v994
      %v1011 = vadd.f32 %v975, %v995
      %v1012 = vadd.f32 %v976, %v996
      %v1013 = vadd.f32 %v977, %v997
      %v1014 = vadd.f32 %v978, %v998
      %v1015 = vadd.f32 %v979, %v999
      %v1016 = vadd.f32 %v980, %v1000
      %v1017 = vadd.f32 %v981, %v1001
      %v1018 = vadd.f32 %v982, %v1002
      %v1019 = vadd.f32 %v983, %v1003
      %v1020 = vadd.f32 %v984, %v1004
      %v1021 = vadd.f32 %v985, %v1005
      %v1022 = vadd.f32 %v986, %v1006
      %v1023 = vadd.f32 %v987, %v1007
      %v1024 = vlaneseq
      %v1025 = vshrl.u32 %v1024, 7
      %v1026 = vsub.s32 1, %v1025
      %v1027 = vrot.slane %v569, %v1026
      %v1028 = vmul.f32 %v860, %v1027
      %v1029 = vmul.f32 %v861, %v1027
      %v1030 = vmul.f32 %v862, %v1027
      %v1031 = vmul.f32 %v863, %v1027
      %v1032 = vmul.f32 %v864, %v1027
      %v1033 = vmul.f32 %v865, %v1027
      %v1034 = vmul.f32 %v866, %v1027
      %v1035 = vmul.f32 %v867, %v1027
      %v1036 = vmul.f32 %v868, %v1027
      %v1037 = vmul.f32 %v869, %v1027
      %v1038 = vmul.f32 %v870, %v1027
      %v1039 = vmul.f32 %v871, %v1027
      %v1040 = vmul.f32 %v872, %v1027
      %v1041 = vmul.f32 %v873, %v1027
      %v1042 = vmul.f32 %v874, %v1027
      %v1043 = vmul.f32 %v875, %v1027
      %v1044 = vadd.f32 %v1008, %v1028
      %v1045 = vadd.f32 %v1009, %v1029
      %v1046 = vadd.f32 %v1010, %v1030
      %v1047 = vadd.f32 %v1011, %v1031
      %v1048 = vadd.f32 %v1012, %v1032
      %v1049 = vadd.f32 %v1013, %v1033
      %v1050 = vadd.f32 %v1014, %v1034
      %v1051 = vadd.f32 %v1015, %v1035
      %v1052 = vadd.f32 %v1016, %v1036
      %v1053 = vadd.f32 %v1017, %v1037
      %v1054 = vadd.f32 %v1018, %v1038
      %v1055 = vadd.f32 %v1019, %v1039
      %v1056 = vadd.f32 %v1020, %v1040
      %v1057 = vadd.f32 %v1021, %v1041
      %v1058 = vadd.f32 %v1022, %v1042
      %v1059 = vadd.f32 %v1023, %v1043
      %v1060 = vlaneseq
      %v1061 = vshrl.u32 %v1060, 7
      %v1062 = vsub.s32 1, %v1061
      %v1063 = vrot.slane %v570, %v1062
      %v1064 = vmul.f32 %v862, %v1063
      %v1065 = vmul.f32 %v863, %v1063
      %v1066 = vmul.f32 %v864, %v1063
      %v1067 = vmul.f32 %v865, %v1063
      %v1068 = vmul.f32 %v866, %v1063
      %v1069 = vmul.f32 %v867, %v1063
      %v1070 = vmul.f32 %v868, %v1063
      %v1071 = vmul.f32 %v869, %v1063
      %v1072 = vmul.f32 %v870, %v1063
      %v1073 = vmul.f32 %v871, %v1063
      %v1074 = vmul.f32 %v872, %v1063
      %v1075 = vmul.f32 %v873, %v1063
      %v1076 = vmul.f32 %v874, %v1063
      %v1077 = vmul.f32 %v875, %v1063
      %v1078 = vmul.f32 %v876, %v1063
      %v1079 = vmul.f32 %v877, %v1063
      %v1080 = vadd.f32 %v1044, %v1064
      %v1081 = vadd.f32 %v1045, %v1065
      %v1082 = vadd.f32 %v1046, %v1066
      %v1083 = vadd.f32 %v1047, %v1067
      %v1084 = vadd.f32 %v1048, %v1068
      %v1085 = vadd.f32 %v1049, %v1069
      %v1086 = vadd.f32 %v1050, %v1070
      %v1087 = vadd.f32 %v1051, %v1071
      %v1088 = vadd.f32 %v1052, %v1072
      %v1089 = vadd.f32 %v1053, %v1073
      %v1090 = vadd.f32 %v1054, %v1074
      %v1091 = vadd.f32 %v1055, %v1075
      %v1092 = vadd.f32 %v1056, %v1076
      %v1093 = vadd.f32 %v1057, %v1077
      %v1094 = vadd.f32 %v1058, %v1078
      %v1095 = vadd.f32 %v1059, %v1079
      %v1096 = vlaneseq
      %v1097 = vshrl.u32 %v1096, 7
      %v1098 = vsub.s32 1, %v1097
      %v1099 = vrot.slane %v571, %v1098
      %v1100 = vmul.f32 %v864, %v1099
      %v1101 = vmul.f32 %v865, %v1099
      %v1102 = vmul.f32 %v866, %v1099
      %v1103 = vmul.f32 %v867, %v1099
      %v1104 = vmul.f32 %v868, %v1099
      %v1105 = vmul.f32 %v869, %v1099
      %v1106 = vmul.f32 %v870, %v1099
      %v1107 = vmul.f32 %v871, %v1099
      %v1108 = vmul.f32 %v872, %v1099
      %v1109 = vmul.f32 %v873, %v1099
      %v1110 = vmul.f32 %v874, %v1099
      %v1111 = vmul.f32 %v875, %v1099
      %v1112 = vmul.f32 %v876, %v1099
      %v1113 = vmul.f32 %v877, %v1099
      %v1114 = vmul.f32 %v878, %v1099
      %v1115 = vmul.f32 %v879, %v1099
      %v1116 = vadd.f32 %v1080, %v1100
      %v1117 = vadd.f32 %v1081, %v1101
      %v1118 = vadd.f32 %v1082, %v1102
      %v1119 = vadd.f32 %v1083, %v1103
      %v1120 = vadd.f32 %v1084, %v1104
      %v1121 = vadd.f32 %v1085, %v1105
      %v1122 = vadd.f32 %v1086, %v1106
      %v1123 = vadd.f32 %v1087, %v1107
      %v1124 = vadd.f32 %v1088, %v1108
      %v1125 = vadd.f32 %v1089, %v1109
      %v1126 = vadd.f32 %v1090, %v1110
      %v1127 = vadd.f32 %v1091, %v1111
      %v1128 = vadd.f32 %v1092, %v1112
      %v1129 = vadd.f32 %v1093, %v1113
      %v1130 = vadd.f32 %v1094, %v1114
      %v1131 = vadd.f32 %v1095, %v1115
      %v1132 = vld [vmem:[#allocation2 + $0x2] sm:$0xff]
      %v1133 = vld [vmem:[#allocation2 + $0xa] sm:$0xff]
      %v1134 = vld [vmem:[#allocation2 + $0x1a] sm:$0xff]
      %v1135 = vld [vmem:[#allocation2 + $0x22] sm:$0xff]
      %v1136 = vld [vmem:[#allocation2 + $0x32] sm:$0xff]
      %v1137 = vld [vmem:[#allocation2 + $0x3a] sm:$0xff]
      %v1138 = vld [vmem:[#allocation2 + $0x4a] sm:$0xff]
      %v1139 = vld [vmem:[#allocation2 + $0x52] sm:$0xff]
      %v1140 = vld [vmem:[#allocation2 + $0x62] sm:$0xff]
      %v1141 = vld [vmem:[#allocation2 + $0x6a] sm:$0xff]
      %v1142 = vld [vmem:[#allocation2 + $0x7a] sm:$0xff]
      %v1143 = vld [vmem:[#allocation2 + $0x82] sm:$0xff]
      %v1144 = vld [vmem:[#allocation2 + $0x92] sm:$0xff]
      %v1145 = vld [vmem:[#allocation2 + $0x9a] sm:$0xff]
      %v1146 = vld [vmem:[#allocation2 + $0xaa] sm:$0xff]
      %v1147 = vld [vmem:[#allocation2 + $0xb2] sm:$0xff]
      %v1148 = vld [vmem:[#allocation2 + $0xc2] sm:$0xff]
      %v1149 = vld [vmem:[#allocation2 + $0xca] sm:$0xff]
      %v1150 = vld [vmem:[#allocation2 + $0xda] sm:$0xff]
      %v1151 = vld [vmem:[#allocation2 + $0xe2] sm:$0xff]
      %v1152 = vld [vmem:[#allocation2 + $0xf2] sm:$0xff]
      %v1153 = vld [vmem:[#allocation2 + $0xfa] sm:$0xff]
      %v1154 = vld [vmem:[#allocation2 + $0x10a] sm:$0xff]
      %v1155 = vld [vmem:[#allocation2 + $0x112] sm:$0xff]
      %v1156 = vld [vmem:[#allocation2 + $0x122] sm:$0xff]
      %v1157 = vld [vmem:[#allocation2 + $0x12a] sm:$0xff]
      %v1158 = vld [vmem:[#allocation2 + $0x13a] sm:$0xff]
      %v1159 = vld [vmem:[#allocation2 + $0x142] sm:$0xff]
      %v1160 = vlaneseq
      %v1161 = vshrl.u32 %v1160, 7
      %v1162 = vsub.s32 2, %v1161
      %v1163 = vrot.slane %v565, %v1162
      %v1164 = vmul.f32 %v1132, %v1163
      %v1165 = vmul.f32 %v1133, %v1163
      %v1166 = vmul.f32 %v1134, %v1163
      %v1167 = vmul.f32 %v1135, %v1163
      %v1168 = vmul.f32 %v1136, %v1163
      %v1169 = vmul.f32 %v1137, %v1163
      %v1170 = vmul.f32 %v1138, %v1163
      %v1171 = vmul.f32 %v1139, %v1163
      %v1172 = vmul.f32 %v1140, %v1163
      %v1173 = vmul.f32 %v1141, %v1163
      %v1174 = vmul.f32 %v1142, %v1163
      %v1175 = vmul.f32 %v1143, %v1163
      %v1176 = vmul.f32 %v1144, %v1163
      %v1177 = vmul.f32 %v1145, %v1163
      %v1178 = vmul.f32 %v1146, %v1163
      %v1179 = vmul.f32 %v1147, %v1163
      %v1180 = vadd.f32 %v1116, %v1164
      %v1181 = vadd.f32 %v1117, %v1165
      %v1182 = vadd.f32 %v1118, %v1166
      %v1183 = vadd.f32 %v1119, %v1167
      %v1184 = vadd.f32 %v1120, %v1168
      %v1185 = vadd.f32 %v1121, %v1169
      %v1186 = vadd.f32 %v1122, %v1170
      %v1187 = vadd.f32 %v1123, %v1171
      %v1188 = vadd.f32 %v1124, %v1172
      %v1189 = vadd.f32 %v1125, %v1173
      %v1190 = vadd.f32 %v1126, %v1174
      %v1191 = vadd.f32 %v1127, %v1175
      %v1192 = vadd.f32 %v1128, %v1176
      %v1193 = vadd.f32 %v1129, %v1177
      %v1194 = vadd.f32 %v1130, %v1178
      %v1195 = vadd.f32 %v1131, %v1179
      %v1196 = vlaneseq
      %v1197 = vshrl.u32 %v1196, 7
      %v1198 = vsub.s32 2, %v1197
      %v1199 = vrot.slane %v566, %v1198
      %v1200 = vmul.f32 %v1134, %v1199
      %v1201 = vmul.f32 %v1135, %v1199
      %v1202 = vmul.f32 %v1136, %v1199
      %v1203 = vmul.f32 %v1137, %v1199
      %v1204 = vmul.f32 %v1138, %v1199
      %v1205 = vmul.f32 %v1139, %v1199
      %v1206 = vmul.f32 %v1140, %v1199
      %v1207 = vmul.f32 %v1141, %v1199
      %v1208 = vmul.f32 %v1142, %v1199
      %v1209 = vmul.f32 %v1143, %v1199
      %v1210 = vmul.f32 %v1144, %v1199
      %v1211 = vmul.f32 %v1145, %v1199
      %v1212 = vmul.f32 %v1146, %v1199
      %v1213 = vmul.f32 %v1147, %v1199
      %v1214 = vmul.f32 %v1148, %v1199
      %v1215 = vmul.f32 %v1149, %v1199
      %v1216 = vadd.f32 %v1180, %v1200
      %v1217 = vadd.f32 %v1181, %v1201
      %v1218 = vadd.f32 %v1182, %v1202
      %v1219 = vadd.f32 %v1183, %v1203
      %v1220 = vadd.f32 %v1184, %v1204
      %v1221 = vadd.f32 %v1185, %v1205
      %v1222 = vadd.f32 %v1186, %v1206
      %v1223 = vadd.f32 %v1187, %v1207
      %v1224 = vadd.f32 %v1188, %v1208
      %v1225 = vadd.f32 %v1189, %v1209
      %v1226 = vadd.f32 %v1190, %v1210
      %v1227 = vadd.f32 %v1191, %v1211
      %v1228 = vadd.f32 %v1192, %v1212
      %v1229 = vadd.f32 %v1193, %v1213
      %v1230 = vadd.f32 %v1194, %v1214
      %v1231 = vadd.f32 %v1195, %v1215
      %v1232 = vlaneseq
      %v1233 = vshrl.u32 %v1232, 7
      %v1234 = vsub.s32 2, %v1233
      %v1235 = vrot.slane %v567, %v1234
      %v1236 = vmul.f32 %v1136, %v1235
      %v1237 = vmul.f32 %v1137, %v1235
      %v1238 = vmul.f32 %v1138, %v1235
      %v1239 = vmul.f32 %v1139, %v1235
      %v1240 = vmul.f32 %v1140, %v1235
      %v1241 = vmul.f32 %v1141, %v1235
      %v1242 = vmul.f32 %v1142, %v1235
      %v1243 = vmul.f32 %v1143, %v1235
      %v1244 = vmul.f32 %v1144, %v1235
      %v1245 = vmul.f32 %v1145, %v1235
      %v1246 = vmul.f32 %v1146, %v1235
      %v1247 = vmul.f32 %v1147, %v1235
      %v1248 = vmul.f32 %v1148, %v1235
      %v1249 = vmul.f32 %v1149, %v1235
      %v1250 = vmul.f32 %v1150, %v1235
      %v1251 = vmul.f32 %v1151, %v1235
      %v1252 = vadd.f32 %v1216, %v1236
      %v1253 = vadd.f32 %v1217, %v1237
      %v1254 = vadd.f32 %v1218, %v1238
      %v1255 = vadd.f32 %v1219, %v1239
      %v1256 = vadd.f32 %v1220, %v1240
      %v1257 = vadd.f32 %v1221, %v1241
      %v1258 = vadd.f32 %v1222, %v1242
      %v1259 = vadd.f32 %v1223, %v1243
      %v1260 = vadd.f32 %v1224, %v1244
      %v1261 = vadd.f32 %v1225, %v1245
      %v1262 = vadd.f32 %v1226, %v1246
      %v1263 = vadd.f32 %v1227, %v1247
      %v1264 = vadd.f32 %v1228, %v1248
      %v1265 = vadd.f32 %v1229, %v1249
      %v1266 = vadd.f32 %v1230, %v1250
      %v1267 = vadd.f32 %v1231, %v1251
      %v1268 = vlaneseq
      %v1269 = vshrl.u32 %v1268, 7
      %v1270 = vsub.s32 2, %v1269
      %v1271 = vrot.slane %v568, %v1270
      %v1272 = vmul.f32 %v1138, %v1271
      %v1273 = vmul.f32 %v1139, %v1271
      %v1274 = vmul.f32 %v1140, %v1271
      %v1275 = vmul.f32 %v1141, %v1271
      %v1276 = vmul.f32 %v1142, %v1271
      %v1277 = vmul.f32 %v1143, %v1271
      %v1278 = vmul.f32 %v1144, %v1271
      %v1279 = vmul.f32 %v1145, %v1271
      %v1280 = vmul.f32 %v1146, %v1271
      %v1281 = vmul.f32 %v1147, %v1271
      %v1282 = vmul.f32 %v1148, %v1271
      %v1283 = vmul.f32 %v1149, %v1271
      %v1284 = vmul.f32 %v1150, %v1271
      %v1285 = vmul.f32 %v1151, %v1271
      %v1286 = vmul.f32 %v1152, %v1271
      %v1287 = vmul.f32 %v1153, %v1271
      %v1288 = vadd.f32 %v1252, %v1272
      %v1289 = vadd.f32 %v1253, %v1273
      %v1290 = vadd.f32 %v1254, %v1274
      %v1291 = vadd.f32 %v1255, %v1275
      %v1292 = vadd.f32 %v1256, %v1276
      %v1293 = vadd.f32 %v1257, %v1277
      %v1294 = vadd.f32 %v1258, %v1278
      %v1295 = vadd.f32 %v1259, %v1279
      %v1296 = vadd.f32 %v1260, %v1280
      %v1297 = vadd.f32 %v1261, %v1281
      %v1298 = vadd.f32 %v1262, %v1282
      %v1299 = vadd.f32 %v1263, %v1283
      %v1300 = vadd.f32 %v1264, %v1284
      %v1301 = vadd.f32 %v1265, %v1285
      %v1302 = vadd.f32 %v1266, %v1286
      %v1303 = vadd.f32 %v1267, %v1287
      %v1304 = vlaneseq
      %v1305 = vshrl.u32 %v1304, 7
      %v1306 = vsub.s32 2, %v1305
      %v1307 = vrot.slane %v569, %v1306
      %v1308 = vmul.f32 %v1140, %v1307
      %v1309 = vmul.f32 %v1141, %v1307
      %v1310 = vmul.f32 %v1142, %v1307
      %v1311 = vmul.f32 %v1143, %v1307
      %v1312 = vmul.f32 %v1144, %v1307
      %v1313 = vmul.f32 %v1145, %v1307
      %v1314 = vmul.f32 %v1146, %v1307
      %v1315 = vmul.f32 %v1147, %v1307
      %v1316 = vmul.f32 %v1148, %v1307
      %v1317 = vmul.f32 %v1149, %v1307
      %v1318 = vmul.f32 %v1150, %v1307
      %v1319 = vmul.f32 %v1151, %v1307
      %v1320 = vmul.f32 %v1152, %v1307
      %v1321 = vmul.f32 %v1153, %v1307
      %v1322 = vmul.f32 %v1154, %v1307
      %v1323 = vmul.f32 %v1155, %v1307
      %v1324 = vadd.f32 %v1288, %v1308
      %v1325 = vadd.f32 %v1289, %v1309
      %v1326 = vadd.f32 %v1290, %v1310
      %v1327 = vadd.f32 %v1291, %v1311
      %v1328 = vadd.f32 %v1292, %v1312
      %v1329 = vadd.f32 %v1293, %v1313
      %v1330 = vadd.f32 %v1294, %v1314
      %v1331 = vadd.f32 %v1295, %v1315
      %v1332 = vadd.f32 %v1296, %v1316
      %v1333 = vadd.f32 %v1297, %v1317
      %v1334 = vadd.f32 %v1298, %v1318
      %v1335 = vadd.f32 %v1299, %v1319
      %v1336 = vadd.f32 %v1300, %v1320
      %v1337 = vadd.f32 %v1301, %v1321
      %v1338 = vadd.f32 %v1302, %v1322
      %v1339 = vadd.f32 %v1303, %v1323
      %v1340 = vlaneseq
      %v1341 = vshrl.u32 %v1340, 7
      %v1342 = vsub.s32 2, %v1341
      %v1343 = vrot.slane %v570, %v1342
      %v1344 = vmul.f32 %v1142, %v1343
      %v1345 = vmul.f32 %v1143, %v1343
      %v1346 = vmul.f32 %v1144, %v1343
      %v1347 = vmul.f32 %v1145, %v1343
      %v1348 = vmul.f32 %v1146, %v1343
      %v1349 = vmul.f32 %v1147, %v1343
      %v1350 = vmul.f32 %v1148, %v1343
      %v1351 = vmul.f32 %v1149, %v1343
      %v1352 = vmul.f32 %v1150, %v1343
      %v1353 = vmul.f32 %v1151, %v1343
      %v1354 = vmul.f32 %v1152, %v1343
      %v1355 = vmul.f32 %v1153, %v1343
      %v1356 = vmul.f32 %v1154, %v1343
      %v1357 = vmul.f32 %v1155, %v1343
      %v1358 = vmul.f32 %v1156, %v1343
      %v1359 = vmul.f32 %v1157, %v1343
      %v1360 = vadd.f32 %v1324, %v1344
      %v1361 = vadd.f32 %v1325, %v1345
      %v1362 = vadd.f32 %v1326, %v1346
      %v1363 = vadd.f32 %v1327, %v1347
      %v1364 = vadd.f32 %v1328, %v1348
      %v1365 = vadd.f32 %v1329, %v1349
      %v1366 = vadd.f32 %v1330, %v1350
      %v1367 = vadd.f32 %v1331, %v1351
      %v1368 = vadd.f32 %v1332, %v1352
      %v1369 = vadd.f32 %v1333, %v1353
      %v1370 = vadd.f32 %v1334, %v1354
      %v1371 = vadd.f32 %v1335, %v1355
      %v1372 = vadd.f32 %v1336, %v1356
      %v1373 = vadd.f32 %v1337, %v1357
      %v1374 = vadd.f32 %v1338, %v1358
      %v1375 = vadd.f32 %v1339, %v1359
      %v1376 = vlaneseq
      %v1377 = vshrl.u32 %v1376, 7
      %v1378 = vsub.s32 2, %v1377
      %v1379 = vrot.slane %v571, %v1378
      %v1380 = vmul.f32 %v1144, %v1379
      %v1381 = vmul.f32 %v1145, %v1379
      %v1382 = vmul.f32 %v1146, %v1379
      %v1383 = vmul.f32 %v1147, %v1379
      %v1384 = vmul.f32 %v1148, %v1379
      %v1385 = vmul.f32 %v1149, %v1379
      %v1386 = vmul.f32 %v1150, %v1379
      %v1387 = vmul.f32 %v1151, %v1379
      %v1388 = vmul.f32 %v1152, %v1379
      %v1389 = vmul.f32 %v1153, %v1379
      %v1390 = vmul.f32 %v1154, %v1379
      %v1391 = vmul.f32 %v1155, %v1379
      %v1392 = vmul.f32 %v1156, %v1379
      %v1393 = vmul.f32 %v1157, %v1379
      %v1394 = vmul.f32 %v1158, %v1379
      %v1395 = vmul.f32 %v1159, %v1379
      %v1396 = vadd.f32 %v1360, %v1380
      %v1397 = vadd.f32 %v1361, %v1381
      %v1398 = vadd.f32 %v1362, %v1382
      %v1399 = vadd.f32 %v1363, %v1383
      %v1400 = vadd.f32 %v1364, %v1384
      %v1401 = vadd.f32 %v1365, %v1385
      %v1402 = vadd.f32 %v1366, %v1386
      %v1403 = vadd.f32 %v1367, %v1387
      %v1404 = vadd.f32 %v1368, %v1388
      %v1405 = vadd.f32 %v1369, %v1389
      %v1406 = vadd.f32 %v1370, %v1390
      %v1407 = vadd.f32 %v1371, %v1391
      %v1408 = vadd.f32 %v1372, %v1392
      %v1409 = vadd.f32 %v1373, %v1393
      %v1410 = vadd.f32 %v1374, %v1394
      %v1411 = vadd.f32 %v1375, %v1395
      %v1412 = vld [vmem:[#allocation2 + $0x3] sm:$0xff]
      %v1413 = vld [vmem:[#allocation2 + $0xb] sm:$0xff]
      %v1414 = vld [vmem:[#allocation2 + $0x1b] sm:$0xff]
      %v1415 = vld [vmem:[#allocation2 + $0x23] sm:$0xff]
      %v1416 = vld [vmem:[#allocation2 + $0x33] sm:$0xff]
      %v1417 = vld [vmem:[#allocation2 + $0x3b] sm:$0xff]
      %v1418 = vld [vmem:[#allocation2 + $0x4b] sm:$0xff]
      %v1419 = vld [vmem:[#allocation2 + $0x53] sm:$0xff]
      %v1420 = vld [vmem:[#allocation2 + $0x63] sm:$0xff]
      %v1421 = vld [vmem:[#allocation2 + $0x6b] sm:$0xff]
      %v1422 = vld [vmem:[#allocation2 + $0x7b] sm:$0xff]
      %v1423 = vld [vmem:[#allocation2 + $0x83] sm:$0xff]
      %v1424 = vld [vmem:[#allocation2 + $0x93] sm:$0xff]
      %v1425 = vld [vmem:[#allocation2 + $0x9b] sm:$0xff]
      %v1426 = vld [vmem:[#allocation2 + $0xab] sm:$0xff]
      %v1427 = vld [vmem:[#allocation2 + $0xb3] sm:$0xff]
      %v1428 = vld [vmem:[#allocation2 + $0xc3] sm:$0xff]
      %v1429 = vld [vmem:[#allocation2 + $0xcb] sm:$0xff]
      %v1430 = vld [vmem:[#allocation2 + $0xdb] sm:$0xff]
      %v1431 = vld [vmem:[#allocation2 + $0xe3] sm:$0xff]
      %v1432 = vld [vmem:[#allocation2 + $0xf3] sm:$0xff]
      %v1433 = vld [vmem:[#allocation2 + $0xfb] sm:$0xff]
      %v1434 = vld [vmem:[#allocation2 + $0x10b] sm:$0xff]
      %v1435 = vld [vmem:[#allocation2 + $0x113] sm:$0xff]
      %v1436 = vld [vmem:[#allocation2 + $0x123] sm:$0xff]
      %v1437 = vld [vmem:[#allocation2 + $0x12b] sm:$0xff]
      %v1438 = vld [vmem:[#allocation2 + $0x13b] sm:$0xff]
      %v1439 = vld [vmem:[#allocation2 + $0x143] sm:$0xff]
      %v1440 = vlaneseq
      %v1441 = vshrl.u32 %v1440, 7
      %v1442 = vsub.s32 3, %v1441
      %v1443 = vrot.slane %v565, %v1442
      %v1444 = vmul.f32 %v1412, %v1443
      %v1445 = vmul.f32 %v1413, %v1443
      %v1446 = vmul.f32 %v1414, %v1443
      %v1447 = vmul.f32 %v1415, %v1443
      %v1448 = vmul.f32 %v1416, %v1443
      %v1449 = vmul.f32 %v1417, %v1443
      %v1450 = vmul.f32 %v1418, %v1443
      %v1451 = vmul.f32 %v1419, %v1443
      %v1452 = vmul.f32 %v1420, %v1443
      %v1453 = vmul.f32 %v1421, %v1443
      %v1454 = vmul.f32 %v1422, %v1443
      %v1455 = vmul.f32 %v1423, %v1443
      %v1456 = vmul.f32 %v1424, %v1443
      %v1457 = vmul.f32 %v1425, %v1443
      %v1458 = vmul.f32 %v1426, %v1443
      %v1459 = vmul.f32 %v1427, %v1443
      %v1460 = vadd.f32 %v1396, %v1444
      %v1461 = vadd.f32 %v1397, %v1445
      %v1462 = vadd.f32 %v1398, %v1446
      %v1463 = vadd.f32 %v1399, %v1447
      %v1464 = vadd.f32 %v1400, %v1448
      %v1465 = vadd.f32 %v1401, %v1449
      %v1466 = vadd.f32 %v1402, %v1450
      %v1467 = vadd.f32 %v1403, %v1451
      %v1468 = vadd.f32 %v1404, %v1452
      %v1469 = vadd.f32 %v1405, %v1453
      %v1470 = vadd.f32 %v1406, %v1454
      %v1471 = vadd.f32 %v1407, %v1455
      %v1472 = vadd.f32 %v1408, %v1456
      %v1473 = vadd.f32 %v1409, %v1457
      %v1474 = vadd.f32 %v1410, %v1458
      %v1475 = vadd.f32 %v1411, %v1459
      %v1476 = vlaneseq
      %v1477 = vshrl.u32 %v1476, 7
      %v1478 = vsub.s32 3, %v1477
      %v1479 = vrot.slane %v566, %v1478
      %v1480 = vmul.f32 %v1414, %v1479
      %v1481 = vmul.f32 %v1415, %v1479
      %v1482 = vmul.f32 %v1416, %v1479
      %v1483 = vmul.f32 %v1417, %v1479
      %v1484 = vmul.f32 %v1418, %v1479
      %v1485 = vmul.f32 %v1419, %v1479
      %v1486 = vmul.f32 %v1420, %v1479
      %v1487 = vmul.f32 %v1421, %v1479
      %v1488 = vmul.f32 %v1422, %v1479
      %v1489 = vmul.f32 %v1423, %v1479
      %v1490 = vmul.f32 %v1424, %v1479
      %v1491 = vmul.f32 %v1425, %v1479
      %v1492 = vmul.f32 %v1426, %v1479
      %v1493 = vmul.f32 %v1427, %v1479
      %v1494 = vmul.f32 %v1428, %v1479
      %v1495 = vmul.f32 %v1429, %v1479
      %v1496 = vadd.f32 %v1460, %v1480
      %v1497 = vadd.f32 %v1461, %v1481
      %v1498 = vadd.f32 %v1462, %v1482
      %v1499 = vadd.f32 %v1463, %v1483
      %v1500 = vadd.f32 %v1464, %v1484
      %v1501 = vadd.f32 %v1465, %v1485
      %v1502 = vadd.f32 %v1466, %v1486
      %v1503 = vadd.f32 %v1467, %v1487
      %v1504 = vadd.f32 %v1468, %v1488
      %v1505 = vadd.f32 %v1469, %v1489
      %v1506 = vadd.f32 %v1470, %v1490
      %v1507 = vadd.f32 %v1471, %v1491
      %v1508 = vadd.f32 %v1472, %v1492
      %v1509 = vadd.f32 %v1473, %v1493
      %v1510 = vadd.f32 %v1474, %v1494
      %v1511 = vadd.f32 %v1475, %v1495
      %v1512 = vlaneseq
      %v1513 = vshrl.u32 %v1512, 7
      %v1514 = vsub.s32 3, %v1513
      %v1515 = vrot.slane %v567, %v1514
      %v1516 = vmul.f32 %v1416, %v1515
      %v1517 = vmul.f32 %v1417, %v1515
      %v1518 = vmul.f32 %v1418, %v1515
      %v1519 = vmul.f32 %v1419, %v1515
      %v1520 = vmul.f32 %v1420, %v1515
      %v1521 = vmul.f32 %v1421, %v1515
      %v1522 = vmul.f32 %v1422, %v1515
      %v1523 = vmul.f32 %v1423, %v1515
      %v1524 = vmul.f32 %v1424, %v1515
      %v1525 = vmul.f32 %v1425, %v1515
      %v1526 = vmul.f32 %v1426, %v1515
      %v1527 = vmul.f32 %v1427, %v1515
      %v1528 = vmul.f32 %v1428, %v1515
      %v1529 = vmul.f32 %v1429, %v1515
      %v1530 = vmul.f32 %v1430, %v1515
      %v1531 = vmul.f32 %v1431, %v1515
      %v1532 = vadd.f32 %v1496, %v1516
      %v1533 = vadd.f32 %v1497, %v1517
      %v1534 = vadd.f32 %v1498, %v1518
      %v1535 = vadd.f32 %v1499, %v1519
      %v1536 = vadd.f32 %v1500, %v1520
      %v1537 = vadd.f32 %v1501, %v1521
      %v1538 = vadd.f32 %v1502, %v1522
      %v1539 = vadd.f32 %v1503, %v1523
      %v1540 = vadd.f32 %v1504, %v1524
      %v1541 = vadd.f32 %v1505, %v1525
      %v1542 = vadd.f32 %v1506, %v1526
      %v1543 = vadd.f32 %v1507, %v1527
      %v1544 = vadd.f32 %v1508, %v1528
      %v1545 = vadd.f32 %v1509, %v1529
      %v1546 = vadd.f32 %v1510, %v1530
      %v1547 = vadd.f32 %v1511, %v1531
      %v1548 = vlaneseq
      %v1549 = vshrl.u32 %v1548, 7
      %v1550 = vsub.s32 3, %v1549
      %v1551 = vrot.slane %v568, %v1550
      %v1552 = vmul.f32 %v1418, %v1551
      %v1553 = vmul.f32 %v1419, %v1551
      %v1554 = vmul.f32 %v1420, %v1551
      %v1555 = vmul.f32 %v1421, %v1551
      %v1556 = vmul.f32 %v1422, %v1551
      %v1557 = vmul.f32 %v1423, %v1551
      %v1558 = vmul.f32 %v1424, %v1551
      %v1559 = vmul.f32 %v1425, %v1551
      %v1560 = vmul.f32 %v1426, %v1551
      %v1561 = vmul.f32 %v1427, %v1551
      %v1562 = vmul.f32 %v1428, %v1551
      %v1563 = vmul.f32 %v1429, %v1551
      %v1564 = vmul.f32 %v1430, %v1551
      %v1565 = vmul.f32 %v1431, %v1551
      %v1566 = vmul.f32 %v1432, %v1551
      %v1567 = vmul.f32 %v1433, %v1551
      %v1568 = vadd.f32 %v1532, %v1552
      %v1569 = vadd.f32 %v1533, %v1553
      %v1570 = vadd.f32 %v1534, %v1554
      %v1571 = vadd.f32 %v1535, %v1555
      %v1572 = vadd.f32 %v1536, %v1556
      %v1573 = vadd.f32 %v1537, %v1557
      %v1574 = vadd.f32 %v1538, %v1558
      %v1575 = vadd.f32 %v1539, %v1559
      %v1576 = vadd.f32 %v1540, %v1560
      %v1577 = vadd.f32 %v1541, %v1561
      %v1578 = vadd.f32 %v1542, %v1562
      %v1579 = vadd.f32 %v1543, %v1563
      %v1580 = vadd.f32 %v1544, %v1564
      %v1581 = vadd.f32 %v1545, %v1565
      %v1582 = vadd.f32 %v1546, %v1566
      %v1583 = vadd.f32 %v1547, %v1567
      %v1584 = vlaneseq
      %v1585 = vshrl.u32 %v1584, 7
      %v1586 = vsub.s32 3, %v1585
      %v1587 = vrot.slane %v569, %v1586
      %v1588 = vmul.f32 %v1420, %v1587
      %v1589 = vmul.f32 %v1421, %v1587
      %v1590 = vmul.f32 %v1422, %v1587
      %v1591 = vmul.f32 %v1423, %v1587
      %v1592 = vmul.f32 %v1424, %v1587
      %v1593 = vmul.f32 %v1425, %v1587
      %v1594 = vmul.f32 %v1426, %v1587
      %v1595 = vmul.f32 %v1427, %v1587
      %v1596 = vmul.f32 %v1428, %v1587
      %v1597 = vmul.f32 %v1429, %v1587
      %v1598 = vmul.f32 %v1430, %v1587
      %v1599 = vmul.f32 %v1431, %v1587
      %v1600 = vmul.f32 %v1432, %v1587
      %v1601 = vmul.f32 %v1433, %v1587
      %v1602 = vmul.f32 %v1434, %v1587
      %v1603 = vmul.f32 %v1435, %v1587
      %v1604 = vadd.f32 %v1568, %v1588
      %v1605 = vadd.f32 %v1569, %v1589
      %v1606 = vadd.f32 %v1570, %v1590
      %v1607 = vadd.f32 %v1571, %v1591
      %v1608 = vadd.f32 %v1572, %v1592
      %v1609 = vadd.f32 %v1573, %v1593
      %v1610 = vadd.f32 %v1574, %v1594
      %v1611 = vadd.f32 %v1575, %v1595
      %v1612 = vadd.f32 %v1576, %v1596
      %v1613 = vadd.f32 %v1577, %v1597
      %v1614 = vadd.f32 %v1578, %v1598
      %v1615 = vadd.f32 %v1579, %v1599
      %v1616 = vadd.f32 %v1580, %v1600
      %v1617 = vadd.f32 %v1581, %v1601
      %v1618 = vadd.f32 %v1582, %v1602
      %v1619 = vadd.f32 %v1583, %v1603
      %v1620 = vlaneseq
      %v1621 = vshrl.u32 %v1620, 7
      %v1622 = vsub.s32 3, %v1621
      %v1623 = vrot.slane %v570, %v1622
      %v1624 = vmul.f32 %v1422, %v1623
      %v1625 = vmul.f32 %v1423, %v1623
      %v1626 = vmul.f32 %v1424, %v1623
      %v1627 = vmul.f32 %v1425, %v1623
      %v1628 = vmul.f32 %v1426, %v1623
      %v1629 = vmul.f32 %v1427, %v1623
      %v1630 = vmul.f32 %v1428, %v1623
      %v1631 = vmul.f32 %v1429, %v1623
      %v1632 = vmul.f32 %v1430, %v1623
      %v1633 = vmul.f32 %v1431, %v1623
      %v1634 = vmul.f32 %v1432, %v1623
      %v1635 = vmul.f32 %v1433, %v1623
      %v1636 = vmul.f32 %v1434, %v1623
      %v1637 = vmul.f32 %v1435, %v1623
      %v1638 = vmul.f32 %v1436, %v1623
      %v1639 = vmul.f32 %v1437, %v1623
      %v1640 = vadd.f32 %v1604, %v1624
      %v1641 = vadd.f32 %v1605, %v1625
      %v1642 = vadd.f32 %v1606, %v1626
      %v1643 = vadd.f32 %v1607, %v1627
      %v1644 = vadd.f32 %v1608, %v1628
      %v1645 = vadd.f32 %v1609, %v1629
      %v1646 = vadd.f32 %v1610, %v1630
      %v1647 = vadd.f32 %v1611, %v1631
      %v1648 = vadd.f32 %v1612, %v1632
      %v1649 = vadd.f32 %v1613, %v1633
      %v1650 = vadd.f32 %v1614, %v1634
      %v1651 = vadd.f32 %v1615, %v1635
      %v1652 = vadd.f32 %v1616, %v1636
      %v1653 = vadd.f32 %v1617, %v1637
      %v1654 = vadd.f32 %v1618, %v1638
      %v1655 = vadd.f32 %v1619, %v1639
      %v1656 = vlaneseq
      %v1657 = vshrl.u32 %v1656, 7
      %v1658 = vsub.s32 3, %v1657
      %v1659 = vrot.slane %v571, %v1658
      %v1660 = vmul.f32 %v1424, %v1659
      %v1661 = vmul.f32 %v1425, %v1659
      %v1662 = vmul.f32 %v1426, %v1659
      %v1663 = vmul.f32 %v1427, %v1659
      %v1664 = vmul.f32 %v1428, %v1659
      %v1665 = vmul.f32 %v1429, %v1659
      %v1666 = vmul.f32 %v1430, %v1659
      %v1667 = vmul.f32 %v1431, %v1659
      %v1668 = vmul.f32 %v1432, %v1659
      %v1669 = vmul.f32 %v1433, %v1659
      %v1670 = vmul.f32 %v1434, %v1659
      %v1671 = vmul.f32 %v1435, %v1659
      %v1672 = vmul.f32 %v1436, %v1659
      %v1673 = vmul.f32 %v1437, %v1659
      %v1674 = vmul.f32 %v1438, %v1659
      %v1675 = vmul.f32 %v1439, %v1659
      %v1676 = vadd.f32 %v1640, %v1660
      %v1677 = vadd.f32 %v1641, %v1661
      %v1678 = vadd.f32 %v1642, %v1662
      %v1679 = vadd.f32 %v1643, %v1663
      %v1680 = vadd.f32 %v1644, %v1664
      %v1681 = vadd.f32 %v1645, %v1665
      %v1682 = vadd.f32 %v1646, %v1666
      %v1683 = vadd.f32 %v1647, %v1667
      %v1684 = vadd.f32 %v1648, %v1668
      %v1685 = vadd.f32 %v1649, %v1669
      %v1686 = vadd.f32 %v1650, %v1670
      %v1687 = vadd.f32 %v1651, %v1671
      %v1688 = vadd.f32 %v1652, %v1672
      %v1689 = vadd.f32 %v1653, %v1673
      %v1690 = vadd.f32 %v1654, %v1674
      %v1691 = vadd.f32 %v1655, %v1675
      %v1692 = vld [vmem:[#allocation2 + $0x4] sm:$0xff]
      %v1693 = vld [vmem:[#allocation2 + $0xc] sm:$0xff]
      %v1694 = vld [vmem:[#allocation2 + $0x1c] sm:$0xff]
      %v1695 = vld [vmem:[#allocation2 + $0x24] sm:$0xff]
      %v1696 = vld [vmem:[#allocation2 + $0x34] sm:$0xff]
      %v1697 = vld [vmem:[#allocation2 + $0x3c] sm:$0xff]
      %v1698 = vld [vmem:[#allocation2 + $0x4c] sm:$0xff]
      %v1699 = vld [vmem:[#allocation2 + $0x54] sm:$0xff]
      %v1700 = vld [vmem:[#allocation2 + $0x64] sm:$0xff]
      %v1701 = vld [vmem:[#allocation2 + $0x6c] sm:$0xff]
      %v1702 = vld [vmem:[#allocation2 + $0x7c] sm:$0xff]
      %v1703 = vld [vmem:[#allocation2 + $0x84] sm:$0xff]
      %v1704 = vld [vmem:[#allocation2 + $0x94] sm:$0xff]
      %v1705 = vld [vmem:[#allocation2 + $0x9c] sm:$0xff]
      %v1706 = vld [vmem:[#allocation2 + $0xac] sm:$0xff]
      %v1707 = vld [vmem:[#allocation2 + $0xb4] sm:$0xff]
      %v1708 = vld [vmem:[#allocation2 + $0xc4] sm:$0xff]
      %v1709 = vld [vmem:[#allocation2 + $0xcc] sm:$0xff]
      %v1710 = vld [vmem:[#allocation2 + $0xdc] sm:$0xff]
      %v1711 = vld [vmem:[#allocation2 + $0xe4] sm:$0xff]
      %v1712 = vld [vmem:[#allocation2 + $0xf4] sm:$0xff]
      %v1713 = vld [vmem:[#allocation2 + $0xfc] sm:$0xff]
      %v1714 = vld [vmem:[#allocation2 + $0x10c] sm:$0xff]
      %v1715 = vld [vmem:[#allocation2 + $0x114] sm:$0xff]
      %v1716 = vld [vmem:[#allocation2 + $0x124] sm:$0xff]
      %v1717 = vld [vmem:[#allocation2 + $0x12c] sm:$0xff]
      %v1718 = vld [vmem:[#allocation2 + $0x13c] sm:$0xff]
      %v1719 = vld [vmem:[#allocation2 + $0x144] sm:$0xff]
      %v1720 = vlaneseq
      %v1721 = vshrl.u32 %v1720, 7
      %v1722 = vsub.s32 4, %v1721
      %v1723 = vrot.slane %v565, %v1722
      %v1724 = vmul.f32 %v1692, %v1723
      %v1725 = vmul.f32 %v1693, %v1723
      %v1726 = vmul.f32 %v1694, %v1723
      %v1727 = vmul.f32 %v1695, %v1723
      %v1728 = vmul.f32 %v1696, %v1723
      %v1729 = vmul.f32 %v1697, %v1723
      %v1730 = vmul.f32 %v1698, %v1723
      %v1731 = vmul.f32 %v1699, %v1723
      %v1732 = vmul.f32 %v1700, %v1723
      %v1733 = vmul.f32 %v1701, %v1723
      %v1734 = vmul.f32 %v1702, %v1723
      %v1735 = vmul.f32 %v1703, %v1723
      %v1736 = vmul.f32 %v1704, %v1723
      %v1737 = vmul.f32 %v1705, %v1723
      %v1738 = vmul.f32 %v1706, %v1723
      %v1739 = vmul.f32 %v1707, %v1723
      %v1740 = vadd.f32 %v1676, %v1724
      %v1741 = vadd.f32 %v1677, %v1725
      %v1742 = vadd.f32 %v1678, %v1726
      %v1743 = vadd.f32 %v1679, %v1727
      %v1744 = vadd.f32 %v1680, %v1728
      %v1745 = vadd.f32 %v1681, %v1729
      %v1746 = vadd.f32 %v1682, %v1730
      %v1747 = vadd.f32 %v1683, %v1731
      %v1748 = vadd.f32 %v1684, %v1732
      %v1749 = vadd.f32 %v1685, %v1733
      %v1750 = vadd.f32 %v1686, %v1734
      %v1751 = vadd.f32 %v1687, %v1735
      %v1752 = vadd.f32 %v1688, %v1736
      %v1753 = vadd.f32 %v1689, %v1737
      %v1754 = vadd.f32 %v1690, %v1738
      %v1755 = vadd.f32 %v1691, %v1739
      %v1756 = vlaneseq
      %v1757 = vshrl.u32 %v1756, 7
      %v1758 = vsub.s32 4, %v1757
      %v1759 = vrot.slane %v566, %v1758
      %v1760 = vmul.f32 %v1694, %v1759
      %v1761 = vmul.f32 %v1695, %v1759
      %v1762 = vmul.f32 %v1696, %v1759
      %v1763 = vmul.f32 %v1697, %v1759
      %v1764 = vmul.f32 %v1698, %v1759
      %v1765 = vmul.f32 %v1699, %v1759
      %v1766 = vmul.f32 %v1700, %v1759
      %v1767 = vmul.f32 %v1701, %v1759
      %v1768 = vmul.f32 %v1702, %v1759
      %v1769 = vmul.f32 %v1703, %v1759
      %v1770 = vmul.f32 %v1704, %v1759
      %v1771 = vmul.f32 %v1705, %v1759
      %v1772 = vmul.f32 %v1706, %v1759
      %v1773 = vmul.f32 %v1707, %v1759
      %v1774 = vmul.f32 %v1708, %v1759
      %v1775 = vmul.f32 %v1709, %v1759
      %v1776 = vadd.f32 %v1740, %v1760
      %v1777 = vadd.f32 %v1741, %v1761
      %v1778 = vadd.f32 %v1742, %v1762
      %v1779 = vadd.f32 %v1743, %v1763
      %v1780 = vadd.f32 %v1744, %v1764
      %v1781 = vadd.f32 %v1745, %v1765
      %v1782 = vadd.f32 %v1746, %v1766
      %v1783 = vadd.f32 %v1747, %v1767
      %v1784 = vadd.f32 %v1748, %v1768
      %v1785 = vadd.f32 %v1749, %v1769
      %v1786 = vadd.f32 %v1750, %v1770
      %v1787 = vadd.f32 %v1751, %v1771
      %v1788 = vadd.f32 %v1752, %v1772
      %v1789 = vadd.f32 %v1753, %v1773
      %v1790 = vadd.f32 %v1754, %v1774
      %v1791 = vadd.f32 %v1755, %v1775
      %v1792 = vlaneseq
      %v1793 = vshrl.u32 %v1792, 7
      %v1794 = vsub.s32 4, %v1793
      %v1795 = vrot.slane %v567, %v1794
      %v1796 = vmul.f32 %v1696, %v1795
      %v1797 = vmul.f32 %v1697, %v1795
      %v1798 = vmul.f32 %v1698, %v1795
      %v1799 = vmul.f32 %v1699, %v1795
      %v1800 = vmul.f32 %v1700, %v1795
      %v1801 = vmul.f32 %v1701, %v1795
      %v1802 = vmul.f32 %v1702, %v1795
      %v1803 = vmul.f32 %v1703, %v1795
      %v1804 = vmul.f32 %v1704, %v1795
      %v1805 = vmul.f32 %v1705, %v1795
      %v1806 = vmul.f32 %v1706, %v1795
      %v1807 = vmul.f32 %v1707, %v1795
      %v1808 = vmul.f32 %v1708, %v1795
      %v1809 = vmul.f32 %v1709, %v1795
      %v1810 = vmul.f32 %v1710, %v1795
      %v1811 = vmul.f32 %v1711, %v1795
      %v1812 = vadd.f32 %v1776, %v1796
      %v1813 = vadd.f32 %v1777, %v1797
      %v1814 = vadd.f32 %v1778, %v1798
      %v1815 = vadd.f32 %v1779, %v1799
      %v1816 = vadd.f32 %v1780, %v1800
      %v1817 = vadd.f32 %v1781, %v1801
      %v1818 = vadd.f32 %v1782, %v1802
      %v1819 = vadd.f32 %v1783, %v1803
      %v1820 = vadd.f32 %v1784, %v1804
      %v1821 = vadd.f32 %v1785, %v1805
      %v1822 = vadd.f32 %v1786, %v1806
      %v1823 = vadd.f32 %v1787, %v1807
      %v1824 = vadd.f32 %v1788, %v1808
      %v1825 = vadd.f32 %v1789, %v1809
      %v1826 = vadd.f32 %v1790, %v1810
      %v1827 = vadd.f32 %v1791, %v1811
      %v1828 = vlaneseq
      %v1829 = vshrl.u32 %v1828, 7
      %v1830 = vsub.s32 4, %v1829
      %v1831 = vrot.slane %v568, %v1830
      %v1832 = vmul.f32 %v1698, %v1831
      %v1833 = vmul.f32 %v1699, %v1831
      %v1834 = vmul.f32 %v1700, %v1831
      %v1835 = vmul.f32 %v1701, %v1831
      %v1836 = vmul.f32 %v1702, %v1831
      %v1837 = vmul.f32 %v1703, %v1831
      %v1838 = vmul.f32 %v1704, %v1831
      %v1839 = vmul.f32 %v1705, %v1831
      %v1840 = vmul.f32 %v1706, %v1831
      %v1841 = vmul.f32 %v1707, %v1831
      %v1842 = vmul.f32 %v1708, %v1831
      %v1843 = vmul.f32 %v1709, %v1831
      %v1844 = vmul.f32 %v1710, %v1831
      %v1845 = vmul.f32 %v1711, %v1831
      %v1846 = vmul.f32 %v1712, %v1831
      %v1847 = vmul.f32 %v1713, %v1831
      %v1848 = vadd.f32 %v1812, %v1832
      %v1849 = vadd.f32 %v1813, %v1833
      %v1850 = vadd.f32 %v1814, %v1834
      %v1851 = vadd.f32 %v1815, %v1835
      %v1852 = vadd.f32 %v1816, %v1836
      %v1853 = vadd.f32 %v1817, %v1837
      %v1854 = vadd.f32 %v1818, %v1838
      %v1855 = vadd.f32 %v1819, %v1839
      %v1856 = vadd.f32 %v1820, %v1840
      %v1857 = vadd.f32 %v1821, %v1841
      %v1858 = vadd.f32 %v1822, %v1842
      %v1859 = vadd.f32 %v1823, %v1843
      %v1860 = vadd.f32 %v1824, %v1844
      %v1861 = vadd.f32 %v1825, %v1845
      %v1862 = vadd.f32 %v1826, %v1846
      %v1863 = vadd.f32 %v1827, %v1847
      %v1864 = vlaneseq
      %v1865 = vshrl.u32 %v1864, 7
      %v1866 = vsub.s32 4, %v1865
      %v1867 = vrot.slane %v569, %v1866
      %v1868 = vmul.f32 %v1700, %v1867
      %v1869 = vmul.f32 %v1701, %v1867
      %v1870 = vmul.f32 %v1702, %v1867
      %v1871 = vmul.f32 %v1703, %v1867
      %v1872 = vmul.f32 %v1704, %v1867
      %v1873 = vmul.f32 %v1705, %v1867
      %v1874 = vmul.f32 %v1706, %v1867
      %v1875 = vmul.f32 %v1707, %v1867
      %v1876 = vmul.f32 %v1708, %v1867
      %v1877 = vmul.f32 %v1709, %v1867
      %v1878 = vmul.f32 %v1710, %v1867
      %v1879 = vmul.f32 %v1711, %v1867
      %v1880 = vmul.f32 %v1712, %v1867
      %v1881 = vmul.f32 %v1713, %v1867
      %v1882 = vmul.f32 %v1714, %v1867
      %v1883 = vmul.f32 %v1715, %v1867
      %v1884 = vadd.f32 %v1848, %v1868
      %v1885 = vadd.f32 %v1849, %v1869
      %v1886 = vadd.f32 %v1850, %v1870
      %v1887 = vadd.f32 %v1851, %v1871
      %v1888 = vadd.f32 %v1852, %v1872
      %v1889 = vadd.f32 %v1853, %v1873
      %v1890 = vadd.f32 %v1854, %v1874
      %v1891 = vadd.f32 %v1855, %v1875
      %v1892 = vadd.f32 %v1856, %v1876
      %v1893 = vadd.f32 %v1857, %v1877
      %v1894 = vadd.f32 %v1858, %v1878
      %v1895 = vadd.f32 %v1859, %v1879
      %v1896 = vadd.f32 %v1860, %v1880
      %v1897 = vadd.f32 %v1861, %v1881
      %v1898 = vadd.f32 %v1862, %v1882
      %v1899 = vadd.f32 %v1863, %v1883
      %v1900 = vlaneseq
      %v1901 = vshrl.u32 %v1900, 7
      %v1902 = vsub.s32 4, %v1901
      %v1903 = vrot.slane %v570, %v1902
      %v1904 = vmul.f32 %v1702, %v1903
      %v1905 = vmul.f32 %v1703, %v1903
      %v1906 = vmul.f32 %v1704, %v1903
      %v1907 = vmul.f32 %v1705, %v1903
      %v1908 = vmul.f32 %v1706, %v1903
      %v1909 = vmul.f32 %v1707, %v1903
      %v1910 = vmul.f32 %v1708, %v1903
      %v1911 = vmul.f32 %v1709, %v1903
      %v1912 = vmul.f32 %v1710, %v1903
      %v1913 = vmul.f32 %v1711, %v1903
      %v1914 = vmul.f32 %v1712, %v1903
      %v1915 = vmul.f32 %v1713, %v1903
      %v1916 = vmul.f32 %v1714, %v1903
      %v1917 = vmul.f32 %v1715, %v1903
      %v1918 = vmul.f32 %v1716, %v1903
      %v1919 = vmul.f32 %v1717, %v1903
      %v1920 = vadd.f32 %v1884, %v1904
      %v1921 = vadd.f32 %v1885, %v1905
      %v1922 = vadd.f32 %v1886, %v1906
      %v1923 = vadd.f32 %v1887, %v1907
      %v1924 = vadd.f32 %v1888, %v1908
      %v1925 = vadd.f32 %v1889, %v1909
      %v1926 = vadd.f32 %v1890, %v1910
      %v1927 = vadd.f32 %v1891, %v1911
      %v1928 = vadd.f32 %v1892, %v1912
      %v1929 = vadd.f32 %v1893, %v1913
      %v1930 = vadd.f32 %v1894, %v1914
      %v1931 = vadd.f32 %v1895, %v1915
      %v1932 = vadd.f32 %v1896, %v1916
      %v1933 = vadd.f32 %v1897, %v1917
      %v1934 = vadd.f32 %v1898, %v1918
      %v1935 = vadd.f32 %v1899, %v1919
      %v1936 = vlaneseq
      %v1937 = vshrl.u32 %v1936, 7
      %v1938 = vsub.s32 4, %v1937
      %v1939 = vrot.slane %v571, %v1938
      %v1940 = vmul.f32 %v1704, %v1939
      %v1941 = vmul.f32 %v1705, %v1939
      %v1942 = vmul.f32 %v1706, %v1939
      %v1943 = vmul.f32 %v1707, %v1939
      %v1944 = vmul.f32 %v1708, %v1939
      %v1945 = vmul.f32 %v1709, %v1939
      %v1946 = vmul.f32 %v1710, %v1939
      %v1947 = vmul.f32 %v1711, %v1939
      %v1948 = vmul.f32 %v1712, %v1939
      %v1949 = vmul.f32 %v1713, %v1939
      %v1950 = vmul.f32 %v1714, %v1939
      %v1951 = vmul.f32 %v1715, %v1939
      %v1952 = vmul.f32 %v1716, %v1939
      %v1953 = vmul.f32 %v1717, %v1939
      %v1954 = vmul.f32 %v1718, %v1939
      %v1955 = vmul.f32 %v1719, %v1939
      %v1956 = vadd.f32 %v1920, %v1940
      %v1957 = vadd.f32 %v1921, %v1941
      %v1958 = vadd.f32 %v1922, %v1942
      %v1959 = vadd.f32 %v1923, %v1943
      %v1960 = vadd.f32 %v1924, %v1944
      %v1961 = vadd.f32 %v1925, %v1945
      %v1962 = vadd.f32 %v1926, %v1946
      %v1963 = vadd.f32 %v1927, %v1947
      %v1964 = vadd.f32 %v1928, %v1948
      %v1965 = vadd.f32 %v1929, %v1949
      %v1966 = vadd.f32 %v1930, %v1950
      %v1967 = vadd.f32 %v1931, %v1951
      %v1968 = vadd.f32 %v1932, %v1952
      %v1969 = vadd.f32 %v1933, %v1953
      %v1970 = vadd.f32 %v1934, %v1954
      %v1971 = vadd.f32 %v1935, %v1955
      %v1972 = vld [vmem:[#allocation2 + $0x5] sm:$0xff]
      %v1973 = vld [vmem:[#allocation2 + $0xd] sm:$0xff]
      %v1974 = vld [vmem:[#allocation2 + $0x1d] sm:$0xff]
      %v1975 = vld [vmem:[#allocation2 + $0x25] sm:$0xff]
      %v1976 = vld [vmem:[#allocation2 + $0x35] sm:$0xff]
      %v1977 = vld [vmem:[#allocation2 + $0x3d] sm:$0xff]
      %v1978 = vld [vmem:[#allocation2 + $0x4d] sm:$0xff]
      %v1979 = vld [vmem:[#allocation2 + $0x55] sm:$0xff]
      %v1980 = vld [vmem:[#allocation2 + $0x65] sm:$0xff]
      %v1981 = vld [vmem:[#allocation2 + $0x6d] sm:$0xff]
      %v1982 = vld [vmem:[#allocation2 + $0x7d] sm:$0xff]
      %v1983 = vld [vmem:[#allocation2 + $0x85] sm:$0xff]
      %v1984 = vld [vmem:[#allocation2 + $0x95] sm:$0xff]
      %v1985 = vld [vmem:[#allocation2 + $0x9d] sm:$0xff]
      %v1986 = vld [vmem:[#allocation2 + $0xad] sm:$0xff]
      %v1987 = vld [vmem:[#allocation2 + $0xb5] sm:$0xff]
      %v1988 = vld [vmem:[#allocation2 + $0xc5] sm:$0xff]
      %v1989 = vld [vmem:[#allocation2 + $0xcd] sm:$0xff]
      %v1990 = vld [vmem:[#allocation2 + $0xdd] sm:$0xff]
      %v1991 = vld [vmem:[#allocation2 + $0xe5] sm:$0xff]
      %v1992 = vld [vmem:[#allocation2 + $0xf5] sm:$0xff]
      %v1993 = vld [vmem:[#allocation2 + $0xfd] sm:$0xff]
      %v1994 = vld [vmem:[#allocation2 + $0x10d] sm:$0xff]
      %v1995 = vld [vmem:[#allocation2 + $0x115] sm:$0xff]
      %v1996 = vld [vmem:[#allocation2 + $0x125] sm:$0xff]
      %v1997 = vld [vmem:[#allocation2 + $0x12d] sm:$0xff]
      %v1998 = vld [vmem:[#allocation2 + $0x13d] sm:$0xff]
      %v1999 = vld [vmem:[#allocation2 + $0x145] sm:$0xff]
      %v2000 = vlaneseq
      %v2001 = vshrl.u32 %v2000, 7
      %v2002 = vsub.s32 5, %v2001
      %v2003 = vrot.slane %v565, %v2002
      %v2004 = vmul.f32 %v1972, %v2003
      %v2005 = vmul.f32 %v1973, %v2003
      %v2006 = vmul.f32 %v1974, %v2003
      %v2007 = vmul.f32 %v1975, %v2003
      %v2008 = vmul.f32 %v1976, %v2003
      %v2009 = vmul.f32 %v1977, %v2003
      %v2010 = vmul.f32 %v1978, %v2003
      %v2011 = vmul.f32 %v1979, %v2003
      %v2012 = vmul.f32 %v1980, %v2003
      %v2013 = vmul.f32 %v1981, %v2003
      %v2014 = vmul.f32 %v1982, %v2003
      %v2015 = vmul.f32 %v1983, %v2003
      %v2016 = vmul.f32 %v1984, %v2003
      %v2017 = vmul.f32 %v1985, %v2003
      %v2018 = vmul.f32 %v1986, %v2003
      %v2019 = vmul.f32 %v1987, %v2003
      %v2020 = vadd.f32 %v1956, %v2004
      %v2021 = vadd.f32 %v1957, %v2005
      %v2022 = vadd.f32 %v1958, %v2006
      %v2023 = vadd.f32 %v1959, %v2007
      %v2024 = vadd.f32 %v1960, %v2008
      %v2025 = vadd.f32 %v1961, %v2009
      %v2026 = vadd.f32 %v1962, %v2010
      %v2027 = vadd.f32 %v1963, %v2011
      %v2028 = vadd.f32 %v1964, %v2012
      %v2029 = vadd.f32 %v1965, %v2013
      %v2030 = vadd.f32 %v1966, %v2014
      %v2031 = vadd.f32 %v1967, %v2015
      %v2032 = vadd.f32 %v1968, %v2016
      %v2033 = vadd.f32 %v1969, %v2017
      %v2034 = vadd.f32 %v1970, %v2018
      %v2035 = vadd.f32 %v1971, %v2019
      %v2036 = vlaneseq
      %v2037 = vshrl.u32 %v2036, 7
      %v2038 = vsub.s32 5, %v2037
      %v2039 = vrot.slane %v566, %v2038
      %v2040 = vmul.f32 %v1974, %v2039
      %v2041 = vmul.f32 %v1975, %v2039
      %v2042 = vmul.f32 %v1976, %v2039
      %v2043 = vmul.f32 %v1977, %v2039
      %v2044 = vmul.f32 %v1978, %v2039
      %v2045 = vmul.f32 %v1979, %v2039
      %v2046 = vmul.f32 %v1980, %v2039
      %v2047 = vmul.f32 %v1981, %v2039
      %v2048 = vmul.f32 %v1982, %v2039
      %v2049 = vmul.f32 %v1983, %v2039
      %v2050 = vmul.f32 %v1984, %v2039
      %v2051 = vmul.f32 %v1985, %v2039
      %v2052 = vmul.f32 %v1986, %v2039
      %v2053 = vmul.f32 %v1987, %v2039
      %v2054 = vmul.f32 %v1988, %v2039
      %v2055 = vmul.f32 %v1989, %v2039
      %v2056 = vadd.f32 %v2020, %v2040
      %v2057 = vadd.f32 %v2021, %v2041
      %v2058 = vadd.f32 %v2022, %v2042
      %v2059 = vadd.f32 %v2023, %v2043
      %v2060 = vadd.f32 %v2024, %v2044
      %v2061 = vadd.f32 %v2025, %v2045
      %v2062 = vadd.f32 %v2026, %v2046
      %v2063 = vadd.f32 %v2027, %v2047
      %v2064 = vadd.f32 %v2028, %v2048
      %v2065 = vadd.f32 %v2029, %v2049
      %v2066 = vadd.f32 %v2030, %v2050
      %v2067 = vadd.f32 %v2031, %v2051
      %v2068 = vadd.f32 %v2032, %v2052
      %v2069 = vadd.f32 %v2033, %v2053
      %v2070 = vadd.f32 %v2034, %v2054
      %v2071 = vadd.f32 %v2035, %v2055
      %v2072 = vlaneseq
      %v2073 = vshrl.u32 %v2072, 7
      %v2074 = vsub.s32 5, %v2073
      %v2075 = vrot.slane %v567, %v2074
      %v2076 = vmul.f32 %v1976, %v2075
      %v2077 = vmul.f32 %v1977, %v2075
      %v2078 = vmul.f32 %v1978, %v2075
      %v2079 = vmul.f32 %v1979, %v2075
      %v2080 = vmul.f32 %v1980, %v2075
      %v2081 = vmul.f32 %v1981, %v2075
      %v2082 = vmul.f32 %v1982, %v2075
      %v2083 = vmul.f32 %v1983, %v2075
      %v2084 = vmul.f32 %v1984, %v2075
      %v2085 = vmul.f32 %v1985, %v2075
      %v2086 = vmul.f32 %v1986, %v2075
      %v2087 = vmul.f32 %v1987, %v2075
      %v2088 = vmul.f32 %v1988, %v2075
      %v2089 = vmul.f32 %v1989, %v2075
      %v2090 = vmul.f32 %v1990, %v2075
      %v2091 = vmul.f32 %v1991, %v2075
      %v2092 = vadd.f32 %v2056, %v2076
      %v2093 = vadd.f32 %v2057, %v2077
      %v2094 = vadd.f32 %v2058, %v2078
      %v2095 = vadd.f32 %v2059, %v2079
      %v2096 = vadd.f32 %v2060, %v2080
      %v2097 = vadd.f32 %v2061, %v2081
      %v2098 = vadd.f32 %v2062, %v2082
      %v2099 = vadd.f32 %v2063, %v2083
      %v2100 = vadd.f32 %v2064, %v2084
      %v2101 = vadd.f32 %v2065, %v2085
      %v2102 = vadd.f32 %v2066, %v2086
      %v2103 = vadd.f32 %v2067, %v2087
      %v2104 = vadd.f32 %v2068, %v2088
      %v2105 = vadd.f32 %v2069, %v2089
      %v2106 = vadd.f32 %v2070, %v2090
      %v2107 = vadd.f32 %v2071, %v2091
      %v2108 = vlaneseq
      %v2109 = vshrl.u32 %v2108, 7
      %v2110 = vsub.s32 5, %v2109
      %v2111 = vrot.slane %v568, %v2110
      %v2112 = vmul.f32 %v1978, %v2111
      %v2113 = vmul.f32 %v1979, %v2111
      %v2114 = vmul.f32 %v1980, %v2111
      %v2115 = vmul.f32 %v1981, %v2111
      %v2116 = vmul.f32 %v1982, %v2111
      %v2117 = vmul.f32 %v1983, %v2111
      %v2118 = vmul.f32 %v1984, %v2111
      %v2119 = vmul.f32 %v1985, %v2111
      %v2120 = vmul.f32 %v1986, %v2111
      %v2121 = vmul.f32 %v1987, %v2111
      %v2122 = vmul.f32 %v1988, %v2111
      %v2123 = vmul.f32 %v1989, %v2111
      %v2124 = vmul.f32 %v1990, %v2111
      %v2125 = vmul.f32 %v1991, %v2111
      %v2126 = vmul.f32 %v1992, %v2111
      %v2127 = vmul.f32 %v1993, %v2111
      %v2128 = vadd.f32 %v2092, %v2112
      %v2129 = vadd.f32 %v2093, %v2113
      %v2130 = vadd.f32 %v2094, %v2114
      %v2131 = vadd.f32 %v2095, %v2115
      %v2132 = vadd.f32 %v2096, %v2116
      %v2133 = vadd.f32 %v2097, %v2117
      %v2134 = vadd.f32 %v2098, %v2118
      %v2135 = vadd.f32 %v2099, %v2119
      %v2136 = vadd.f32 %v2100, %v2120
      %v2137 = vadd.f32 %v2101, %v2121
      %v2138 = vadd.f32 %v2102, %v2122
      %v2139 = vadd.f32 %v2103, %v2123
      %v2140 = vadd.f32 %v2104, %v2124
      %v2141 = vadd.f32 %v2105, %v2125
      %v2142 = vadd.f32 %v2106, %v2126
      %v2143 = vadd.f32 %v2107, %v2127
      %v2144 = vlaneseq
      %v2145 = vshrl.u32 %v2144, 7
      %v2146 = vsub.s32 5, %v2145
      %v2147 = vrot.slane %v569, %v2146
      %v2148 = vmul.f32 %v1980, %v2147
      %v2149 = vmul.f32 %v1981, %v2147
      %v2150 = vmul.f32 %v1982, %v2147
      %v2151 = vmul.f32 %v1983, %v2147
      %v2152 = vmul.f32 %v1984, %v2147
      %v2153 = vmul.f32 %v1985, %v2147
      %v2154 = vmul.f32 %v1986, %v2147
      %v2155 = vmul.f32 %v1987, %v2147
      %v2156 = vmul.f32 %v1988, %v2147
      %v2157 = vmul.f32 %v1989, %v2147
      %v2158 = vmul.f32 %v1990, %v2147
      %v2159 = vmul.f32 %v1991, %v2147
      %v2160 = vmul.f32 %v1992, %v2147
      %v2161 = vmul.f32 %v1993, %v2147
      %v2162 = vmul.f32 %v1994, %v2147
      %v2163 = vmul.f32 %v1995, %v2147
      %v2164 = vadd.f32 %v2128, %v2148
      %v2165 = vadd.f32 %v2129, %v2149
      %v2166 = vadd.f32 %v2130, %v2150
      %v2167 = vadd.f32 %v2131, %v2151
      %v2168 = vadd.f32 %v2132, %v2152
      %v2169 = vadd.f32 %v2133, %v2153
      %v2170 = vadd.f32 %v2134, %v2154
      %v2171 = vadd.f32 %v2135, %v2155
      %v2172 = vadd.f32 %v2136, %v2156
      %v2173 = vadd.f32 %v2137, %v2157
      %v2174 = vadd.f32 %v2138, %v2158
      %v2175 = vadd.f32 %v2139, %v2159
      %v2176 = vadd.f32 %v2140, %v2160
      %v2177 = vadd.f32 %v2141, %v2161
      %v2178 = vadd.f32 %v2142, %v2162
      %v2179 = vadd.f32 %v2143, %v2163
      %v2180 = vlaneseq
      %v2181 = vshrl.u32 %v2180, 7
      %v2182 = vsub.s32 5, %v2181
      %v2183 = vrot.slane %v570, %v2182
      %v2184 = vmul.f32 %v1982, %v2183
      %v2185 = vmul.f32 %v1983, %v2183
      %v2186 = vmul.f32 %v1984, %v2183
      %v2187 = vmul.f32 %v1985, %v2183
      %v2188 = vmul.f32 %v1986, %v2183
      %v2189 = vmul.f32 %v1987, %v2183
      %v2190 = vmul.f32 %v1988, %v2183
      %v2191 = vmul.f32 %v1989, %v2183
      %v2192 = vmul.f32 %v1990, %v2183
      %v2193 = vmul.f32 %v1991, %v2183
      %v2194 = vmul.f32 %v1992, %v2183
      %v2195 = vmul.f32 %v1993, %v2183
      %v2196 = vmul.f32 %v1994, %v2183
      %v2197 = vmul.f32 %v1995, %v2183
      %v2198 = vmul.f32 %v1996, %v2183
      %v2199 = vmul.f32 %v1997, %v2183
      %v2200 = vadd.f32 %v2164, %v2184
      %v2201 = vadd.f32 %v2165, %v2185
      %v2202 = vadd.f32 %v2166, %v2186
      %v2203 = vadd.f32 %v2167, %v2187
      %v2204 = vadd.f32 %v2168, %v2188
      %v2205 = vadd.f32 %v2169, %v2189
      %v2206 = vadd.f32 %v2170, %v2190
      %v2207 = vadd.f32 %v2171, %v2191
      %v2208 = vadd.f32 %v2172, %v2192
      %v2209 = vadd.f32 %v2173, %v2193
      %v2210 = vadd.f32 %v2174, %v2194
      %v2211 = vadd.f32 %v2175, %v2195
      %v2212 = vadd.f32 %v2176, %v2196
      %v2213 = vadd.f32 %v2177, %v2197
      %v2214 = vadd.f32 %v2178, %v2198
      %v2215 = vadd.f32 %v2179, %v2199
      %v2216 = vlaneseq
      %v2217 = vshrl.u32 %v2216, 7
      %v2218 = vsub.s32 5, %v2217
      %v2219 = vrot.slane %v571, %v2218
      %v2220 = vmul.f32 %v1984, %v2219
      %v2221 = vmul.f32 %v1985, %v2219
      %v2222 = vmul.f32 %v1986, %v2219
      %v2223 = vmul.f32 %v1987, %v2219
      %v2224 = vmul.f32 %v1988, %v2219
      %v2225 = vmul.f32 %v1989, %v2219
      %v2226 = vmul.f32 %v1990, %v2219
      %v2227 = vmul.f32 %v1991, %v2219
      %v2228 = vmul.f32 %v1992, %v2219
      %v2229 = vmul.f32 %v1993, %v2219
      %v2230 = vmul.f32 %v1994, %v2219
      %v2231 = vmul.f32 %v1995, %v2219
      %v2232 = vmul.f32 %v1996, %v2219
      %v2233 = vmul.f32 %v1997, %v2219
      %v2234 = vmul.f32 %v1998, %v2219
      %v2235 = vmul.f32 %v1999, %v2219
      %v2236 = vadd.f32 %v2200, %v2220
      %v2237 = vadd.f32 %v2201, %v2221
      %v2238 = vadd.f32 %v2202, %v2222
      %v2239 = vadd.f32 %v2203, %v2223
      %v2240 = vadd.f32 %v2204, %v2224
      %v2241 = vadd.f32 %v2205, %v2225
      %v2242 = vadd.f32 %v2206, %v2226
      %v2243 = vadd.f32 %v2207, %v2227
      %v2244 = vadd.f32 %v2208, %v2228
      %v2245 = vadd.f32 %v2209, %v2229
      %v2246 = vadd.f32 %v2210, %v2230
      %v2247 = vadd.f32 %v2211, %v2231
      %v2248 = vadd.f32 %v2212, %v2232
      %v2249 = vadd.f32 %v2213, %v2233
      %v2250 = vadd.f32 %v2214, %v2234
      %v2251 = vadd.f32 %v2215, %v2235
      %v2252 = vld [vmem:[#allocation2 + $0x6] sm:$0xff]
      %v2253 = vld [vmem:[#allocation2 + $0xe] sm:$0xff]
      %v2254 = vld [vmem:[#allocation2 + $0x1e] sm:$0xff]
      %v2255 = vld [vmem:[#allocation2 + $0x26] sm:$0xff]
      %v2256 = vld [vmem:[#allocation2 + $0x36] sm:$0xff]
      %v2257 = vld [vmem:[#allocation2 + $0x3e] sm:$0xff]
      %v2258 = vld [vmem:[#allocation2 + $0x4e] sm:$0xff]
      %v2259 = vld [vmem:[#allocation2 + $0x56] sm:$0xff]
      %v2260 = vld [vmem:[#allocation2 + $0x66] sm:$0xff]
      %v2261 = vld [vmem:[#allocation2 + $0x6e] sm:$0xff]
      %v2262 = vld [vmem:[#allocation2 + $0x7e] sm:$0xff]
      %v2263 = vld [vmem:[#allocation2 + $0x86] sm:$0xff]
      %v2264 = vld [vmem:[#allocation2 + $0x96] sm:$0xff]
      %v2265 = vld [vmem:[#allocation2 + $0x9e] sm:$0xff]
      %v2266 = vld [vmem:[#allocation2 + $0xae] sm:$0xff]
      %v2267 = vld [vmem:[#allocation2 + $0xb6] sm:$0xff]
      %v2268 = vld [vmem:[#allocation2 + $0xc6] sm:$0xff]
      %v2269 = vld [vmem:[#allocation2 + $0xce] sm:$0xff]
      %v2270 = vld [vmem:[#allocation2 + $0xde] sm:$0xff]
      %v2271 = vld [vmem:[#allocation2 + $0xe6] sm:$0xff]
      %v2272 = vld [vmem:[#allocation2 + $0xf6] sm:$0xff]
      %v2273 = vld [vmem:[#allocation2 + $0xfe] sm:$0xff]
      %v2274 = vld [vmem:[#allocation2 + $0x10e] sm:$0xff]
      %v2275 = vld [vmem:[#allocation2 + $0x116] sm:$0xff]
      %v2276 = vld [vmem:[#allocation2 + $0x126] sm:$0xff]
      %v2277 = vld [vmem:[#allocation2 + $0x12e] sm:$0xff]
      %v2278 = vld [vmem:[#allocation2 + $0x13e] sm:$0xff]
      %v2279 = vld [vmem:[#allocation2 + $0x146] sm:$0xff]
      %v2280 = vlaneseq
      %v2281 = vshrl.u32 %v2280, 7
      %v2282 = vsub.s32 6, %v2281
      %v2283 = vrot.slane %v565, %v2282
      %v2284 = vmul.f32 %v2252, %v2283
      %v2285 = vmul.f32 %v2253, %v2283
      %v2286 = vmul.f32 %v2254, %v2283
      %v2287 = vmul.f32 %v2255, %v2283
      %v2288 = vmul.f32 %v2256, %v2283
      %v2289 = vmul.f32 %v2257, %v2283
      %v2290 = vmul.f32 %v2258, %v2283
      %v2291 = vmul.f32 %v2259, %v2283
      %v2292 = vmul.f32 %v2260, %v2283
      %v2293 = vmul.f32 %v2261, %v2283
      %v2294 = vmul.f32 %v2262, %v2283
      %v2295 = vmul.f32 %v2263, %v2283
      %v2296 = vmul.f32 %v2264, %v2283
      %v2297 = vmul.f32 %v2265, %v2283
      %v2298 = vmul.f32 %v2266, %v2283
      %v2299 = vmul.f32 %v2267, %v2283
      %v2300 = vadd.f32 %v2236, %v2284
      %v2301 = vadd.f32 %v2237, %v2285
      %v2302 = vadd.f32 %v2238, %v2286
      %v2303 = vadd.f32 %v2239, %v2287
      %v2304 = vadd.f32 %v2240, %v2288
      %v2305 = vadd.f32 %v2241, %v2289
      %v2306 = vadd.f32 %v2242, %v2290
      %v2307 = vadd.f32 %v2243, %v2291
      %v2308 = vadd.f32 %v2244, %v2292
      %v2309 = vadd.f32 %v2245, %v2293
      %v2310 = vadd.f32 %v2246, %v2294
      %v2311 = vadd.f32 %v2247, %v2295
      %v2312 = vadd.f32 %v2248, %v2296
      %v2313 = vadd.f32 %v2249, %v2297
      %v2314 = vadd.f32 %v2250, %v2298
      %v2315 = vadd.f32 %v2251, %v2299
      %v2316 = vlaneseq
      %v2317 = vshrl.u32 %v2316, 7
      %v2318 = vsub.s32 6, %v2317
      %v2319 = vrot.slane %v566, %v2318
      %v2320 = vmul.f32 %v2254, %v2319
      %v2321 = vmul.f32 %v2255, %v2319
      %v2322 = vmul.f32 %v2256, %v2319
      %v2323 = vmul.f32 %v2257, %v2319
      %v2324 = vmul.f32 %v2258, %v2319
      %v2325 = vmul.f32 %v2259, %v2319
      %v2326 = vmul.f32 %v2260, %v2319
      %v2327 = vmul.f32 %v2261, %v2319
      %v2328 = vmul.f32 %v2262, %v2319
      %v2329 = vmul.f32 %v2263, %v2319
      %v2330 = vmul.f32 %v2264, %v2319
      %v2331 = vmul.f32 %v2265, %v2319
      %v2332 = vmul.f32 %v2266, %v2319
      %v2333 = vmul.f32 %v2267, %v2319
      %v2334 = vmul.f32 %v2268, %v2319
      %v2335 = vmul.f32 %v2269, %v2319
      %v2336 = vadd.f32 %v2300, %v2320
      %v2337 = vadd.f32 %v2301, %v2321
      %v2338 = vadd.f32 %v2302, %v2322
      %v2339 = vadd.f32 %v2303, %v2323
      %v2340 = vadd.f32 %v2304, %v2324
      %v2341 = vadd.f32 %v2305, %v2325
      %v2342 = vadd.f32 %v2306, %v2326
      %v2343 = vadd.f32 %v2307, %v2327
      %v2344 = vadd.f32 %v2308, %v2328
      %v2345 = vadd.f32 %v2309, %v2329
      %v2346 = vadd.f32 %v2310, %v2330
      %v2347 = vadd.f32 %v2311, %v2331
      %v2348 = vadd.f32 %v2312, %v2332
      %v2349 = vadd.f32 %v2313, %v2333
      %v2350 = vadd.f32 %v2314, %v2334
      %v2351 = vadd.f32 %v2315, %v2335
      %v2352 = vlaneseq
      %v2353 = vshrl.u32 %v2352, 7
      %v2354 = vsub.s32 6, %v2353
      %v2355 = vrot.slane %v567, %v2354
      %v2356 = vmul.f32 %v2256, %v2355
      %v2357 = vmul.f32 %v2257, %v2355
      %v2358 = vmul.f32 %v2258, %v2355
      %v2359 = vmul.f32 %v2259, %v2355
      %v2360 = vmul.f32 %v2260, %v2355
      %v2361 = vmul.f32 %v2261, %v2355
      %v2362 = vmul.f32 %v2262, %v2355
      %v2363 = vmul.f32 %v2263, %v2355
      %v2364 = vmul.f32 %v2264, %v2355
      %v2365 = vmul.f32 %v2265, %v2355
      %v2366 = vmul.f32 %v2266, %v2355
      %v2367 = vmul.f32 %v2267, %v2355
      %v2368 = vmul.f32 %v2268, %v2355
      %v2369 = vmul.f32 %v2269, %v2355
      %v2370 = vmul.f32 %v2270, %v2355
      %v2371 = vmul.f32 %v2271, %v2355
      %v2372 = vadd.f32 %v2336, %v2356
      %v2373 = vadd.f32 %v2337, %v2357
      %v2374 = vadd.f32 %v2338, %v2358
      %v2375 = vadd.f32 %v2339, %v2359
      %v2376 = vadd.f32 %v2340, %v2360
      %v2377 = vadd.f32 %v2341, %v2361
      %v2378 = vadd.f32 %v2342, %v2362
      %v2379 = vadd.f32 %v2343, %v2363
      %v2380 = vadd.f32 %v2344, %v2364
      %v2381 = vadd.f32 %v2345, %v2365
      %v2382 = vadd.f32 %v2346, %v2366
      %v2383 = vadd.f32 %v2347, %v2367
      %v2384 = vadd.f32 %v2348, %v2368
      %v2385 = vadd.f32 %v2349, %v2369
      %v2386 = vadd.f32 %v2350, %v2370
      %v2387 = vadd.f32 %v2351, %v2371
      %v2388 = vlaneseq
      %v2389 = vshrl.u32 %v2388, 7
      %v2390 = vsub.s32 6, %v2389
      %v2391 = vrot.slane %v568, %v2390
      %v2392 = vmul.f32 %v2258, %v2391
      %v2393 = vmul.f32 %v2259, %v2391
      %v2394 = vmul.f32 %v2260, %v2391
      %v2395 = vmul.f32 %v2261, %v2391
      %v2396 = vmul.f32 %v2262, %v2391
      %v2397 = vmul.f32 %v2263, %v2391
      %v2398 = vmul.f32 %v2264, %v2391
      %v2399 = vmul.f32 %v2265, %v2391
      %v2400 = vmul.f32 %v2266, %v2391
      %v2401 = vmul.f32 %v2267, %v2391
      %v2402 = vmul.f32 %v2268, %v2391
      %v2403 = vmul.f32 %v2269, %v2391
      %v2404 = vmul.f32 %v2270, %v2391
      %v2405 = vmul.f32 %v2271, %v2391
      %v2406 = vmul.f32 %v2272, %v2391
      %v2407 = vmul.f32 %v2273, %v2391
      %v2408 = vadd.f32 %v2372, %v2392
      %v2409 = vadd.f32 %v2373, %v2393
      %v2410 = vadd.f32 %v2374, %v2394
      %v2411 = vadd.f32 %v2375, %v2395
      %v2412 = vadd.f32 %v2376, %v2396
      %v2413 = vadd.f32 %v2377, %v2397
      %v2414 = vadd.f32 %v2378, %v2398
      %v2415 = vadd.f32 %v2379, %v2399
      %v2416 = vadd.f32 %v2380, %v2400
      %v2417 = vadd.f32 %v2381, %v2401
      %v2418 = vadd.f32 %v2382, %v2402
      %v2419 = vadd.f32 %v2383, %v2403
      %v2420 = vadd.f32 %v2384, %v2404
      %v2421 = vadd.f32 %v2385, %v2405
      %v2422 = vadd.f32 %v2386, %v2406
      %v2423 = vadd.f32 %v2387, %v2407
      %v2424 = vlaneseq
      %v2425 = vshrl.u32 %v2424, 7
      %v2426 = vsub.s32 6, %v2425
      %v2427 = vrot.slane %v569, %v2426
      %v2428 = vmul.f32 %v2260, %v2427
      %v2429 = vmul.f32 %v2261, %v2427
      %v2430 = vmul.f32 %v2262, %v2427
      %v2431 = vmul.f32 %v2263, %v2427
      %v2432 = vmul.f32 %v2264, %v2427
      %v2433 = vmul.f32 %v2265, %v2427
      %v2434 = vmul.f32 %v2266, %v2427
      %v2435 = vmul.f32 %v2267, %v2427
      %v2436 = vmul.f32 %v2268, %v2427
      %v2437 = vmul.f32 %v2269, %v2427
      %v2438 = vmul.f32 %v2270, %v2427
      %v2439 = vmul.f32 %v2271, %v2427
      %v2440 = vmul.f32 %v2272, %v2427
      %v2441 = vmul.f32 %v2273, %v2427
      %v2442 = vmul.f32 %v2274, %v2427
      %v2443 = vmul.f32 %v2275, %v2427
      %v2444 = vadd.f32 %v2408, %v2428
      %v2445 = vadd.f32 %v2409, %v2429
      %v2446 = vadd.f32 %v2410, %v2430
      %v2447 = vadd.f32 %v2411, %v2431
      %v2448 = vadd.f32 %v2412, %v2432
      %v2449 = vadd.f32 %v2413, %v2433
      %v2450 = vadd.f32 %v2414, %v2434
      %v2451 = vadd.f32 %v2415, %v2435
      %v2452 = vadd.f32 %v2416, %v2436
      %v2453 = vadd.f32 %v2417, %v2437
      %v2454 = vadd.f32 %v2418, %v2438
      %v2455 = vadd.f32 %v2419, %v2439
      %v2456 = vadd.f32 %v2420, %v2440
      %v2457 = vadd.f32 %v2421, %v2441
      %v2458 = vadd.f32 %v2422, %v2442
      %v2459 = vadd.f32 %v2423, %v2443
      %v2460 = vlaneseq
      %v2461 = vshrl.u32 %v2460, 7
      %v2462 = vsub.s32 6, %v2461
      %v2463 = vrot.slane %v570, %v2462
      %v2464 = vmul.f32 %v2262, %v2463
      %v2465 = vmul.f32 %v2263, %v2463
      %v2466 = vmul.f32 %v2264, %v2463
      %v2467 = vmul.f32 %v2265, %v2463
      %v2468 = vmul.f32 %v2266, %v2463
      %v2469 = vmul.f32 %v2267, %v2463
      %v2470 = vmul.f32 %v2268, %v2463
      %v2471 = vmul.f32 %v2269, %v2463
      %v2472 = vmul.f32 %v2270, %v2463
      %v2473 = vmul.f32 %v2271, %v2463
      %v2474 = vmul.f32 %v2272, %v2463
      %v2475 = vmul.f32 %v2273, %v2463
      %v2476 = vmul.f32 %v2274, %v2463
      %v2477 = vmul.f32 %v2275, %v2463
      %v2478 = vmul.f32 %v2276, %v2463
      %v2479 = vmul.f32 %v2277, %v2463
      %v2480 = vadd.f32 %v2444, %v2464
      %v2481 = vadd.f32 %v2445, %v2465
      %v2482 = vadd.f32 %v2446, %v2466
      %v2483 = vadd.f32 %v2447, %v2467
      %v2484 = vadd.f32 %v2448, %v2468
      %v2485 = vadd.f32 %v2449, %v2469
      %v2486 = vadd.f32 %v2450, %v2470
      %v2487 = vadd.f32 %v2451, %v2471
      %v2488 = vadd.f32 %v2452, %v2472
      %v2489 = vadd.f32 %v2453, %v2473
      %v2490 = vadd.f32 %v2454, %v2474
      %v2491 = vadd.f32 %v2455, %v2475
      %v2492 = vadd.f32 %v2456, %v2476
      %v2493 = vadd.f32 %v2457, %v2477
      %v2494 = vadd.f32 %v2458, %v2478
      %v2495 = vadd.f32 %v2459, %v2479
      %v2496 = vlaneseq
      %v2497 = vshrl.u32 %v2496, 7
      %v2498 = vsub.s32 6, %v2497
      %v2499 = vrot.slane %v571, %v2498
      %v2500 = vmul.f32 %v2264, %v2499
      %v2501 = vmul.f32 %v2265, %v2499
      %v2502 = vmul.f32 %v2266, %v2499
      %v2503 = vmul.f32 %v2267, %v2499
      %v2504 = vmul.f32 %v2268, %v2499
      %v2505 = vmul.f32 %v2269, %v2499
      %v2506 = vmul.f32 %v2270, %v2499
      %v2507 = vmul.f32 %v2271, %v2499
      %v2508 = vmul.f32 %v2272, %v2499
      %v2509 = vmul.f32 %v2273, %v2499
      %v2510 = vmul.f32 %v2274, %v2499
      %v2511 = vmul.f32 %v2275, %v2499
      %v2512 = vmul.f32 %v2276, %v2499
      %v2513 = vmul.f32 %v2277, %v2499
      %v2514 = vmul.f32 %v2278, %v2499
      %v2515 = vmul.f32 %v2279, %v2499
      %v2516 = vadd.f32 %v2480, %v2500
      %v2517 = vadd.f32 %v2481, %v2501
      %v2518 = vadd.f32 %v2482, %v2502
      %v2519 = vadd.f32 %v2483, %v2503
      %v2520 = vadd.f32 %v2484, %v2504
      %v2521 = vadd.f32 %v2485, %v2505
      %v2522 = vadd.f32 %v2486, %v2506
      %v2523 = vadd.f32 %v2487, %v2507
      %v2524 = vadd.f32 %v2488, %v2508
      %v2525 = vadd.f32 %v2489, %v2509
      %v2526 = vadd.f32 %v2490, %v2510
      %v2527 = vadd.f32 %v2491, %v2511
      %v2528 = vadd.f32 %v2492, %v2512
      %v2529 = vadd.f32 %v2493, %v2513
      %v2530 = vadd.f32 %v2494, %v2514
      %v2531 = vadd.f32 %v2495, %v2515
      %v2532 = vld [vmem:[%s3] sm:$0x1]
      %v2534 = vlaneseq
      %v2535 = vshrl.u32 %v2534, 7
      %v2536 = vsub.s32 0, %v2535
      %v2537 = vrot.slane %v2532, %v2536
      %v2539 = vadd.f32 %v2516, %v2537
      %v2540 = vadd.f32 %v2517, %v2537
      %v2541 = vadd.f32 %v2518, %v2537
      %v2542 = vadd.f32 %v2519, %v2537
      %v2543 = vadd.f32 %v2520, %v2537
      %v2544 = vadd.f32 %v2521, %v2537
      %v2545 = vadd.f32 %v2522, %v2537
      %v2546 = vadd.f32 %v2523, %v2537
      %v2547 = vadd.f32 %v2524, %v2537
      %v2548 = vadd.f32 %v2525, %v2537
      %v2549 = vadd.f32 %v2526, %v2537
      %v2550 = vadd.f32 %v2527, %v2537
      %v2551 = vadd.f32 %v2528, %v2537
      %v2552 = vadd.f32 %v2529, %v2537
      %v2553 = vadd.f32 %v2530, %v2537
      %v2554 = vadd.f32 %v2531, %v2537
      %v2555 = vsel %vm502, %v2539, 0.0
      %2556 = vadd.xlane.f32.xlu0 %v2555
      %v2557 = vpop.xlane.xlu0 %2556
      %v2558 = vsel %vm502, %v2540, 0.0
      %2559 = vadd.xlane.f32.xlu0 %v2558
      %v2560 = vpop.xlane.xlu0 %2559
      %v2561 = vsel %vm502, %v2541, 0.0
      %2562 = vadd.xlane.f32.xlu0 %v2561
      %v2563 = vpop.xlane.xlu0 %2562
      %v2564 = vsel %vm502, %v2542, 0.0
      %2565 = vadd.xlane.f32.xlu0 %v2564
      %v2566 = vpop.xlane.xlu0 %2565
      %v2567 = vsel %vm502, %v2543, 0.0
      %2568 = vadd.xlane.f32.xlu0 %v2567
      %v2569 = vpop.xlane.xlu0 %2568
      %v2570 = vsel %vm502, %v2544, 0.0
      %2571 = vadd.xlane.f32.xlu0 %v2570
      %v2572 = vpop.xlane.xlu0 %2571
      %v2573 = vsel %vm502, %v2545, 0.0
      %2574 = vadd.xlane.f32.xlu0 %v2573
      %v2575 = vpop.xlane.xlu0 %2574
      %v2576 = vsel %vm502, %v2546, 0.0
      %2577 = vadd.xlane.f32.xlu0 %v2576
      %v2578 = vpop.xlane.xlu0 %2577
      %v2579 = vsel %vm502, %v2547, 0.0
      %2580 = vadd.xlane.f32.xlu0 %v2579
      %v2581 = vpop.xlane.xlu0 %2580
      %v2582 = vsel %vm502, %v2548, 0.0
      %2583 = vadd.xlane.f32.xlu0 %v2582
      %v2584 = vpop.xlane.xlu0 %2583
      %v2585 = vsel %vm502, %v2549, 0.0
      %2586 = vadd.xlane.f32.xlu0 %v2585
      %v2587 = vpop.xlane.xlu0 %2586
      %v2588 = vsel %vm502, %v2550, 0.0
      %2589 = vadd.xlane.f32.xlu0 %v2588
      %v2590 = vpop.xlane.xlu0 %2589
      %v2591 = vsel %vm502, %v2551, 0.0
      %2592 = vadd.xlane.f32.xlu0 %v2591
      %v2593 = vpop.xlane.xlu0 %2592
      %v2594 = vsel %vm502, %v2552, 0.0
      %2595 = vadd.xlane.f32.xlu0 %v2594
      %v2596 = vpop.xlane.xlu0 %2595
      %v2597 = vsel %vm502, %v2553, 0.0
      %2598 = vadd.xlane.f32.xlu0 %v2597
      %v2599 = vpop.xlane.xlu0 %2598
      %v2600 = vsel %vm502, %v2554, 0.0
      %2601 = vadd.xlane.f32.xlu0 %v2600
      %v2602 = vpop.xlane.xlu0 %2601
      %v2603 = vrcp.pop 4.0
      %v2604 = vmul.f32 %v2557, %v2603
      %v2605 = vmul.f32 %v2560, %v2603
      %v2606 = vmul.f32 %v2563, %v2603
      %v2607 = vmul.f32 %v2566, %v2603
      %v2608 = vmul.f32 %v2569, %v2603
      %v2609 = vmul.f32 %v2572, %v2603
      %v2610 = vmul.f32 %v2575, %v2603
      %v2611 = vmul.f32 %v2578, %v2603
      %v2612 = vmul.f32 %v2581, %v2603
      %v2613 = vmul.f32 %v2584, %v2603
      %v2614 = vmul.f32 %v2587, %v2603
      %v2615 = vmul.f32 %v2590, %v2603
      %v2616 = vmul.f32 %v2593, %v2603
      %v2617 = vmul.f32 %v2596, %v2603
      %v2618 = vmul.f32 %v2599, %v2603
      %v2619 = vmul.f32 %v2602, %v2603
      %v2620 = vsub.f32 %v2539, %v2604
      %v2621 = vsub.f32 %v2540, %v2605
      %v2622 = vsub.f32 %v2541, %v2606
      %v2623 = vsub.f32 %v2542, %v2607
      %v2624 = vsub.f32 %v2543, %v2608
      %v2625 = vsub.f32 %v2544, %v2609
      %v2626 = vsub.f32 %v2545, %v2610
      %v2627 = vsub.f32 %v2546, %v2611
      %v2628 = vsub.f32 %v2547, %v2612
      %v2629 = vsub.f32 %v2548, %v2613
      %v2630 = vsub.f32 %v2549, %v2614
      %v2631 = vsub.f32 %v2550, %v2615
      %v2632 = vsub.f32 %v2551, %v2616
      %v2633 = vsub.f32 %v2552, %v2617
      %v2634 = vsub.f32 %v2553, %v2618
      %v2635 = vsub.f32 %v2554, %v2619
      %v2636 = vmul.f32 %v2620, %v2620
      %v2637 = vmul.f32 %v2621, %v2621
      %v2638 = vmul.f32 %v2622, %v2622
      %v2639 = vmul.f32 %v2623, %v2623
      %v2640 = vmul.f32 %v2624, %v2624
      %v2641 = vmul.f32 %v2625, %v2625
      %v2642 = vmul.f32 %v2626, %v2626
      %v2643 = vmul.f32 %v2627, %v2627
      %v2644 = vmul.f32 %v2628, %v2628
      %v2645 = vmul.f32 %v2629, %v2629
      %v2646 = vmul.f32 %v2630, %v2630
      %v2647 = vmul.f32 %v2631, %v2631
      %v2648 = vmul.f32 %v2632, %v2632
      %v2649 = vmul.f32 %v2633, %v2633
      %v2650 = vmul.f32 %v2634, %v2634
      %v2651 = vmul.f32 %v2635, %v2635
      %v2652 = vsel %vm502, %v2636, 0.0
      %2653 = vadd.xlane.f32.xlu0 %v2652
      %v2654 = vpop.xlane.xlu0 %2653
      %v2655 = vsel %vm502, %v2637, 0.0
      %2656 = vadd.xlane.f32.xlu0 %v2655
      %v2657 = vpop.xlane.xlu0 %2656
      %v2658 = vsel %vm502, %v2638, 0.0
      %2659 = vadd.xlane.f32.xlu0 %v2658
      %v2660 = vpop.xlane.xlu0 %2659
      %v2661 = vsel %vm502, %v2639, 0.0
      %2662 = vadd.xlane.f32.xlu0 %v2661
      %v2663 = vpop.xlane.xlu0 %2662
      %v2664 = vsel %vm502, %v2640, 0.0
      %2665 = vadd.xlane.f32.xlu0 %v2664
      %v2666 = vpop.xlane.xlu0 %2665
      %v2667 = vsel %vm502, %v2641, 0.0
      %2668 = vadd.xlane.f32.xlu0 %v2667
      %v2669 = vpop.xlane.xlu0 %2668
      %v2670 = vsel %vm502, %v2642, 0.0
      %2671 = vadd.xlane.f32.xlu0 %v2670
      %v2672 = vpop.xlane.xlu0 %2671
      %v2673 = vsel %vm502, %v2643, 0.0
      %2674 = vadd.xlane.f32.xlu0 %v2673
      %v2675 = vpop.xlane.xlu0 %2674
      %v2676 = vsel %vm502, %v2644, 0.0
      %2677 = vadd.xlane.f32.xlu0 %v2676
      %v2678 = vpop.xlane.xlu0 %2677
      %v2679 = vsel %vm502, %v2645, 0.0
      %2680 = vadd.xlane.f32.xlu0 %v2679
      %v2681 = vpop.xlane.xlu0 %2680
      %v2682 = vsel %vm502, %v2646, 0.0
      %2683 = vadd.xlane.f32.xlu0 %v2682
      %v2684 = vpop.xlane.xlu0 %2683
      %v2685 = vsel %vm502, %v2647, 0.0
      %2686 = vadd.xlane.f32.xlu0 %v2685
      %v2687 = vpop.xlane.xlu0 %2686
      %v2688 = vsel %vm502, %v2648, 0.0
      %2689 = vadd.xlane.f32.xlu0 %v2688
      %v2690 = vpop.xlane.xlu0 %2689
      %v2691 = vsel %vm502, %v2649, 0.0
      %2692 = vadd.xlane.f32.xlu0 %v2691
      %v2693 = vpop.xlane.xlu0 %2692
      %v2694 = vsel %vm502, %v2650, 0.0
      %2695 = vadd.xlane.f32.xlu0 %v2694
      %v2696 = vpop.xlane.xlu0 %2695
      %v2697 = vsel %vm502, %v2651, 0.0
      %2698 = vadd.xlane.f32.xlu0 %v2697
      %v2699 = vpop.xlane.xlu0 %2698
      %v2700 = vmul.f32 %v2654, %v2603
      %v2701 = vmul.f32 %v2657, %v2603
      %v2702 = vmul.f32 %v2660, %v2603
      %v2703 = vmul.f32 %v2663, %v2603
      %v2704 = vmul.f32 %v2666, %v2603
      %v2705 = vmul.f32 %v2669, %v2603
      %v2706 = vmul.f32 %v2672, %v2603
      %v2707 = vmul.f32 %v2675, %v2603
      %v2708 = vmul.f32 %v2678, %v2603
      %v2709 = vmul.f32 %v2681, %v2603
      %v2710 = vmul.f32 %v2684, %v2603
      %v2711 = vmul.f32 %v2687, %v2603
      %v2712 = vmul.f32 %v2690, %v2603
      %v2713 = vmul.f32 %v2693, %v2603
      %v2714 = vmul.f32 %v2696, %v2603
      %v2715 = vmul.f32 %v2699, %v2603
      %v2716 = vadd.f32 %v2700, 1e-06
      %v2717 = vadd.f32 %v2701, 1e-06
      %v2718 = vadd.f32 %v2702, 1e-06
      %v2719 = vadd.f32 %v2703, 1e-06
      %v2720 = vadd.f32 %v2704, 1e-06
      %v2721 = vadd.f32 %v2705, 1e-06
      %v2722 = vadd.f32 %v2706, 1e-06
      %v2723 = vadd.f32 %v2707, 1e-06
      %v2724 = vadd.f32 %v2708, 1e-06
      %v2725 = vadd.f32 %v2709, 1e-06
      %v2726 = vadd.f32 %v2710, 1e-06
      %v2727 = vadd.f32 %v2711, 1e-06
      %v2728 = vadd.f32 %v2712, 1e-06
      %v2729 = vadd.f32 %v2713, 1e-06
      %v2730 = vadd.f32 %v2714, 1e-06
      %v2731 = vadd.f32 %v2715, 1e-06
      %v2732 = vrsqrt.pop %v2716
      %v2733 = vrsqrt.pop %v2717
      %v2734 = vrsqrt.pop %v2718
      %v2735 = vrsqrt.pop %v2719
      %v2736 = vrsqrt.pop %v2720
      %v2737 = vrsqrt.pop %v2721
      %v2738 = vrsqrt.pop %v2722
      %v2739 = vrsqrt.pop %v2723
      %v2740 = vrsqrt.pop %v2724
      %v2741 = vrsqrt.pop %v2725
      %v2742 = vrsqrt.pop %v2726
      %v2743 = vrsqrt.pop %v2727
      %v2744 = vrsqrt.pop %v2728
      %v2745 = vrsqrt.pop %v2729
      %v2746 = vrsqrt.pop %v2730
      %v2747 = vrsqrt.pop %v2731
      %v2748 = vmul.f32 %v2620, %v2732
      %v2749 = vmul.f32 %v2621, %v2733
      %v2750 = vmul.f32 %v2622, %v2734
      %v2751 = vmul.f32 %v2623, %v2735
      %v2752 = vmul.f32 %v2624, %v2736
      %v2753 = vmul.f32 %v2625, %v2737
      %v2754 = vmul.f32 %v2626, %v2738
      %v2755 = vmul.f32 %v2627, %v2739
      %v2756 = vmul.f32 %v2628, %v2740
      %v2757 = vmul.f32 %v2629, %v2741
      %v2758 = vmul.f32 %v2630, %v2742
      %v2759 = vmul.f32 %v2631, %v2743
      %v2760 = vmul.f32 %v2632, %v2744
      %v2761 = vmul.f32 %v2633, %v2745
      %v2762 = vmul.f32 %v2634, %v2746
      %v2763 = vmul.f32 %v2635, %v2747
      %v2764 = vld [vmem:[%s4] sm:$0x1]
      %v2766 = vlaneseq
      %v2767 = vshrl.u32 %v2766, 7
      %v2768 = vsub.s32 0, %v2767
      %v2769 = vrot.slane %v2764, %v2768
      %v2771 = vmul.f32 %v2748, %v2769
      %v2772 = vmul.f32 %v2749, %v2769
      %v2773 = vmul.f32 %v2750, %v2769
      %v2774 = vmul.f32 %v2751, %v2769
      %v2775 = vmul.f32 %v2752, %v2769
      %v2776 = vmul.f32 %v2753, %v2769
      %v2777 = vmul.f32 %v2754, %v2769
      %v2778 = vmul.f32 %v2755, %v2769
      %v2779 = vmul.f32 %v2756, %v2769
      %v2780 = vmul.f32 %v2757, %v2769
      %v2781 = vmul.f32 %v2758, %v2769
      %v2782 = vmul.f32 %v2759, %v2769
      %v2783 = vmul.f32 %v2760, %v2769
      %v2784 = vmul.f32 %v2761, %v2769
      %v2785 = vmul.f32 %v2762, %v2769
      %v2786 = vmul.f32 %v2763, %v2769
      %v2787 = vld [vmem:[%s5] sm:$0x1]
      %v2789 = vlaneseq
      %v2790 = vshrl.u32 %v2789, 7
      %v2791 = vsub.s32 0, %v2790
      %v2792 = vrot.slane %v2787, %v2791
      %v2794 = vadd.f32 %v2771, %v2792
      %v2795 = vadd.f32 %v2772, %v2792
      %v2796 = vadd.f32 %v2773, %v2792
      %v2797 = vadd.f32 %v2774, %v2792
      %v2798 = vadd.f32 %v2775, %v2792
      %v2799 = vadd.f32 %v2776, %v2792
      %v2800 = vadd.f32 %v2777, %v2792
      %v2801 = vadd.f32 %v2778, %v2792
      %v2802 = vadd.f32 %v2779, %v2792
      %v2803 = vadd.f32 %v2780, %v2792
      %v2804 = vadd.f32 %v2781, %v2792
      %v2805 = vadd.f32 %v2782, %v2792
      %v2806 = vadd.f32 %v2783, %v2792
      %v2807 = vadd.f32 %v2784, %v2792
      %v2808 = vadd.f32 %v2785, %v2792
      %v2809 = vadd.f32 %v2786, %v2792
      %v2810 = vpack.c.bf16 %v2795, %v2794
      %v2811 = vpack.c.bf16 %v2797, %v2796
      %v2812 = vpack.c.bf16 %v2799, %v2798
      %v2813 = vpack.c.bf16 %v2801, %v2800
      %v2814 = vpack.c.bf16 %v2803, %v2802
      %v2815 = vpack.c.bf16 %v2805, %v2804
      %v2816 = vpack.c.bf16 %v2807, %v2806
      %v2817 = vpack.c.bf16 %v2809, %v2808
      %v2818 = vld [vmem:[%s6] sm:$0x3]
      %v2819 = vld [vmem:[%s7] sm:$0x1]
      %v2821 = vlaneseq
      %v2822 = vshrl.u32 %v2821, 7
      %v2823 = vsub.s32 0, %v2822
      %v2824 = vrot.slane %v2819, %v2823
      %v2827 = vsel %vm502, %v2810, 0
      %v2830 = vsel %vm502, %v2811, 0
      %v2833 = vsel %vm502, %v2812, 0
      %v2836 = vsel %vm502, %v2813, 0
      %v2839 = vsel %vm502, %v2814, 0
      %v2842 = vsel %vm502, %v2815, 0
      %v2845 = vsel %vm502, %v2816, 0
      %v2848 = vsel %vm502, %v2817, 0
      %vm2850 = vcmask 1041408
      %v2852 = vsel %vm2850, %v2818, 0
      %2854 = vmatprep.subr.bf16.mxu0 0
      %2855 = vmatpush1.bf16.msra.mxu0 0
      %2856 = vmatprep.subr.bf16.mxu0 0
      %2857 = vmatpush1.bf16.msra.mxu0 0
      %2858 = vmatprep.subr.bf16.mxu0 0
      %2859 = vmatpush1.bf16.msra.mxu0 0
      %2860 = vmatprep.subr.bf16.mxu0 0
      %2861 = vmatpush1.bf16.msra.mxu0 0
      %2862 = vmatprep.subr.bf16.mxu0 0
      %2863 = vmatpush1.bf16.msra.mxu0 0
      %2864 = vmatprep.subr.bf16.mxu0 0
      %2865 = vmatpush1.bf16.msra.mxu0 0
      %2866 = vmatprep.subr.bf16.mxu0 0
      %2867 = vmatpush1.bf16.msra.mxu0 0
      %2868 = vmatprep.subr.bf16.mxu0 0
      %2869 = vmatpush1.bf16.msra.mxu0 %v2852
      %2870 = vmatprep.subr.bf16.mxu0 0
      %2871 = vmatpush2.bf16.msra.mxu0 0
      %2872 = vmatprep.subr.bf16.mxu0 0
      %2873 = vmatpush2.bf16.msra.mxu0 0
      %2874 = vmatprep.subr.bf16.mxu0 0
      %2875 = vmatpush2.bf16.msra.mxu0 0
      %2876 = vmatprep.subr.bf16.mxu0 0
      %2877 = vmatpush2.bf16.msra.mxu0 0
      %2878 = vmatprep.subr.bf16.mxu0 0
      %2879 = vmatpush2.bf16.msra.mxu0 0
      %2880 = vmatprep.subr.bf16.mxu0 0
      %2881 = vmatpush2.bf16.msra.mxu0 0
      %2882 = vmatprep.subr.bf16.mxu0 0
      %2883 = vmatpush2.bf16.msra.mxu0 0
      %2884 = vmatprep.subr.bf16.mxu0 0
      %2885 = vmatpush2.bf16.msra.mxu0 0
      %2886 = vmatprep.mubr.bf16.mxu0 0
      %2887 = vmatmul.mubr.bf16.gmra.mxu0 %v2827
      %v2888 = vpop.f32.mrf.mxu0
      %v2889 = vadd.f32 %v2824, %v2888
      %v2890 = vpop.f32.mrf.mxu0
      %v2891 = vpop.f32.mrf.mxu0
      %v2892 = vadd.f32 %v2824, %v2891
      %v2893 = vpop.f32.mrf.mxu0
      %2894 = vmatprep.mubr.bf16.mxu0 0
      %2895 = vmatmul.mubr.bf16.gmra.mxu0 %v2830
      %v2896 = vpop.f32.mrf.mxu0
      %v2897 = vadd.f32 %v2824, %v2896
      %v2898 = vpop.f32.mrf.mxu0
      %v2899 = vpop.f32.mrf.mxu0
      %v2900 = vadd.f32 %v2824, %v2899
      %v2901 = vpop.f32.mrf.mxu0
      %2902 = vmatprep.mubr.bf16.mxu0 0
      %2903 = vmatmul.mubr.bf16.gmra.mxu0 %v2833
      %v2904 = vpop.f32.mrf.mxu0
      %v2905 = vadd.f32 %v2824, %v2904
      %v2906 = vpop.f32.mrf.mxu0
      %v2907 = vpop.f32.mrf.mxu0
      %v2908 = vadd.f32 %v2824, %v2907
      %v2909 = vpop.f32.mrf.mxu0
      %2910 = vmatprep.mubr.bf16.mxu0 0
      %2911 = vmatmul.mubr.bf16.gmra.mxu0 %v2836
      %v2912 = vpop.f32.mrf.mxu0
      %v2913 = vadd.f32 %v2824, %v2912
      %v2914 = vpop.f32.mrf.mxu0
      %v2915 = vpop.f32.mrf.mxu0
      %v2916 = vadd.f32 %v2824, %v2915
      %v2917 = vpop.f32.mrf.mxu0
      %2918 = vmatprep.mubr.bf16.mxu0 0
      %2919 = vmatmul.mubr.bf16.gmra.mxu0 %v2839
      %v2920 = vpop.f32.mrf.mxu0
      %v2921 = vadd.f32 %v2824, %v2920
      %v2922 = vpop.f32.mrf.mxu0
      %v2923 = vpop.f32.mrf.mxu0
      %v2924 = vadd.f32 %v2824, %v2923
      %v2925 = vpop.f32.mrf.mxu0
      %2926 = vmatprep.mubr.bf16.mxu0 0
      %2927 = vmatmul.mubr.bf16.gmra.mxu0 %v2842
      %v2928 = vpop.f32.mrf.mxu0
      %v2929 = vadd.f32 %v2824, %v2928
      %v2930 = vpop.f32.mrf.mxu0
      %v2931 = vpop.f32.mrf.mxu0
      %v2932 = vadd.f32 %v2824, %v2931
      %v2933 = vpop.f32.mrf.mxu0
      %2934 = vmatprep.mubr.bf16.mxu0 0
      %2935 = vmatmul.mubr.bf16.gmra.mxu0 %v2845
      %v2936 = vpop.f32.mrf.mxu0
      %v2937 = vadd.f32 %v2824, %v2936
      %v2938 = vpop.f32.mrf.mxu0
      %v2939 = vpop.f32.mrf.mxu0
      %v2940 = vadd.f32 %v2824, %v2939
      %v2941 = vpop.f32.mrf.mxu0
      %2942 = vmatprep.mubr.bf16.mxu0 0
      %2943 = vmatmul.mubr.bf16.gmra.mxu0 %v2848
      %v2944 = vpop.f32.mrf.mxu0
      %v2945 = vadd.f32 %v2824, %v2944
      %v2946 = vpop.f32.mrf.mxu0
      %v2947 = vpop.f32.mrf.mxu0
      %v2948 = vadd.f32 %v2824, %v2947
      %v2949 = vpop.f32.mrf.mxu0
      %2950 = vdwg.mxu0
      %v2951 = vmul.f32 %v2889, 0.5
      %v2952 = vmul.f32 %v2892, 0.5
      %v2953 = vmul.f32 %v2897, 0.5
      %v2954 = vmul.f32 %v2900, 0.5
      %v2955 = vmul.f32 %v2905, 0.5
      %v2956 = vmul.f32 %v2908, 0.5
      %v2957 = vmul.f32 %v2913, 0.5
      %v2958 = vmul.f32 %v2916, 0.5
      %v2959 = vmul.f32 %v2921, 0.5
      %v2960 = vmul.f32 %v2924, 0.5
      %v2961 = vmul.f32 %v2929, 0.5
      %v2962 = vmul.f32 %v2932, 0.5
      %v2963 = vmul.f32 %v2937, 0.5
      %v2964 = vmul.f32 %v2940, 0.5
      %v2965 = vmul.f32 %v2945, 0.5
      %v2966 = vmul.f32 %v2948, 0.5
      %v2967 = vmul.f32 %v2889, 0.70710677
      %v2968 = vmul.f32 %v2892, 0.70710677
      %v2969 = vmul.f32 %v2897, 0.70710677
      %v2970 = vmul.f32 %v2900, 0.70710677
      %v2971 = vmul.f32 %v2905, 0.70710677
      %v2972 = vmul.f32 %v2908, 0.70710677
      %v2973 = vmul.f32 %v2913, 0.70710677
      %v2974 = vmul.f32 %v2916, 0.70710677
      %v2975 = vmul.f32 %v2921, 0.70710677
      %v2976 = vmul.f32 %v2924, 0.70710677
      %v2977 = vmul.f32 %v2929, 0.70710677
      %v2978 = vmul.f32 %v2932, 0.70710677
      %v2979 = vmul.f32 %v2937, 0.70710677
      %v2980 = vmul.f32 %v2940, 0.70710677
      %v2981 = vmul.f32 %v2945, 0.70710677
      %v2982 = vmul.f32 %v2948, 0.70710677
      %v2983 = verf.f32.pop %v2967
      %v2984 = verf.f32.pop %v2968
      %v2985 = verf.f32.pop %v2969
      %v2986 = verf.f32.pop %v2970
      %v2987 = verf.f32.pop %v2971
      %v2988 = verf.f32.pop %v2972
      %v2989 = verf.f32.pop %v2973
      %v2990 = verf.f32.pop %v2974
      %v2991 = verf.f32.pop %v2975
      %v2992 = verf.f32.pop %v2976
      %v2993 = verf.f32.pop %v2977
      %v2994 = verf.f32.pop %v2978
      %v2995 = verf.f32.pop %v2979
      %v2996 = verf.f32.pop %v2980
      %v2997 = verf.f32.pop %v2981
      %v2998 = verf.f32.pop %v2982
      %v2999 = vadd.f32 %v2983, 1.0
      %v3000 = vadd.f32 %v2984, 1.0
      %v3001 = vadd.f32 %v2985, 1.0
      %v3002 = vadd.f32 %v2986, 1.0
      %v3003 = vadd.f32 %v2987, 1.0
      %v3004 = vadd.f32 %v2988, 1.0
      %v3005 = vadd.f32 %v2989, 1.0
      %v3006 = vadd.f32 %v2990, 1.0
      %v3007 = vadd.f32 %v2991, 1.0
      %v3008 = vadd.f32 %v2992, 1.0
      %v3009 = vadd.f32 %v2993, 1.0
      %v3010 = vadd.f32 %v2994, 1.0
      %v3011 = vadd.f32 %v2995, 1.0
      %v3012 = vadd.f32 %v2996, 1.0
      %v3013 = vadd.f32 %v2997, 1.0
      %v3014 = vadd.f32 %v2998, 1.0
      %v3015 = vmul.f32 %v2951, %v2999
      %v3016 = vmul.f32 %v2952, %v3000
      %v3017 = vmul.f32 %v2953, %v3001
      %v3018 = vmul.f32 %v2954, %v3002
      %v3019 = vmul.f32 %v2955, %v3003
      %v3020 = vmul.f32 %v2956, %v3004
      %v3021 = vmul.f32 %v2957, %v3005
      %v3022 = vmul.f32 %v2958, %v3006
      %v3023 = vmul.f32 %v2959, %v3007
      %v3024 = vmul.f32 %v2960, %v3008
      %v3025 = vmul.f32 %v2961, %v3009
      %v3026 = vmul.f32 %v2962, %v3010
      %v3027 = vmul.f32 %v2963, %v3011
      %v3028 = vmul.f32 %v2964, %v3012
      %v3029 = vmul.f32 %v2965, %v3013
      %v3030 = vmul.f32 %v2966, %v3014
      %v3031 = vpack.c.bf16 %v3016, %v3015
      %v3032 = vpack.c.bf16 %v3018, %v3017
      %v3033 = vpack.c.bf16 %v3020, %v3019
      %v3034 = vpack.c.bf16 %v3022, %v3021
      %v3035 = vpack.c.bf16 %v3024, %v3023
      %v3036 = vpack.c.bf16 %v3026, %v3025
      %v3037 = vpack.c.bf16 %v3028, %v3027
      %v3038 = vpack.c.bf16 %v3030, %v3029
      %v3039 = vld [vmem:[%s8] sm:$0xf]
      %v3040 = vld [vmem:[%s8 + $0x4] sm:$0xf]
      %v3041 = vld [vmem:[%s9] sm:$0x1]
      %v3043 = vlaneseq
      %v3044 = vshrl.u32 %v3043, 7
      %v3045 = vsub.s32 0, %v3044
      %v3046 = vrot.slane %v3041, %v3045
      %v3050 = vunpack.c.l.b16 %v3039
      %v3051 = vunpack.c.l.b16 %v3040
      %v3052 = vpack.c.b16 %v3051, %v3050
      %vm3054 = vcmask 130048
      %v3056 = vsel %vm3054, %v3031, 0
      %v3059 = vsel %vm3054, %v3032, 0
      %v3062 = vsel %vm3054, %v3033, 0
      %v3065 = vsel %vm3054, %v3034, 0
      %v3068 = vsel %vm3054, %v3035, 0
      %v3071 = vsel %vm3054, %v3036, 0
      %v3074 = vsel %vm3054, %v3037, 0
      %v3077 = vsel %vm3054, %v3038, 0
      %3079 = vmatprep.subr.bf16.mxu0 0
      %3080 = vmatpush1.bf16.msra.mxu0 0
      %3081 = vmatprep.subr.bf16.mxu0 0
      %3082 = vmatpush1.bf16.msra.mxu0 0
      %3083 = vmatprep.subr.bf16.mxu0 0
      %3084 = vmatpush1.bf16.msra.mxu0 0
      %3085 = vmatprep.subr.bf16.mxu0 0
      %3086 = vmatpush1.bf16.msra.mxu0 0
      %3087 = vmatprep.subr.bf16.mxu0 0
      %3088 = vmatpush1.bf16.msra.mxu0 0
      %3089 = vmatprep.subr.bf16.mxu0 0
      %3090 = vmatpush1.bf16.msra.mxu0 0
      %3091 = vmatprep.subr.bf16.mxu0 0
      %3092 = vmatpush1.bf16.msra.mxu0 0
      %3093 = vmatprep.subr.bf16.mxu0 0
      %3094 = vmatpush1.bf16.msra.mxu0 %v3052
      %3095 = vmatprep.subr.bf16.mxu0 0
      %3096 = vmatpush2.bf16.msra.mxu0 0
      %3097 = vmatprep.subr.bf16.mxu0 0
      %3098 = vmatpush2.bf16.msra.mxu0 0
      %3099 = vmatprep.subr.bf16.mxu0 0
      %3100 = vmatpush2.bf16.msra.mxu0 0
      %3101 = vmatprep.subr.bf16.mxu0 0
      %3102 = vmatpush2.bf16.msra.mxu0 0
      %3103 = vmatprep.subr.bf16.mxu0 0
      %3104 = vmatpush2.bf16.msra.mxu0 0
      %3105 = vmatprep.subr.bf16.mxu0 0
      %3106 = vmatpush2.bf16.msra.mxu0 0
      %3107 = vmatprep.subr.bf16.mxu0 0
      %3108 = vmatpush2.bf16.msra.mxu0 0
      %3109 = vmatprep.subr.bf16.mxu0 0
      %3110 = vmatpush2.bf16.msra.mxu0 0
      %3111 = vmatprep.mubr.bf16.mxu0 0
      %3112 = vmatmul.mubr.bf16.gmra.mxu0 %v3056
      %v3113 = vpop.f32.mrf.mxu0
      %v3114 = vadd.f32 %v3046, %v3113
      %v3115 = vpop.f32.mrf.mxu0
      %v3116 = vpop.f32.mrf.mxu0
      %v3117 = vadd.f32 %v3046, %v3116
      %v3118 = vpop.f32.mrf.mxu0
      %3119 = vmatprep.mubr.bf16.mxu0 0
      %3120 = vmatmul.mubr.bf16.gmra.mxu0 %v3059
      %v3121 = vpop.f32.mrf.mxu0
      %v3122 = vadd.f32 %v3046, %v3121
      %v3123 = vpop.f32.mrf.mxu0
      %v3124 = vpop.f32.mrf.mxu0
      %v3125 = vadd.f32 %v3046, %v3124
      %v3126 = vpop.f32.mrf.mxu0
      %3127 = vmatprep.mubr.bf16.mxu0 0
      %3128 = vmatmul.mubr.bf16.gmra.mxu0 %v3062
      %v3129 = vpop.f32.mrf.mxu0
      %v3130 = vadd.f32 %v3046, %v3129
      %v3131 = vpop.f32.mrf.mxu0
      %v3132 = vpop.f32.mrf.mxu0
      %v3133 = vadd.f32 %v3046, %v3132
      %v3134 = vpop.f32.mrf.mxu0
      %3135 = vmatprep.mubr.bf16.mxu0 0
      %3136 = vmatmul.mubr.bf16.gmra.mxu0 %v3065
      %v3137 = vpop.f32.mrf.mxu0
      %v3138 = vadd.f32 %v3046, %v3137
      %v3139 = vpop.f32.mrf.mxu0
      %v3140 = vpop.f32.mrf.mxu0
      %v3141 = vadd.f32 %v3046, %v3140
      %v3142 = vpop.f32.mrf.mxu0
      %3143 = vmatprep.mubr.bf16.mxu0 0
      %3144 = vmatmul.mubr.bf16.gmra.mxu0 %v3068
      %v3145 = vpop.f32.mrf.mxu0
      %v3146 = vadd.f32 %v3046, %v3145
      %v3147 = vpop.f32.mrf.mxu0
      %v3148 = vpop.f32.mrf.mxu0
      %v3149 = vadd.f32 %v3046, %v3148
      %v3150 = vpop.f32.mrf.mxu0
      %3151 = vmatprep.mubr.bf16.mxu0 0
      %3152 = vmatmul.mubr.bf16.gmra.mxu0 %v3071
      %v3153 = vpop.f32.mrf.mxu0
      %v3154 = vadd.f32 %v3046, %v3153
      %v3155 = vpop.f32.mrf.mxu0
      %v3156 = vpop.f32.mrf.mxu0
      %v3157 = vadd.f32 %v3046, %v3156
      %v3158 = vpop.f32.mrf.mxu0
      %3159 = vmatprep.mubr.bf16.mxu0 0
      %3160 = vmatmul.mubr.bf16.gmra.mxu0 %v3074
      %v3161 = vpop.f32.mrf.mxu0
      %v3162 = vadd.f32 %v3046, %v3161
      %v3163 = vpop.f32.mrf.mxu0
      %v3164 = vpop.f32.mrf.mxu0
      %v3165 = vadd.f32 %v3046, %v3164
      %v3166 = vpop.f32.mrf.mxu0
      %3167 = vmatprep.mubr.bf16.mxu0 0
      %3168 = vmatmul.mubr.bf16.gmra.mxu0 %v3077
      %v3169 = vpop.f32.mrf.mxu0
      %v3170 = vadd.f32 %v3046, %v3169
      %v3171 = vpop.f32.mrf.mxu0
      %v3172 = vpop.f32.mrf.mxu0
      %v3173 = vadd.f32 %v3046, %v3172
      %v3174 = vpop.f32.mrf.mxu0
      %3175 = vdwg.mxu0
      %v3176 = vld [vmem:[%s10] sm:$0x1]
      %v3178 = vlaneseq
      %v3179 = vshrl.u32 %v3178, 7
      %v3180 = vsub.s32 0, %v3179
      %v3181 = vrot.slane %v3176, %v3180
      %v3183 = vmul.f32 %v3114, %v3181
      %v3184 = vmul.f32 %v3117, %v3181
      %v3185 = vmul.f32 %v3122, %v3181
      %v3186 = vmul.f32 %v3125, %v3181
      %v3187 = vmul.f32 %v3130, %v3181
      %v3188 = vmul.f32 %v3133, %v3181
      %v3189 = vmul.f32 %v3138, %v3181
      %v3190 = vmul.f32 %v3141, %v3181
      %v3191 = vmul.f32 %v3146, %v3181
      %v3192 = vmul.f32 %v3149, %v3181
      %v3193 = vmul.f32 %v3154, %v3181
      %v3194 = vmul.f32 %v3157, %v3181
      %v3195 = vmul.f32 %v3162, %v3181
      %v3196 = vmul.f32 %v3165, %v3181
      %v3197 = vmul.f32 %v3170, %v3181
      %v3198 = vmul.f32 %v3173, %v3181
      %s3199 = scalar_lea.vmem [#allocation2], 72
      %v3200 = vld [vmem:[%s3199 + $0x3] sm:$0xff]
      %v3201 = vld [vmem:[%s3199 + $0xb] sm:$0xff]
      %v3202 = vld [vmem:[%s3199 + $0x1b] sm:$0xff]
      %v3203 = vld [vmem:[%s3199 + $0x23] sm:$0xff]
      %v3204 = vld [vmem:[%s3199 + $0x33] sm:$0xff]
      %v3205 = vld [vmem:[%s3199 + $0x3b] sm:$0xff]
      %v3206 = vld [vmem:[%s3199 + $0x4b] sm:$0xff]
      %v3207 = vld [vmem:[%s3199 + $0x53] sm:$0xff]
      %v3208 = vld [vmem:[%s3199 + $0x63] sm:$0xff]
      %v3209 = vld [vmem:[%s3199 + $0x6b] sm:$0xff]
      %v3210 = vld [vmem:[%s3199 + $0x7b] sm:$0xff]
      %v3211 = vld [vmem:[%s3199 + $0x83] sm:$0xff]
      %v3212 = vld [vmem:[%s3199 + $0x93] sm:$0xff]
      %v3213 = vld [vmem:[%s3199 + $0x9b] sm:$0xff]
      %v3214 = vld [vmem:[%s3199 + $0xab] sm:$0xff]
      %v3215 = vld [vmem:[%s3199 + $0xb3] sm:$0xff]
      %v3216 = vadd.f32 %v3200, %v3183
      %v3217 = vadd.f32 %v3201, %v3184
      %v3218 = vadd.f32 %v3202, %v3185
      %v3219 = vadd.f32 %v3203, %v3186
      %v3220 = vadd.f32 %v3204, %v3187
      %v3221 = vadd.f32 %v3205, %v3188
      %v3222 = vadd.f32 %v3206, %v3189
      %v3223 = vadd.f32 %v3207, %v3190
      %v3224 = vadd.f32 %v3208, %v3191
      %v3225 = vadd.f32 %v3209, %v3192
      %v3226 = vadd.f32 %v3210, %v3193
      %v3227 = vadd.f32 %v3211, %v3194
      %v3228 = vadd.f32 %v3212, %v3195
      %v3229 = vadd.f32 %v3213, %v3196
      %v3230 = vadd.f32 %v3214, %v3197
      %v3231 = vadd.f32 %v3215, %v3198
      %3232 = vst.msk [vmem:[%s475] sm:$0xff] %vm502, %v3216
      %3233 = vst.msk [vmem:[%s475 + $0x8] sm:$0xff] %vm502, %v3217
      %3234 = vst.msk [vmem:[%s475 + $0x10] sm:$0xff] %vm502, %v3218
      %3235 = vst.msk [vmem:[%s475 + $0x18] sm:$0xff] %vm502, %v3219
      %3236 = vst.msk [vmem:[%s475 + $0x20] sm:$0xff] %vm502, %v3220
      %3237 = vst.msk [vmem:[%s475 + $0x28] sm:$0xff] %vm502, %v3221
      %3238 = vst.msk [vmem:[%s475 + $0x30] sm:$0xff] %vm502, %v3222
      %3239 = vst.msk [vmem:[%s475 + $0x38] sm:$0xff] %vm502, %v3223
      %3240 = vst.msk [vmem:[%s475 + $0x40] sm:$0xff] %vm502, %v3224
      %3241 = vst.msk [vmem:[%s475 + $0x48] sm:$0xff] %vm502, %v3225
      %3242 = vst.msk [vmem:[%s475 + $0x50] sm:$0xff] %vm502, %v3226
      %3243 = vst.msk [vmem:[%s475 + $0x58] sm:$0xff] %vm502, %v3227
      %3244 = vst.msk [vmem:[%s475 + $0x60] sm:$0xff] %vm502, %v3228
      %3245 = vst.msk [vmem:[%s475 + $0x68] sm:$0xff] %vm502, %v3229
      %3246 = vst.msk [vmem:[%s475 + $0x70] sm:$0xff] %vm502, %v3230
      %3247 = vst.msk [vmem:[%s475 + $0x78] sm:$0xff] %vm502, %v3231
      %s3248 = smul.u32 8, %s27
      %p3249 = scmp.lt.s32.totalorder %s26, 1
      %s3250 = scalar_select %p3249, %s26, 1
      %p3251 = scmp.lt.s32.totalorder %s3248, 15
      %s3252 = scalar_select %p3251, %s3248, 15
      %s3253 = smul.addr %s3252, 2
      %s3254 = smul.addr %s3250, 32
      %s3255 = sadd.s32 %s3253, %s3254
      %s3256 = smul.addr %s3255, 8
      %s3257 = scalar_lea.vmem %s11, %s3256
      // Predicated region
      $region65: #{tpu_custom_call.1} parent=63 // pred_check
        %p3258 = pneg %p301
      $region66: #{tpu_custom_call.1} parent=63 // pred_check_branch
        %3260 = sbr.rel (%p3258) target = $region68
      $region67: #{tpu_custom_call.1} parent=63 // pred_region
        %s3261 = smul.u32 8, %s27
      $region68: #{tpu_custom_call.1} parent=63 // pred_fallthru
        _
    $region64: #{tpu_custom_call.1} parent=5 // pred_fallthru
      _
    %p3262 = scmp.le.s32.totalorder 2, %s17
    // Predicated region
    $region69: #{tpu_custom_call.1} parent=5 // pred_check
      %p3263 = pneg %p3262
    $region70: #{tpu_custom_call.1} parent=5 // pred_check_branch
      %3265 = sbr.rel (%p3263) target = $region72
    $region71: #{tpu_custom_call.1} parent=5 // pred_region
      %s3266 = ssub.s32 %s17, 2
      // Predicated region
      $region73: #{tpu_custom_call.1} parent=71 // pred_check
        %p3267 = pneg %p307
      $region74: #{tpu_custom_call.1} parent=71 // pred_check_branch
        %3269 = sbr.rel (%p3267) target = $region76
      $region75: #{tpu_custom_call.1} parent=71 // pred_region
        %s3270 = smul.u32 8, %s29
        %p3271 = scmp.lt.s32.totalorder %s28, 1
        %s3272 = scalar_select %p3271, %s28, 1
        %p3273 = scmp.lt.s32.totalorder %s3270, 15
        %s3274 = scalar_select %p3273, %s3270, 15
        %s3275 = smul.addr %s3274, 2
        %s3276 = smul.addr %s3272, 32
        %s3277 = sadd.s32 %s3275, %s3276
        %s3278 = smul.addr %s3277, 8
        %s3279 = scalar_lea.vmem %s11, %s3278
      $region76: #{tpu_custom_call.1} parent=71 // pred_fallthru
        _
    $region72: #{tpu_custom_call.1} parent=5 // pred_fallthru
      _
  $region6: #{tpu_custom_call.1} parent=0 // loop_footer
    %s21 = sadd.s32 1, %s17
  $region7: #{tpu_custom_call.1} parent=0 // loop_footer_branch
    %16 = sbr.rel target = $region3
  $region8: #{tpu_custom_call.1} parent=0 // loop_exit
    _

</llo_original>
